<compile_context>
chip_gen: v6e
topology: v6e:2x2x1
jax: 0.10.0
libtpu: 0.0.40
codegen_flags: <defaults>
</compile_context>

<pallas_src>
import numpy as np
import jax
import jax.numpy as jnp
from jax.experimental import pallas as pl
from jax.experimental.pallas import tpu as pltpu

BN_EPS = 1e-5      # PyTorch BatchNorm default eps
LANE = 128         # flattened spatial axis is padded to a lane multiple
C_ALIGN = 16       # bf16 packs 2 rows/sublane -> keep channel concats tile aligned


def _round_up(n, m):
    return (n + m - 1) // m * m


def _tap_masks(H, W, HWp):
    """(10, 2*HWp) masks for the (x | y) lane-stacked layout.

    Rows 0..8: 0/1 source-validity for each 3x3 tap (zero at spatial-pad
    destinations).  Row 9: real-pixel indicator, used to exclude spatial
    padding from the BN statistics when HW is not a multiple of 128."""
    HW = H * W
    hh, ww = np.meshgrid(np.arange(H), np.arange(W), indexing="ij")
    rows = []
    for ky in range(3):
        for kx in range(3):
            oy, ox = ky - 1, kx - 1
            m = (hh + oy >= 0) & (hh + oy < H) & (ww + ox >= 0) & (ww + ox < W)
            m = m.reshape(-1).astype(np.float32)
            m = np.concatenate([m, np.zeros(HWp - HW, np.float32)])
            rows.append(np.tile(m, 2))                       # x half | y half
    valid = np.concatenate([np.ones(HW, np.float32), np.zeros(HWp - HW, np.float32)])
    rows.append(np.tile(valid, 2))
    return np.stack(rows, axis=0)


def _make_fused_kernel(Cp, Coutp, HWp, W, apply_valid):
    # tap t = ky*3 + kx  <->  value at flat n is a[n + (ky-1)*W + (kx-1)]
    #   -> lane roll by -( (ky-1)*W + (kx-1) ), wrap-around zeroed by masks.
    shifts = [-((ky - 1) * W + (kx - 1)) for ky in range(3) for kx in range(3)]

    def kernel(x_ref, y_ref, masks_ref, w1_ref, b1_ref, w2_ref, b2_ref,
               w3_ref, b3_ref, wo_ref, bo_ref, z_ref, stats_ref):
        masks = masks_ref[...]                                      # (10, 2HWp) bf16
        a0 = jnp.concatenate([x_ref[...], y_ref[...]], axis=1)     # (Cp, 2HWp) f32

        def conv3x3_relu(a, w_ref, b):
            # im2col with taps folded into the contraction, split-K over the 3
            # kernel rows so only a (3Cp, 2HWp) bf16 patch is live at a time.
            # Both branches (x|y lane stacked) share one weight push per group.
            ab = a.astype(jnp.bfloat16)                             # center tap
            acc = None
            for g in range(3):
                taps = []
                for kx in range(3):
                    t = 3 * g + kx
                    s = shifts[t]
                    if s == 0:
                        taps.append(ab)
                    else:
                        taps.append(jnp.roll(a, s, axis=1).astype(jnp.bfloat16)
                                    * masks[t:t + 1, :])
                patch = jnp.concatenate(taps, axis=0)               # (3Cp, 2HWp) bf16
                part = jnp.dot(w_ref[g], patch,                     # bf16 x bf16 MXU
                               preferred_element_type=jnp.float32)  # f32 accumulate
                acc = part if acc is None else acc + part
            return jnp.maximum(acc + b, 0.0)                        # (Cp, 2HWp) f32

        z1 = conv3x3_relu(a0, w1_ref, b1_ref[...])
        z2 = conv3x3_relu(z1, w2_ref, b2_ref[...])
        a12 = z1 + z2                                               # reused temporary
        z3 = conv3x3_relu(a12, w3_ref, b3_ref[...])
        s_all = a12 + z3                                            # z1 + z2 + z3
        d = jnp.abs(s_all[:, :HWp] - s_all[:, HWp:])                # (Cp, HWp) f32

        # conv_out 1x1 (pre-BatchNorm), bf16 MXU operands, lane-dense store.
        z = jnp.dot(wo_ref[...], d.astype(jnp.bfloat16),
                    preferred_element_type=jnp.float32) + bo_ref[...]
        z_ref[...] = z.astype(jnp.bfloat16)                         # bf16 intermediate

        # Per-image partial BN statistics (one-pass sum / sum-of-squares) over
        # real pixels only (row 9 of the masks zeroes spatial padding).
        zs = z * masks[9:10, :HWp] if apply_valid else z
        ssum = jnp.sum(zs, axis=1, keepdims=True)                   # (Coutp, 1)
        ssq = jnp.sum(zs * zs, axis=1, keepdims=True)               # (Coutp, 1)
        stats_ref[...] = jnp.concatenate([ssum, ssq], axis=1)       # (Coutp, 2)

    return kernel


def _bn_relu_kernel(z_ref, scale_ref, shift_ref, o_ref):
    o_ref[...] = jnp.maximum(
        z_ref[...].astype(jnp.float32) * scale_ref[...] + shift_ref[...], 0.0)


@jax.jit
def densecat_cat_diff(x_nchw, y_nchw, params):
    """FCCDN densecat_cat_diff forward. x, y: (B, C, H, W); returns (B, Cout, H, W)."""
    B, C, H, W = x_nchw.shape
    HW = H * W
    Cout = params["wo"].shape[0]
    Cp = _round_up(C, C_ALIGN)
    Coutp = _round_up(Cout, 8)
    HWp = _round_up(HW, LANE)
    apply_valid = HWp != HW

    def pad_act(a):                       # (B, C, H, W) -> (B, Cp, HWp) f32, zero pad
        a = a.reshape(B, C, HW).astype(jnp.float32)
        return jnp.pad(a, ((0, 0), (0, Cp - C), (0, HWp - HW)))

    x = pad_act(x_nchw)
    y = pad_act(y_nchw)
    masks = jnp.asarray(_tap_masks(H, W, HWp)).astype(jnp.bfloat16)   # (10, 2HWp)

    def prep_w3x3(w):
        # OIHW (C,C,3,3) -> pad channels -> columns ordered (ky, kx, cin)
        # -> (3, Cp, 3Cp): one split-K group per kernel row, bf16 MXU operand.
        w = jnp.pad(w, ((0, Cp - C), (0, Cp - C), (0, 0), (0, 0)))
        w = jnp.transpose(w, (0, 2, 3, 1)).reshape(Cp, 3, 3 * Cp)
        return jnp.transpose(w, (1, 0, 2)).astype(jnp.bfloat16)

    def prep_b(b, n):
        return jnp.pad(b, (0, n - b.shape[0])).reshape(n, 1).astype(jnp.float32)

    w1 = prep_w3x3(params["w1"]); b1 = prep_b(params["b1"], Cp)
    w2 = prep_w3x3(params["w2"]); b2 = prep_b(params["b2"], Cp)
    w3 = prep_w3x3(params["w3"]); b3 = prep_b(params["b3"], Cp)
    wo = jnp.pad(params["wo"], ((0, Coutp - Cout), (0, Cp - C))).astype(jnp.bfloat16)
    bo = prep_b(params["bo"], Coutp)

    def resident(shape):   # full-array block, stays VMEM-resident across the grid
        nd = len(shape)
        return pl.BlockSpec(shape, lambda b: (0,) * nd)

    # Per-step working-set estimate -> scoped VMEM budget (cap: v7x physical).
    vmem_est = (
        2 * 2 * Cp * HWp * 4                 # x, y blocks, double-buffered f32
        + 2 * Coutp * HWp * 2 + 2 * Coutp * 2 * 4   # double-buffered outputs
        + 10 * 2 * HWp * 2                   # resident bf16 masks
        + 3 * (9 * Cp * Cp * 2 + Cp * 4) + Coutp * Cp * 2 + Coutp * 4  # weights
        + 6 * Cp * 2 * HWp * 4               # live f32 activations (a0,z1,z2,a12,z3,tmp)
        + 2 * 3 * Cp * 2 * HWp * 2           # bf16 split-K patch + cast temps
        + 2 * Coutp * HWp * 4                # z / masked z in f32
    )
    vmem_limit = int(min(max(2 * vmem_est, 32 * 1024 * 1024), 64 * 1024 * 1024))

    flops = B * (3 * 2 * Cp * 9 * Cp * 2 * HWp + 2 * Coutp * Cp * HWp + 60 * Cp * HWp)
    bytes_accessed = (4 * 2 * B * Cp * HWp + 2 * B * Coutp * HWp + 4 * B * Coutp * 2
                      + 2 * (3 * 9 * Cp * Cp + Coutp * Cp) + 2 * 10 * 2 * HWp
                      + 4 * (3 * Cp + Coutp))

    z_pre, stats = pl.pallas_call(
        _make_fused_kernel(Cp, Coutp, HWp, W, apply_valid),
        grid=(B,),
        in_specs=[
            pl.BlockSpec((None, Cp, HWp), lambda b: (b, 0, 0)),     # x (one image/step)
            pl.BlockSpec((None, Cp, HWp), lambda b: (b, 0, 0)),     # y
            resident((10, 2 * HWp)),                                # tap + valid masks
            resident((3, Cp, 3 * Cp)), resident((Cp, 1)),           # conv1
            resident((3, Cp, 3 * Cp)), resident((Cp, 1)),           # conv2
            resident((3, Cp, 3 * Cp)), resident((Cp, 1)),           # conv3
            resident((Coutp, Cp)), resident((Coutp, 1)),            # conv_out 1x1
        ],
        out_specs=[
            pl.BlockSpec((None, Coutp, HWp), lambda b: (b, 0, 0)),  # pre-BN acts (bf16)
            pl.BlockSpec((None, Coutp, 2), lambda b: (b, 0, 0)),    # per-image (sum, sumsq)
        ],
        out_shape=[
            jax.ShapeDtypeStruct((B, Coutp, HWp), jnp.bfloat16),
            jax.ShapeDtypeStruct((B, Coutp, 2), jnp.float32),
        ],
        compiler_params=pltpu.CompilerParams(
            dimension_semantics=("parallel",),
            vmem_limit_bytes=vmem_limit),
        cost_estimate=pl.CostEstimate(flops=flops, transcendentals=0,
                                      bytes_accessed=bytes_accessed),
    )(x, y, masks, w1, b1, w2, b2, w3, b3, wo, bo)

    # Global training-mode BatchNorm statistics from the tiny per-image partials.
    # TODO(synk): SyncBatchNorm cross-replica stat sync / running-stat (momentum)
    # updates are not implemented; stats cover only the batch seen by this call.
    total = jnp.sum(stats, axis=0)                     # (Coutp, 2)
    n_elems = jnp.float32(B * HW)                      # real pixels only
    mean = total[:, 0] / n_elems
    var = jnp.maximum(total[:, 1] / n_elems - mean * mean, 0.0)
    gamma = jnp.pad(params["gamma"], (0, Coutp - Cout))
    beta = jnp.pad(params["beta"], (0, Coutp - Cout))
    scale = gamma * jax.lax.rsqrt(var + BN_EPS)
    shift = beta - mean * scale

    out = pl.pallas_call(
        _bn_relu_kernel,
        grid=(B,),
        in_specs=[
            pl.BlockSpec((None, Coutp, HWp), lambda b: (b, 0, 0)),
            resident((Coutp, 1)),
            resident((Coutp, 1)),
        ],
        out_specs=pl.BlockSpec((None, Coutp, HWp), lambda b: (b, 0, 0)),
        out_shape=jax.ShapeDtypeStruct((B, Coutp, HWp), jnp.float32),
        compiler_params=pltpu.CompilerParams(dimension_semantics=("parallel",)),
        cost_estimate=pl.CostEstimate(flops=3 * B * Coutp * HWp, transcendentals=0,
                                      bytes_accessed=(2 + 4) * B * Coutp * HWp),
    )(z_pre, scale.reshape(Coutp, 1), shift.reshape(Coutp, 1))

    return out[:, :Cout, :HW].reshape(B, Cout, H, W)


def make_params(key, in_chn, out_chn):
    ks = jax.random.split(key, 8)
    return {
        "w1": 0.2 * jax.random.normal(ks[0], (in_chn, in_chn, 3, 3), jnp.float32),
        "b1": 0.05 * jax.random.normal(ks[1], (in_chn,), jnp.float32),
        "w2": 0.2 * jax.random.normal(ks[2], (in_chn, in_chn, 3, 3), jnp.float32),
        "b2": 0.05 * jax.random.normal(ks[3], (in_chn,), jnp.float32),
        "w3": 0.2 * jax.random.normal(ks[4], (in_chn, in_chn, 3, 3), jnp.float32),
        "b3": 0.05 * jax.random.normal(ks[5], (in_chn,), jnp.float32),
        "wo": 0.2 * jax.random.normal(ks[6], (out_chn, in_chn), jnp.float32),
        "bo": 0.05 * jax.random.normal(ks[7], (out_chn,), jnp.float32),
        # SyncBatchNorm affine params (default init: gamma=1, beta=0)
        "gamma": jnp.ones((out_chn,), jnp.float32),
        "beta": jnp.zeros((out_chn,), jnp.float32),
    }


def _reference(x, y, params, mxu_dtype=jnp.float32, store_dtype=jnp.float32):
    """Pure-JAX (XLA) reference of the PyTorch forward.

    mxu_dtype emulates the kernel's matmul-operand cast (bf16 in the Pallas
    version, f32 accumulation either way); store_dtype emulates the bf16
    storage of the pre-BN intermediate.  With f32/f32 this is the exact
    PyTorch-semantics reference."""
    rd = lambda a: a.astype(mxu_dtype).astype(jnp.float32)

    def conv3x3_relu(z, w, b):
        o = jax.lax.conv_general_dilated(rd(z), rd(w), (1, 1), ((1, 1), (1, 1)),
                                         dimension_numbers=("NCHW", "OIHW", "NCHW"))
        return jnp.maximum(o + b[None, :, None, None], 0.0)

    x1 = conv3x3_relu(x, params["w1"], params["b1"])
    x2 = conv3x3_relu(x1, params["w2"], params["b2"])
    x3 = conv3x3_relu(x2 + x1, params["w3"], params["b3"])
    y1 = conv3x3_relu(y, params["w1"], params["b1"])
    y2 = conv3x3_relu(y1, params["w2"], params["b2"])
    y3 = conv3x3_relu(y2 + y1, params["w3"], params["b3"])
    d = jnp.abs(x1 + x2 + x3 - y1 - y2 - y3)
    z = (jnp.einsum("oc,bchw->bohw", rd(params["wo"]), rd(d))
         + params["bo"][None, :, None, None])
    mean = jnp.mean(z, axis=(0, 2, 3), keepdims=True)
    var = jnp.maximum(jnp.mean(z * z, axis=(0, 2, 3), keepdims=True) - mean * mean, 0.0)
    scale = params["gamma"][None, :, None, None] * jax.lax.rsqrt(var + BN_EPS)
    shift = params["beta"][None, :, None, None] - mean * scale
    z_q = z.astype(store_dtype).astype(jnp.float32)
    return jnp.maximum(z_q * scale + shift, 0.0)


if __name__ == "__main__":
    B, in_chn, out_chn, H, W = 2, 4, 8, 16, 16
    key = jax.random.PRNGKey(0)
    kx, ky, kp = jax.random.split(key, 3)

    x = jax.random.normal(kx, (B, in_chn, H, W), jnp.float32)
    y = jax.random.normal(ky, (B, in_chn, H, W), jnp.float32)
    params = make_params(kp, in_chn, out_chn)

    out = densecat_cat_diff(x, y, params)
    jax.block_until_ready(out)
    assert out.shape == (B, out_chn, H, W)
    assert bool(jnp.all(jnp.isfinite(out)))

    # Tight structural check vs. a matched-precision XLA reference (same bf16
    # MXU-operand / bf16-storage policy; only accumulation order differs).
    ref_bf16 = _reference(x, y, params, mxu_dtype=jnp.bfloat16, store_dtype=jnp.bfloat16)
    err_bf16 = float(jnp.max(jnp.abs(out - ref_bf16)))
    assert err_bf16 < 2e-3, f"mismatch vs matched-precision reference: {err_bf16}"

    # Loose sanity check vs. the pure-f32 reference (deviation here is the
    # intended bf16-MXU numerics tradeoff, not a structural error).
    ref_f32 = _reference(x, y, params)
    err_f32 = float(jnp.max(jnp.abs(out - ref_f32)))
    assert err_f32 < 0.5, f"gross mismatch vs f32 reference: {err_f32}"

    print("KERNEL_OK")
</pallas_src>

<mosaic_0001>
module attributes {stable_mosaic.version = 11 : i64} {
  func.func @_bn_relu_kernel(%arg0: i32, %arg1: memref<1x8x256xbf16, #tpu.memory_space<vmem>>, %arg2: memref<8x1xf32, #tpu.memory_space<vmem>>, %arg3: memref<8x1xf32, #tpu.memory_space<vmem>>, %arg4: memref<1x8x256xf32, #tpu.memory_space<vmem>>) attributes {dimension_semantics = [#tpu.dimension_semantics<parallel>], iteration_bounds = array<i64: 2>, scalar_prefetch = 0 : i64, scratch_operands = 0 : i64, tpu.core_type = #tpu.core_type<tc>, window_params = [{transform_indices = @transform_0, window_bounds = array<i64: 1, 8, 256>}, {pipeline_mode = #tpu.pipeline_mode<synchronous>, transform_indices = @transform_1, window_bounds = array<i64: 8, 1>}, {pipeline_mode = #tpu.pipeline_mode<synchronous>, transform_indices = @transform_2, window_bounds = array<i64: 8, 1>}, {transform_indices = @transform_3, window_bounds = array<i64: 1, 8, 256>}]} {
    %c0 = arith.constant 0 : index
    %c0_0 = arith.constant 0 : index
    %c0_1 = arith.constant 0 : index
    %0 = vector.load %arg1[%c0, %c0_0, %c0_1] : memref<1x8x256xbf16, #tpu.memory_space<vmem>>, vector<1x8x256xbf16>
    %1 = vector.shape_cast %0 : vector<1x8x256xbf16> to vector<8x256xbf16>
    %2 = arith.extf %1 : vector<8x256xbf16> to vector<8x256xf32>
    %c0_2 = arith.constant 0 : index
    %c0_3 = arith.constant 0 : index
    %3 = vector.load %arg2[%c0_2, %c0_3] : memref<8x1xf32, #tpu.memory_space<vmem>>, vector<8x1xf32>
    %4 = vector.broadcast %3 : vector<8x1xf32> to vector<8x256xf32>
    %5 = arith.mulf %2, %4 : vector<8x256xf32>
    %c0_4 = arith.constant 0 : index
    %c0_5 = arith.constant 0 : index
    %6 = vector.load %arg3[%c0_4, %c0_5] : memref<8x1xf32, #tpu.memory_space<vmem>>, vector<8x1xf32>
    %7 = vector.broadcast %6 : vector<8x1xf32> to vector<8x256xf32>
    %8 = arith.addf %5, %7 : vector<8x256xf32>
    %cst = arith.constant 0.000000e+00 : f32
    %9 = vector.broadcast %cst : f32 to vector<8x256xf32>
    %10 = arith.maximumf %8, %9 : vector<8x256xf32>
    %c0_6 = arith.constant 0 : index
    %c0_7 = arith.constant 0 : index
    %c0_8 = arith.constant 0 : index
    %11 = vector.load %arg4[%c0_6, %c0_7, %c0_8] : memref<1x8x256xf32, #tpu.memory_space<vmem>>, vector<1x8x256xf32>
    %12 = vector.shape_cast %11 : vector<1x8x256xf32> to vector<8x256xf32>
    %13 = vector.shape_cast %10 : vector<8x256xf32> to vector<1x8x256xf32>
    tpu.vector_store %arg4[%c0_6, %c0_7, %c0_8], %13 {strides = array<i32>} : memref<1x8x256xf32, #tpu.memory_space<vmem>>, vector<1x8x256xf32>,
    return
  }
  func.func @transform_0(%arg0: i32) -> (i32, i32, i32) {
    %c0_i32 = arith.constant 0 : i32
    %c0_i32_0 = arith.constant 0 : i32
    %c0_i32_1 = arith.constant 0 : i32
    return %arg0, %c0_i32, %c0_i32_0 : i32, i32, i32
  }
  func.func @transform_1(%arg0: i32) -> (i32, i32) {
    %c0_i32 = arith.constant 0 : i32
    %c0_i32_0 = arith.constant 0 : i32
    %c0_i32_1 = arith.constant 0 : i32
    return %c0_i32, %c0_i32_0 : i32, i32
  }
  func.func @transform_2(%arg0: i32) -> (i32, i32) {
    %c0_i32 = arith.constant 0 : i32
    %c0_i32_0 = arith.constant 0 : i32
    %c0_i32_1 = arith.constant 0 : i32
    return %c0_i32, %c0_i32_0 : i32, i32
  }
  func.func @transform_3(%arg0: i32) -> (i32, i32, i32) {
    %c0_i32 = arith.constant 0 : i32
    %c0_i32_0 = arith.constant 0 : i32
    %c0_i32_1 = arith.constant 0 : i32
    return %arg0, %c0_i32, %c0_i32_0 : i32, i32, i32
  }
}

module attributes {stable_mosaic.version = 11 : i64} {
  func.func @kernel(%arg0: i32, %arg1: memref<1x16x256xf32, #tpu.memory_space<vmem>>, %arg2: memref<1x16x256xf32, #tpu.memory_space<vmem>>, %arg3: memref<10x512xbf16, #tpu.memory_space<vmem>>, %arg4: memref<3x16x48xbf16, #tpu.memory_space<vmem>>, %arg5: memref<16x1xf32, #tpu.memory_space<vmem>>, %arg6: memref<3x16x48xbf16, #tpu.memory_space<vmem>>, %arg7: memref<16x1xf32, #tpu.memory_space<vmem>>, %arg8: memref<3x16x48xbf16, #tpu.memory_space<vmem>>, %arg9: memref<16x1xf32, #tpu.memory_space<vmem>>, %arg10: memref<8x16xbf16, #tpu.memory_space<vmem>>, %arg11: memref<8x1xf32, #tpu.memory_space<vmem>>, %arg12: memref<1x8x256xbf16, #tpu.memory_space<vmem>>, %arg13: memref<1x8x2xf32, #tpu.memory_space<vmem>>) attributes {dimension_semantics = [#tpu.dimension_semantics<parallel>], iteration_bounds = array<i64: 2>, scalar_prefetch = 0 : i64, scratch_operands = 0 : i64, tpu.core_type = #tpu.core_type<tc>, window_params = [{transform_indices = @transform_0, window_bounds = array<i64: 1, 16, 256>}, {transform_indices = @transform_1, window_bounds = array<i64: 1, 16, 256>}, {pipeline_mode = #tpu.pipeline_mode<synchronous>, transform_indices = @transform_2, window_bounds = array<i64: 10, 512>}, {pipeline_mode = #tpu.pipeline_mode<synchronous>, transform_indices = @transform_3, window_bounds = array<i64: 3, 16, 48>}, {pipeline_mode = #tpu.pipeline_mode<synchronous>, transform_indices = @transform_4, window_bounds = array<i64: 16, 1>}, {pipeline_mode = #tpu.pipeline_mode<synchronous>, transform_indices = @transform_5, window_bounds = array<i64: 3, 16, 48>}, {pipeline_mode = #tpu.pipeline_mode<synchronous>, transform_indices = @transform_6, window_bounds = array<i64: 16, 1>}, {pipeline_mode = #tpu.pipeline_mode<synchronous>, transform_indices = @transform_7, window_bounds = array<i64: 3, 16, 48>}, {pipeline_mode = #tpu.pipeline_mode<synchronous>, transform_indices = @transform_8, window_bounds = array<i64: 16, 1>}, {pipeline_mode = #tpu.pipeline_mode<synchronous>, transform_indices = @transform_9, window_bounds = array<i64: 8, 16>}, {pipeline_mode = #tpu.pipeline_mode<synchronous>, transform_indices = @transform_10, window_bounds = array<i64: 8, 1>}, {transform_indices = @transform_11, window_bounds = array<i64: 1, 8, 256>}, {transform_indices = @transform_12, window_bounds = array<i64: 1, 8, 2>}]} {
    %c0 = arith.constant 0 : index
    %c0_0 = arith.constant 0 : index
    %0 = vector.load %arg3[%c0, %c0_0] : memref<10x512xbf16, #tpu.memory_space<vmem>>, vector<10x512xbf16>
    %c0_1 = arith.constant 0 : index
    %c0_2 = arith.constant 0 : index
    %c0_3 = arith.constant 0 : index
    %1 = vector.load %arg1[%c0_1, %c0_2, %c0_3] : memref<1x16x256xf32, #tpu.memory_space<vmem>>, vector<1x16x256xf32>
    %2 = vector.shape_cast %1 : vector<1x16x256xf32> to vector<16x256xf32>
    %c0_4 = arith.constant 0 : index
    %c0_5 = arith.constant 0 : index
    %c0_6 = arith.constant 0 : index
    %3 = vector.load %arg2[%c0_4, %c0_5, %c0_6] : memref<1x16x256xf32, #tpu.memory_space<vmem>>, vector<1x16x256xf32>
    %4 = vector.shape_cast %3 : vector<1x16x256xf32> to vector<16x256xf32>
    %5 = tpu.concatenate %2, %4 in 1 : vector<16x256xf32>, vector<16x256xf32> -> vector<16x512xf32>
    %c0_7 = arith.constant 0 : index
    %c0_8 = arith.constant 0 : index
    %6 = vector.load %arg5[%c0_7, %c0_8] : memref<16x1xf32, #tpu.memory_space<vmem>>, vector<16x1xf32>
    %7 = arith.truncf %5 : vector<16x512xf32> to vector<16x512xbf16>
    %8 = vector.extract_strided_slice %5 {offsets = [0, 495], sizes = [16, 17], strides = [1, 1]} : vector<16x512xf32> to vector<16x17xf32>
    %9 = vector.extract_strided_slice %5 {offsets = [0, 0], sizes = [16, 495], strides = [1, 1]} : vector<16x512xf32> to vector<16x495xf32>
    %10 = tpu.concatenate %8, %9 in 1 : vector<16x17xf32>, vector<16x495xf32> -> vector<16x512xf32>
    %11 = arith.truncf %10 : vector<16x512xf32> to vector<16x512xbf16>
    %12 = vector.extract_strided_slice %0 {offsets = [0, 0], sizes = [1, 512], strides = [1, 1]} : vector<10x512xbf16> to vector<1x512xbf16>
    %13 = vector.broadcast %12 : vector<1x512xbf16> to vector<16x512xbf16>
    %14 = arith.mulf %11, %13 : vector<16x512xbf16>
    %15 = vector.extract_strided_slice %5 {offsets = [0, 496], sizes = [16, 16], strides = [1, 1]} : vector<16x512xf32> to vector<16x16xf32>
    %16 = vector.extract_strided_slice %5 {offsets = [0, 0], sizes = [16, 496], strides = [1, 1]} : vector<16x512xf32> to vector<16x496xf32>
    %17 = tpu.concatenate %15, %16 in 1 : vector<16x16xf32>, vector<16x496xf32> -> vector<16x512xf32>
    %18 = arith.truncf %17 : vector<16x512xf32> to vector<16x512xbf16>
    %19 = vector.extract_strided_slice %0 {offsets = [1, 0], sizes = [1, 512], strides = [1, 1]} : vector<10x512xbf16> to vector<1x512xbf16>
    %20 = vector.broadcast %19 : vector<1x512xbf16> to vector<16x512xbf16>
    %21 = arith.mulf %18, %20 : vector<16x512xbf16>
    %22 = vector.extract_strided_slice %5 {offsets = [0, 497], sizes = [16, 15], strides = [1, 1]} : vector<16x512xf32> to vector<16x15xf32>
    %23 = vector.extract_strided_slice %5 {offsets = [0, 0], sizes = [16, 497], strides = [1, 1]} : vector<16x512xf32> to vector<16x497xf32>
    %24 = tpu.concatenate %22, %23 in 1 : vector<16x15xf32>, vector<16x497xf32> -> vector<16x512xf32>
    %25 = arith.truncf %24 : vector<16x512xf32> to vector<16x512xbf16>
    %26 = vector.extract_strided_slice %0 {offsets = [2, 0], sizes = [1, 512], strides = [1, 1]} : vector<10x512xbf16> to vector<1x512xbf16>
    %27 = vector.broadcast %26 : vector<1x512xbf16> to vector<16x512xbf16>
    %28 = arith.mulf %25, %27 : vector<16x512xbf16>
    %29 = tpu.concatenate %14, %21, %28 in 0 : vector<16x512xbf16>, vector<16x512xbf16>, vector<16x512xbf16> -> vector<48x512xbf16>
    %c0_9 = arith.constant 0 : index
    %c0_10 = arith.constant 0 : index
    %c0_11 = arith.constant 0 : index
    %30 = vector.load %arg4[%c0_9, %c0_10, %c0_11] : memref<3x16x48xbf16, #tpu.memory_space<vmem>>, vector<1x16x48xbf16>
    %31 = vector.shape_cast %30 : vector<1x16x48xbf16> to vector<16x48xbf16>
    %cst = arith.constant dense<0.000000e+00> : vector<16x512xf32>
    %32 = tpu.matmul %31, %29, %cst {dimension_numbers = #tpu.dot_dimension_numbers<[1], [0], [0], [1], [0, 0, 1, 1], [], []>} : vector<16x48xbf16>, vector<48x512xbf16>, vector<16x512xf32> -> vector<16x512xf32>
    %33 = vector.extract_strided_slice %5 {offsets = [0, 511], sizes = [16, 1], strides = [1, 1]} : vector<16x512xf32> to vector<16x1xf32>
    %34 = vector.extract_strided_slice %5 {offsets = [0, 0], sizes = [16, 511], strides = [1, 1]} : vector<16x512xf32> to vector<16x511xf32>
    %35 = tpu.concatenate %33, %34 in 1 : vector<16x1xf32>, vector<16x511xf32> -> vector<16x512xf32>
    %36 = arith.truncf %35 : vector<16x512xf32> to vector<16x512xbf16>
    %37 = vector.extract_strided_slice %0 {offsets = [3, 0], sizes = [1, 512], strides = [1, 1]} : vector<10x512xbf16> to vector<1x512xbf16>
    %38 = vector.broadcast %37 : vector<1x512xbf16> to vector<16x512xbf16>
    %39 = arith.mulf %36, %38 : vector<16x512xbf16>
    %40 = vector.extract_strided_slice %5 {offsets = [0, 1], sizes = [16, 511], strides = [1, 1]} : vector<16x512xf32> to vector<16x511xf32>
    %41 = vector.extract_strided_slice %5 {offsets = [0, 0], sizes = [16, 1], strides = [1, 1]} : vector<16x512xf32> to vector<16x1xf32>
    %42 = tpu.concatenate %40, %41 in 1 : vector<16x511xf32>, vector<16x1xf32> -> vector<16x512xf32>
    %43 = arith.truncf %42 : vector<16x512xf32> to vector<16x512xbf16>
    %44 = vector.extract_strided_slice %0 {offsets = [5, 0], sizes = [1, 512], strides = [1, 1]} : vector<10x512xbf16> to vector<1x512xbf16>
    %45 = vector.broadcast %44 : vector<1x512xbf16> to vector<16x512xbf16>
    %46 = arith.mulf %43, %45 : vector<16x512xbf16>
    %47 = tpu.concatenate %39, %7, %46 in 0 : vector<16x512xbf16>, vector<16x512xbf16>, vector<16x512xbf16> -> vector<48x512xbf16>
    %c1 = arith.constant 1 : index
    %c0_12 = arith.constant 0 : index
    %c0_13 = arith.constant 0 : index
    %48 = vector.load %arg4[%c1, %c0_12, %c0_13] : memref<3x16x48xbf16, #tpu.memory_space<vmem>>, vector<1x16x48xbf16>
    %49 = vector.shape_cast %48 : vector<1x16x48xbf16> to vector<16x48xbf16>
    %cst_14 = arith.constant dense<0.000000e+00> : vector<16x512xf32>
    %50 = tpu.matmul %49, %47, %cst_14 {dimension_numbers = #tpu.dot_dimension_numbers<[1], [0], [0], [1], [0, 0, 1, 1], [], []>} : vector<16x48xbf16>, vector<48x512xbf16>, vector<16x512xf32> -> vector<16x512xf32>
    %51 = arith.addf %32, %50 : vector<16x512xf32>
    %52 = vector.extract_strided_slice %5 {offsets = [0, 15], sizes = [16, 497], strides = [1, 1]} : vector<16x512xf32> to vector<16x497xf32>
    %53 = vector.extract_strided_slice %5 {offsets = [0, 0], sizes = [16, 15], strides = [1, 1]} : vector<16x512xf32> to vector<16x15xf32>
    %54 = tpu.concatenate %52, %53 in 1 : vector<16x497xf32>, vector<16x15xf32> -> vector<16x512xf32>
    %55 = arith.truncf %54 : vector<16x512xf32> to vector<16x512xbf16>
    %56 = vector.extract_strided_slice %0 {offsets = [6, 0], sizes = [1, 512], strides = [1, 1]} : vector<10x512xbf16> to vector<1x512xbf16>
    %57 = vector.broadcast %56 : vector<1x512xbf16> to vector<16x512xbf16>
    %58 = arith.mulf %55, %57 : vector<16x512xbf16>
    %59 = vector.extract_strided_slice %5 {offsets = [0, 16], sizes = [16, 496], strides = [1, 1]} : vector<16x512xf32> to vector<16x496xf32>
    %60 = vector.extract_strided_slice %5 {offsets = [0, 0], sizes = [16, 16], strides = [1, 1]} : vector<16x512xf32> to vector<16x16xf32>
    %61 = tpu.concatenate %59, %60 in 1 : vector<16x496xf32>, vector<16x16xf32> -> vector<16x512xf32>
    %62 = arith.truncf %61 : vector<16x512xf32> to vector<16x512xbf16>
    %63 = vector.extract_strided_slice %0 {offsets = [7, 0], sizes = [1, 512], strides = [1, 1]} : vector<10x512xbf16> to vector<1x512xbf16>
    %64 = vector.broadcast %63 : vector<1x512xbf16> to vector<16x512xbf16>
    %65 = arith.mulf %62, %64 : vector<16x512xbf16>
    %66 = vector.extract_strided_slice %5 {offsets = [0, 17], sizes = [16, 495], strides = [1, 1]} : vector<16x512xf32> to vector<16x495xf32>
    %67 = vector.extract_strided_slice %5 {offsets = [0, 0], sizes = [16, 17], strides = [1, 1]} : vector<16x512xf32> to vector<16x17xf32>
    %68 = tpu.concatenate %66, %67 in 1 : vector<16x495xf32>, vector<16x17xf32> -> vector<16x512xf32>
    %69 = arith.truncf %68 : vector<16x512xf32> to vector<16x512xbf16>
    %70 = vector.extract_strided_slice %0 {offsets = [8, 0], sizes = [1, 512], strides = [1, 1]} : vector<10x512xbf16> to vector<1x512xbf16>
    %71 = vector.broadcast %70 : vector<1x512xbf16> to vector<16x512xbf16>
    %72 = arith.mulf %69, %71 : vector<16x512xbf16>
    %73 = tpu.concatenate %58, %65, %72 in 0 : vector<16x512xbf16>, vector<16x512xbf16>, vector<16x512xbf16> -> vector<48x512xbf16>
    %c2 = arith.constant 2 : index
    %c0_15 = arith.constant 0 : index
    %c0_16 = arith.constant 0 : index
    %74 = vector.load %arg4[%c2, %c0_15, %c0_16] : memref<3x16x48xbf16, #tpu.memory_space<vmem>>, vector<1x16x48xbf16>
    %75 = vector.shape_cast %74 : vector<1x16x48xbf16> to vector<16x48xbf16>
    %cst_17 = arith.constant dense<0.000000e+00> : vector<16x512xf32>
    %76 = tpu.matmul %75, %73, %cst_17 {dimension_numbers = #tpu.dot_dimension_numbers<[1], [0], [0], [1], [0, 0, 1, 1], [], []>} : vector<16x48xbf16>, vector<48x512xbf16>, vector<16x512xf32> -> vector<16x512xf32>
    %77 = arith.addf %51, %76 : vector<16x512xf32>
    %78 = vector.broadcast %6 : vector<16x1xf32> to vector<16x512xf32>
    %79 = arith.addf %77, %78 : vector<16x512xf32>
    %cst_18 = arith.constant 0.000000e+00 : f32
    %80 = vector.broadcast %cst_18 : f32 to vector<16x512xf32>
    %81 = arith.maximumf %79, %80 : vector<16x512xf32>
    %c0_19 = arith.constant 0 : index
    %c0_20 = arith.constant 0 : index
    %82 = vector.load %arg7[%c0_19, %c0_20] : memref<16x1xf32, #tpu.memory_space<vmem>>, vector<16x1xf32>
    %83 = arith.truncf %81 : vector<16x512xf32> to vector<16x512xbf16>
    %84 = vector.extract_strided_slice %81 {offsets = [0, 495], sizes = [16, 17], strides = [1, 1]} : vector<16x512xf32> to vector<16x17xf32>
    %85 = vector.extract_strided_slice %81 {offsets = [0, 0], sizes = [16, 495], strides = [1, 1]} : vector<16x512xf32> to vector<16x495xf32>
    %86 = tpu.concatenate %84, %85 in 1 : vector<16x17xf32>, vector<16x495xf32> -> vector<16x512xf32>
    %87 = arith.truncf %86 : vector<16x512xf32> to vector<16x512xbf16>
    %88 = vector.extract_strided_slice %0 {offsets = [0, 0], sizes = [1, 512], strides = [1, 1]} : vector<10x512xbf16> to vector<1x512xbf16>
    %89 = vector.broadcast %88 : vector<1x512xbf16> to vector<16x512xbf16>
    %90 = arith.mulf %87, %89 : vector<16x512xbf16>
    %91 = vector.extract_strided_slice %81 {offsets = [0, 496], sizes = [16, 16], strides = [1, 1]} : vector<16x512xf32> to vector<16x16xf32>
    %92 = vector.extract_strided_slice %81 {offsets = [0, 0], sizes = [16, 496], strides = [1, 1]} : vector<16x512xf32> to vector<16x496xf32>
    %93 = tpu.concatenate %91, %92 in 1 : vector<16x16xf32>, vector<16x496xf32> -> vector<16x512xf32>
    %94 = arith.truncf %93 : vector<16x512xf32> to vector<16x512xbf16>
    %95 = vector.extract_strided_slice %0 {offsets = [1, 0], sizes = [1, 512], strides = [1, 1]} : vector<10x512xbf16> to vector<1x512xbf16>
    %96 = vector.broadcast %95 : vector<1x512xbf16> to vector<16x512xbf16>
    %97 = arith.mulf %94, %96 : vector<16x512xbf16>
    %98 = vector.extract_strided_slice %81 {offsets = [0, 497], sizes = [16, 15], strides = [1, 1]} : vector<16x512xf32> to vector<16x15xf32>
    %99 = vector.extract_strided_slice %81 {offsets = [0, 0], sizes = [16, 497], strides = [1, 1]} : vector<16x512xf32> to vector<16x497xf32>
    %100 = tpu.concatenate %98, %99 in 1 : vector<16x15xf32>, vector<16x497xf32> -> vector<16x512xf32>
    %101 = arith.truncf %100 : vector<16x512xf32> to vector<16x512xbf16>
    %102 = vector.extract_strided_slice %0 {offsets = [2, 0], sizes = [1, 512], strides = [1, 1]} : vector<10x512xbf16> to vector<1x512xbf16>
    %103 = vector.broadcast %102 : vector<1x512xbf16> to vector<16x512xbf16>
    %104 = arith.mulf %101, %103 : vector<16x512xbf16>
    %105 = tpu.concatenate %90, %97, %104 in 0 : vector<16x512xbf16>, vector<16x512xbf16>, vector<16x512xbf16> -> vector<48x512xbf16>
    %c0_21 = arith.constant 0 : index
    %c0_22 = arith.constant 0 : index
    %c0_23 = arith.constant 0 : index
    %106 = vector.load %arg6[%c0_21, %c0_22, %c0_23] : memref<3x16x48xbf16, #tpu.memory_space<vmem>>, vector<1x16x48xbf16>
    %107 = vector.shape_cast %106 : vector<1x16x48xbf16> to vector<16x48xbf16>
    %cst_24 = arith.constant dense<0.000000e+00> : vector<16x512xf32>
    %108 = tpu.matmul %107, %105, %cst_24 {dimension_numbers = #tpu.dot_dimension_numbers<[1], [0], [0], [1], [0, 0, 1, 1], [], []>} : vector<16x48xbf16>, vector<48x512xbf16>, vector<16x512xf32> -> vector<16x512xf32>
    %109 = vector.extract_strided_slice %81 {offsets = [0, 511], sizes = [16, 1], strides = [1, 1]} : vector<16x512xf32> to vector<16x1xf32>
    %110 = vector.extract_strided_slice %81 {offsets = [0, 0], sizes = [16, 511], strides = [1, 1]} : vector<16x512xf32> to vector<16x511xf32>
    %111 = tpu.concatenate %109, %110 in 1 : vector<16x1xf32>, vector<16x511xf32> -> vector<16x512xf32>
    %112 = arith.truncf %111 : vector<16x512xf32> to vector<16x512xbf16>
    %113 = vector.extract_strided_slice %0 {offsets = [3, 0], sizes = [1, 512], strides = [1, 1]} : vector<10x512xbf16> to vector<1x512xbf16>
    %114 = vector.broadcast %113 : vector<1x512xbf16> to vector<16x512xbf16>
    %115 = arith.mulf %112, %114 : vector<16x512xbf16>
    %116 = vector.extract_strided_slice %81 {offsets = [0, 1], sizes = [16, 511], strides = [1, 1]} : vector<16x512xf32> to vector<16x511xf32>
    %117 = vector.extract_strided_slice %81 {offsets = [0, 0], sizes = [16, 1], strides = [1, 1]} : vector<16x512xf32> to vector<16x1xf32>
    %118 = tpu.concatenate %116, %117 in 1 : vector<16x511xf32>, vector<16x1xf32> -> vector<16x512xf32>
    %119 = arith.truncf %118 : vector<16x512xf32> to vector<16x512xbf16>
    %120 = vector.extract_strided_slice %0 {offsets = [5, 0], sizes = [1, 512], strides = [1, 1]} : vector<10x512xbf16> to vector<1x512xbf16>
    %121 = vector.broadcast %120 : vector<1x512xbf16> to vector<16x512xbf16>
    %122 = arith.mulf %119, %121 : vector<16x512xbf16>
    %123 = tpu.concatenate %115, %83, %122 in 0 : vector<16x512xbf16>, vector<16x512xbf16>, vector<16x512xbf16> -> vector<48x512xbf16>
    %c1_25 = arith.constant 1 : index
    %c0_26 = arith.constant 0 : index
    %c0_27 = arith.constant 0 : index
    %124 = vector.load %arg6[%c1_25, %c0_26, %c0_27] : memref<3x16x48xbf16, #tpu.memory_space<vmem>>, vector<1x16x48xbf16>
    %125 = vector.shape_cast %124 : vector<1x16x48xbf16> to vector<16x48xbf16>
    %cst_28 = arith.constant dense<0.000000e+00> : vector<16x512xf32>
    %126 = tpu.matmul %125, %123, %cst_28 {dimension_numbers = #tpu.dot_dimension_numbers<[1], [0], [0], [1], [0, 0, 1, 1], [], []>} : vector<16x48xbf16>, vector<48x512xbf16>, vector<16x512xf32> -> vector<16x512xf32>
    %127 = arith.addf %108, %126 : vector<16x512xf32>
    %128 = vector.extract_strided_slice %81 {offsets = [0, 15], sizes = [16, 497], strides = [1, 1]} : vector<16x512xf32> to vector<16x497xf32>
    %129 = vector.extract_strided_slice %81 {offsets = [0, 0], sizes = [16, 15], strides = [1, 1]} : vector<16x512xf32> to vector<16x15xf32>
    %130 = tpu.concatenate %128, %129 in 1 : vector<16x497xf32>, vector<16x15xf32> -> vector<16x512xf32>
    %131 = arith.truncf %130 : vector<16x512xf32> to vector<16x512xbf16>
    %132 = vector.extract_strided_slice %0 {offsets = [6, 0], sizes = [1, 512], strides = [1, 1]} : vector<10x512xbf16> to vector<1x512xbf16>
    %133 = vector.broadcast %132 : vector<1x512xbf16> to vector<16x512xbf16>
    %134 = arith.mulf %131, %133 : vector<16x512xbf16>
    %135 = vector.extract_strided_slice %81 {offsets = [0, 16], sizes = [16, 496], strides = [1, 1]} : vector<16x512xf32> to vector<16x496xf32>
    %136 = vector.extract_strided_slice %81 {offsets = [0, 0], sizes = [16, 16], strides = [1, 1]} : vector<16x512xf32> to vector<16x16xf32>
    %137 = tpu.concatenate %135, %136 in 1 : vector<16x496xf32>, vector<16x16xf32> -> vector<16x512xf32>
    %138 = arith.truncf %137 : vector<16x512xf32> to vector<16x512xbf16>
    %139 = vector.extract_strided_slice %0 {offsets = [7, 0], sizes = [1, 512], strides = [1, 1]} : vector<10x512xbf16> to vector<1x512xbf16>
    %140 = vector.broadcast %139 : vector<1x512xbf16> to vector<16x512xbf16>
    %141 = arith.mulf %138, %140 : vector<16x512xbf16>
    %142 = vector.extract_strided_slice %81 {offsets = [0, 17], sizes = [16, 495], strides = [1, 1]} : vector<16x512xf32> to vector<16x495xf32>
    %143 = vector.extract_strided_slice %81 {offsets = [0, 0], sizes = [16, 17], strides = [1, 1]} : vector<16x512xf32> to vector<16x17xf32>
    %144 = tpu.concatenate %142, %143 in 1 : vector<16x495xf32>, vector<16x17xf32> -> vector<16x512xf32>
    %145 = arith.truncf %144 : vector<16x512xf32> to vector<16x512xbf16>
    %146 = vector.extract_strided_slice %0 {offsets = [8, 0], sizes = [1, 512], strides = [1, 1]} : vector<10x512xbf16> to vector<1x512xbf16>
    %147 = vector.broadcast %146 : vector<1x512xbf16> to vector<16x512xbf16>
    %148 = arith.mulf %145, %147 : vector<16x512xbf16>
    %149 = tpu.concatenate %134, %141, %148 in 0 : vector<16x512xbf16>, vector<16x512xbf16>, vector<16x512xbf16> -> vector<48x512xbf16>
    %c2_29 = arith.constant 2 : index
    %c0_30 = arith.constant 0 : index
    %c0_31 = arith.constant 0 : index
    %150 = vector.load %arg6[%c2_29, %c0_30, %c0_31] : memref<3x16x48xbf16, #tpu.memory_space<vmem>>, vector<1x16x48xbf16>
    %151 = vector.shape_cast %150 : vector<1x16x48xbf16> to vector<16x48xbf16>
    %cst_32 = arith.constant dense<0.000000e+00> : vector<16x512xf32>
    %152 = tpu.matmul %151, %149, %cst_32 {dimension_numbers = #tpu.dot_dimension_numbers<[1], [0], [0], [1], [0, 0, 1, 1], [], []>} : vector<16x48xbf16>, vector<48x512xbf16>, vector<16x512xf32> -> vector<16x512xf32>
    %153 = arith.addf %127, %152 : vector<16x512xf32>
    %154 = vector.broadcast %82 : vector<16x1xf32> to vector<16x512xf32>
    %155 = arith.addf %153, %154 : vector<16x512xf32>
    %cst_33 = arith.constant 0.000000e+00 : f32
    %156 = vector.broadcast %cst_33 : f32 to vector<16x512xf32>
    %157 = arith.maximumf %155, %156 : vector<16x512xf32>
    %158 = arith.addf %81, %157 : vector<16x512xf32>
    %c0_34 = arith.constant 0 : index
    %c0_35 = arith.constant 0 : index
    %159 = vector.load %arg9[%c0_34, %c0_35] : memref<16x1xf32, #tpu.memory_space<vmem>>, vector<16x1xf32>
    %160 = arith.truncf %158 : vector<16x512xf32> to vector<16x512xbf16>
    %161 = vector.extract_strided_slice %158 {offsets = [0, 495], sizes = [16, 17], strides = [1, 1]} : vector<16x512xf32> to vector<16x17xf32>
    %162 = vector.extract_strided_slice %158 {offsets = [0, 0], sizes = [16, 495], strides = [1, 1]} : vector<16x512xf32> to vector<16x495xf32>
    %163 = tpu.concatenate %161, %162 in 1 : vector<16x17xf32>, vector<16x495xf32> -> vector<16x512xf32>
    %164 = arith.truncf %163 : vector<16x512xf32> to vector<16x512xbf16>
    %165 = vector.extract_strided_slice %0 {offsets = [0, 0], sizes = [1, 512], strides = [1, 1]} : vector<10x512xbf16> to vector<1x512xbf16>
    %166 = vector.broadcast %165 : vector<1x512xbf16> to vector<16x512xbf16>
    %167 = arith.mulf %164, %166 : vector<16x512xbf16>
    %168 = vector.extract_strided_slice %158 {offsets = [0, 496], sizes = [16, 16], strides = [1, 1]} : vector<16x512xf32> to vector<16x16xf32>
    %169 = vector.extract_strided_slice %158 {offsets = [0, 0], sizes = [16, 496], strides = [1, 1]} : vector<16x512xf32> to vector<16x496xf32>
    %170 = tpu.concatenate %168, %169 in 1 : vector<16x16xf32>, vector<16x496xf32> -> vector<16x512xf32>
    %171 = arith.truncf %170 : vector<16x512xf32> to vector<16x512xbf16>
    %172 = vector.extract_strided_slice %0 {offsets = [1, 0], sizes = [1, 512], strides = [1, 1]} : vector<10x512xbf16> to vector<1x512xbf16>
    %173 = vector.broadcast %172 : vector<1x512xbf16> to vector<16x512xbf16>
    %174 = arith.mulf %171, %173 : vector<16x512xbf16>
    %175 = vector.extract_strided_slice %158 {offsets = [0, 497], sizes = [16, 15], strides = [1, 1]} : vector<16x512xf32> to vector<16x15xf32>
    %176 = vector.extract_strided_slice %158 {offsets = [0, 0], sizes = [16, 497], strides = [1, 1]} : vector<16x512xf32> to vector<16x497xf32>
    %177 = tpu.concatenate %175, %176 in 1 : vector<16x15xf32>, vector<16x497xf32> -> vector<16x512xf32>
    %178 = arith.truncf %177 : vector<16x512xf32> to vector<16x512xbf16>
    %179 = vector.extract_strided_slice %0 {offsets = [2, 0], sizes = [1, 512], strides = [1, 1]} : vector<10x512xbf16> to vector<1x512xbf16>
    %180 = vector.broadcast %179 : vector<1x512xbf16> to vector<16x512xbf16>
    %181 = arith.mulf %178, %180 : vector<16x512xbf16>
    %182 = tpu.concatenate %167, %174, %181 in 0 : vector<16x512xbf16>, vector<16x512xbf16>, vector<16x512xbf16> -> vector<48x512xbf16>
    %c0_36 = arith.constant 0 : index
    %c0_37 = arith.constant 0 : index
    %c0_38 = arith.constant 0 : index
    %183 = vector.load %arg8[%c0_36, %c0_37, %c0_38] : memref<3x16x48xbf16, #tpu.memory_space<vmem>>, vector<1x16x48xbf16>
    %184 = vector.shape_cast %183 : vector<1x16x48xbf16> to vector<16x48xbf16>
    %cst_39 = arith.constant dense<0.000000e+00> : vector<16x512xf32>
    %185 = tpu.matmul %184, %182, %cst_39 {dimension_numbers = #tpu.dot_dimension_numbers<[1], [0], [0], [1], [0, 0, 1, 1], [], []>} : vector<16x48xbf16>, vector<48x512xbf16>, vector<16x512xf32> -> vector<16x512xf32>
    %186 = vector.extract_strided_slice %158 {offsets = [0, 511], sizes = [16, 1], strides = [1, 1]} : vector<16x512xf32> to vector<16x1xf32>
    %187 = vector.extract_strided_slice %158 {offsets = [0, 0], sizes = [16, 511], strides = [1, 1]} : vector<16x512xf32> to vector<16x511xf32>
    %188 = tpu.concatenate %186, %187 in 1 : vector<16x1xf32>, vector<16x511xf32> -> vector<16x512xf32>
    %189 = arith.truncf %188 : vector<16x512xf32> to vector<16x512xbf16>
    %190 = vector.extract_strided_slice %0 {offsets = [3, 0], sizes = [1, 512], strides = [1, 1]} : vector<10x512xbf16> to vector<1x512xbf16>
    %191 = vector.broadcast %190 : vector<1x512xbf16> to vector<16x512xbf16>
    %192 = arith.mulf %189, %191 : vector<16x512xbf16>
    %193 = vector.extract_strided_slice %158 {offsets = [0, 1], sizes = [16, 511], strides = [1, 1]} : vector<16x512xf32> to vector<16x511xf32>
    %194 = vector.extract_strided_slice %158 {offsets = [0, 0], sizes = [16, 1], strides = [1, 1]} : vector<16x512xf32> to vector<16x1xf32>
    %195 = tpu.concatenate %193, %194 in 1 : vector<16x511xf32>, vector<16x1xf32> -> vector<16x512xf32>
    %196 = arith.truncf %195 : vector<16x512xf32> to vector<16x512xbf16>
    %197 = vector.extract_strided_slice %0 {offsets = [5, 0], sizes = [1, 512], strides = [1, 1]} : vector<10x512xbf16> to vector<1x512xbf16>
    %198 = vector.broadcast %197 : vector<1x512xbf16> to vector<16x512xbf16>
    %199 = arith.mulf %196, %198 : vector<16x512xbf16>
    %200 = tpu.concatenate %192, %160, %199 in 0 : vector<16x512xbf16>, vector<16x512xbf16>, vector<16x512xbf16> -> vector<48x512xbf16>
    %c1_40 = arith.constant 1 : index
    %c0_41 = arith.constant 0 : index
    %c0_42 = arith.constant 0 : index
    %201 = vector.load %arg8[%c1_40, %c0_41, %c0_42] : memref<3x16x48xbf16, #tpu.memory_space<vmem>>, vector<1x16x48xbf16>
    %202 = vector.shape_cast %201 : vector<1x16x48xbf16> to vector<16x48xbf16>
    %cst_43 = arith.constant dense<0.000000e+00> : vector<16x512xf32>
    %203 = tpu.matmul %202, %200, %cst_43 {dimension_numbers = #tpu.dot_dimension_numbers<[1], [0], [0], [1], [0, 0, 1, 1], [], []>} : vector<16x48xbf16>, vector<48x512xbf16>, vector<16x512xf32> -> vector<16x512xf32>
    %204 = arith.addf %185, %203 : vector<16x512xf32>
    %205 = vector.extract_strided_slice %158 {offsets = [0, 15], sizes = [16, 497], strides = [1, 1]} : vector<16x512xf32> to vector<16x497xf32>
    %206 = vector.extract_strided_slice %158 {offsets = [0, 0], sizes = [16, 15], strides = [1, 1]} : vector<16x512xf32> to vector<16x15xf32>
    %207 = tpu.concatenate %205, %206 in 1 : vector<16x497xf32>, vector<16x15xf32> -> vector<16x512xf32>
    %208 = arith.truncf %207 : vector<16x512xf32> to vector<16x512xbf16>
    %209 = vector.extract_strided_slice %0 {offsets = [6, 0], sizes = [1, 512], strides = [1, 1]} : vector<10x512xbf16> to vector<1x512xbf16>
    %210 = vector.broadcast %209 : vector<1x512xbf16> to vector<16x512xbf16>
    %211 = arith.mulf %208, %210 : vector<16x512xbf16>
    %212 = vector.extract_strided_slice %158 {offsets = [0, 16], sizes = [16, 496], strides = [1, 1]} : vector<16x512xf32> to vector<16x496xf32>
    %213 = vector.extract_strided_slice %158 {offsets = [0, 0], sizes = [16, 16], strides = [1, 1]} : vector<16x512xf32> to vector<16x16xf32>
    %214 = tpu.concatenate %212, %213 in 1 : vector<16x496xf32>, vector<16x16xf32> -> vector<16x512xf32>
    %215 = arith.truncf %214 : vector<16x512xf32> to vector<16x512xbf16>
    %216 = vector.extract_strided_slice %0 {offsets = [7, 0], sizes = [1, 512], strides = [1, 1]} : vector<10x512xbf16> to vector<1x512xbf16>
    %217 = vector.broadcast %216 : vector<1x512xbf16> to vector<16x512xbf16>
    %218 = arith.mulf %215, %217 : vector<16x512xbf16>
    %219 = vector.extract_strided_slice %158 {offsets = [0, 17], sizes = [16, 495], strides = [1, 1]} : vector<16x512xf32> to vector<16x495xf32>
    %220 = vector.extract_strided_slice %158 {offsets = [0, 0], sizes = [16, 17], strides = [1, 1]} : vector<16x512xf32> to vector<16x17xf32>
    %221 = tpu.concatenate %219, %220 in 1 : vector<16x495xf32>, vector<16x17xf32> -> vector<16x512xf32>
    %222 = arith.truncf %221 : vector<16x512xf32> to vector<16x512xbf16>
    %223 = vector.extract_strided_slice %0 {offsets = [8, 0], sizes = [1, 512], strides = [1, 1]} : vector<10x512xbf16> to vector<1x512xbf16>
    %224 = vector.broadcast %223 : vector<1x512xbf16> to vector<16x512xbf16>
    %225 = arith.mulf %222, %224 : vector<16x512xbf16>
    %226 = tpu.concatenate %211, %218, %225 in 0 : vector<16x512xbf16>, vector<16x512xbf16>, vector<16x512xbf16> -> vector<48x512xbf16>
    %c2_44 = arith.constant 2 : index
    %c0_45 = arith.constant 0 : index
    %c0_46 = arith.constant 0 : index
    %227 = vector.load %arg8[%c2_44, %c0_45, %c0_46] : memref<3x16x48xbf16, #tpu.memory_space<vmem>>, vector<1x16x48xbf16>
    %228 = vector.shape_cast %227 : vector<1x16x48xbf16> to vector<16x48xbf16>
    %cst_47 = arith.constant dense<0.000000e+00> : vector<16x512xf32>
    %229 = tpu.matmul %228, %226, %cst_47 {dimension_numbers = #tpu.dot_dimension_numbers<[1], [0], [0], [1], [0, 0, 1, 1], [], []>} : vector<16x48xbf16>, vector<48x512xbf16>, vector<16x512xf32> -> vector<16x512xf32>
    %230 = arith.addf %204, %229 : vector<16x512xf32>
    %231 = vector.broadcast %159 : vector<16x1xf32> to vector<16x512xf32>
    %232 = arith.addf %230, %231 : vector<16x512xf32>
    %cst_48 = arith.constant 0.000000e+00 : f32
    %233 = vector.broadcast %cst_48 : f32 to vector<16x512xf32>
    %234 = arith.maximumf %232, %233 : vector<16x512xf32>
    %235 = arith.addf %158, %234 : vector<16x512xf32>
    %236 = vector.extract_strided_slice %235 {offsets = [0, 0], sizes = [16, 256], strides = [1, 1]} : vector<16x512xf32> to vector<16x256xf32>
    %237 = vector.extract_strided_slice %235 {offsets = [0, 256], sizes = [16, 256], strides = [1, 1]} : vector<16x512xf32> to vector<16x256xf32>
    %238 = arith.subf %236, %237 : vector<16x256xf32>
    %239 = math.absf %238 : vector<16x256xf32>
    %c0_49 = arith.constant 0 : index
    %c0_50 = arith.constant 0 : index
    %240 = vector.load %arg10[%c0_49, %c0_50] : memref<8x16xbf16, #tpu.memory_space<vmem>>, vector<8x16xbf16>
    %241 = arith.truncf %239 : vector<16x256xf32> to vector<16x256xbf16>
    %cst_51 = arith.constant dense<0.000000e+00> : vector<8x256xf32>
    %242 = tpu.matmul %240, %241, %cst_51 {dimension_numbers = #tpu.dot_dimension_numbers<[1], [0], [0], [1], [0, 0, 1, 1], [], []>} : vector<8x16xbf16>, vector<16x256xbf16>, vector<8x256xf32> -> vector<8x256xf32>
    %c0_52 = arith.constant 0 : index
    %c0_53 = arith.constant 0 : index
    %243 = vector.load %arg11[%c0_52, %c0_53] : memref<8x1xf32, #tpu.memory_space<vmem>>, vector<8x1xf32>
    %244 = vector.broadcast %243 : vector<8x1xf32> to vector<8x256xf32>
    %245 = arith.addf %242, %244 : vector<8x256xf32>
    %246 = arith.truncf %245 : vector<8x256xf32> to vector<8x256xbf16>
    %c0_54 = arith.constant 0 : index
    %c0_55 = arith.constant 0 : index
    %c0_56 = arith.constant 0 : index
    %247 = vector.load %arg12[%c0_54, %c0_55, %c0_56] : memref<1x8x256xbf16, #tpu.memory_space<vmem>>, vector<1x8x256xbf16>
    %248 = vector.shape_cast %247 : vector<1x8x256xbf16> to vector<8x256xbf16>
    %249 = vector.shape_cast %246 : vector<8x256xbf16> to vector<1x8x256xbf16>
    tpu.vector_store %arg12[%c0_54, %c0_55, %c0_56], %249 {strides = array<i32>} : memref<1x8x256xbf16, #tpu.memory_space<vmem>>, vector<1x8x256xbf16>,
    %cst_57 = arith.constant dense<0.000000e+00> : vector<8xf32>
    %250 = vector.multi_reduction <add>, %245, %cst_57 [1] : vector<8x256xf32> to vector<8xf32>
    %251 = vector.shape_cast %250 : vector<8xf32> to vector<8x1xf32>
    %252 = arith.mulf %245, %245 : vector<8x256xf32>
    %cst_58 = arith.constant dense<0.000000e+00> : vector<8xf32>
    %253 = vector.multi_reduction <add>, %252, %cst_58 [1] : vector<8x256xf32> to vector<8xf32>
    %254 = vector.shape_cast %253 : vector<8xf32> to vector<8x1xf32>
    %255 = tpu.concatenate %251, %254 in 1 : vector<8x1xf32>, vector<8x1xf32> -> vector<8x2xf32>
    %c0_59 = arith.constant 0 : index
    %c0_60 = arith.constant 0 : index
    %c0_61 = arith.constant 0 : index
    %256 = vector.load %arg13[%c0_59, %c0_60, %c0_61] : memref<1x8x2xf32, #tpu.memory_space<vmem>>, vector<1x8x2xf32>
    %257 = vector.shape_cast %256 : vector<1x8x2xf32> to vector<8x2xf32>
    %258 = vector.shape_cast %255 : vector<8x2xf32> to vector<1x8x2xf32>
    tpu.vector_store %arg13[%c0_59, %c0_60, %c0_61], %258 {strides = array<i32>} : memref<1x8x2xf32, #tpu.memory_space<vmem>>, vector<1x8x2xf32>,
    return
  }
  func.func @transform_0(%arg0: i32) -> (i32, i32, i32) {
    %c0_i32 = arith.constant 0 : i32
    %c0_i32_0 = arith.constant 0 : i32
    %c0_i32_1 = arith.constant 0 : i32
    return %arg0, %c0_i32, %c0_i32_0 : i32, i32, i32
  }
  func.func @transform_1(%arg0: i32) -> (i32, i32, i32) {
    %c0_i32 = arith.constant 0 : i32
    %c0_i32_0 = arith.constant 0 : i32
    %c0_i32_1 = arith.constant 0 : i32
    return %arg0, %c0_i32, %c0_i32_0 : i32, i32, i32
  }
  func.func @transform_2(%arg0: i32) -> (i32, i32) {
    %c0_i32 = arith.constant 0 : i32
    %c0_i32_0 = arith.constant 0 : i32
    %c0_i32_1 = arith.constant 0 : i32
    return %c0_i32, %c0_i32_0 : i32, i32
  }
  func.func @transform_3(%arg0: i32) -> (i32, i32, i32) {
    %c0_i32 = arith.constant 0 : i32
    %c0_i32_0 = arith.constant 0 : i32
    %c0_i32_1 = arith.constant 0 : i32
    %c0_i32_2 = arith.constant 0 : i32
    return %c0_i32, %c0_i32_0, %c0_i32_1 : i32, i32, i32
  }
  func.func @transform_4(%arg0: i32) -> (i32, i32) {
    %c0_i32 = arith.constant 0 : i32
    %c0_i32_0 = arith.constant 0 : i32
    %c0_i32_1 = arith.constant 0 : i32
    return %c0_i32, %c0_i32_0 : i32, i32
  }
  func.func @transform_5(%arg0: i32) -> (i32, i32, i32) {
    %c0_i32 = arith.constant 0 : i32
    %c0_i32_0 = arith.constant 0 : i32
    %c0_i32_1 = arith.constant 0 : i32
    %c0_i32_2 = arith.constant 0 : i32
    return %c0_i32, %c0_i32_0, %c0_i32_1 : i32, i32, i32
  }
  func.func @transform_6(%arg0: i32) -> (i32, i32) {
    %c0_i32 = arith.constant 0 : i32
    %c0_i32_0 = arith.constant 0 : i32
    %c0_i32_1 = arith.constant 0 : i32
    return %c0_i32, %c0_i32_0 : i32, i32
  }
  func.func @transform_7(%arg0: i32) -> (i32, i32, i32) {
    %c0_i32 = arith.constant 0 : i32
    %c0_i32_0 = arith.constant 0 : i32
    %c0_i32_1 = arith.constant 0 : i32
    %c0_i32_2 = arith.constant 0 : i32
    return %c0_i32, %c0_i32_0, %c0_i32_1 : i32, i32, i32
  }
  func.func @transform_8(%arg0: i32) -> (i32, i32) {
    %c0_i32 = arith.constant 0 : i32
    %c0_i32_0 = arith.constant 0 : i32
    %c0_i32_1 = arith.constant 0 : i32
    return %c0_i32, %c0_i32_0 : i32, i32
  }
  func.func @transform_9(%arg0: i32) -> (i32, i32) {
    %c0_i32 = arith.constant 0 : i32
    %c0_i32_0 = arith.constant 0 : i32
    %c0_i32_1 = arith.constant 0 : i32
    return %c0_i32, %c0_i32_0 : i32, i32
  }
  func.func @transform_10(%arg0: i32) -> (i32, i32) {
    %c0_i32 = arith.constant 0 : i32
    %c0_i32_0 = arith.constant 0 : i32
    %c0_i32_1 = arith.constant 0 : i32
    return %c0_i32, %c0_i32_0 : i32, i32
  }
  func.func @transform_11(%arg0: i32) -> (i32, i32, i32) {
    %c0_i32 = arith.constant 0 : i32
    %c0_i32_0 = arith.constant 0 : i32
    %c0_i32_1 = arith.constant 0 : i32
    return %arg0, %c0_i32, %c0_i32_0 : i32, i32, i32
  }
  func.func @transform_12(%arg0: i32) -> (i32, i32, i32) {
    %c0_i32 = arith.constant 0 : i32
    %c0_i32_0 = arith.constant 0 : i32
    %c0_i32_1 = arith.constant 0 : i32
    return %arg0, %c0_i32, %c0_i32_0 : i32, i32, i32
  }
}

</mosaic_0001>

<llo_original>
// kernel: densecat_cat_diff.3
$region0: #{densecat_cat_diff.3}
  #allocation0 [shape = 'u32[]', space=smem, size = 0x4, offset = 0x4, fixed_abs, tag = 'smem constant byte address 0x4 - core index']
  #allocation1 [shape = 'u32[144,128]{1,0:T(1,128)}', space=vmem, size = 0x12000, scoped, tag = 'internal scratch']
  %s0 = inlined_call_operand.vmem [shape: bf16[2,8,256], index: 0, kind: input, shape index: {}]
  %s1 = inlined_call_operand.vmem [shape: f32[8,1], index: 1, kind: input, shape index: {}]
  %s2 = inlined_call_operand.vmem [shape: f32[8,1], index: 2, kind: input, shape index: {}]
  %s3 = inlined_call_operand.vmem [shape: f32[2,8,256], index: 3, kind: output, shape index: {}]
  %s4 = sld [smem:[#allocation0]]
  $region45: #{densecat_cat_diff.3} parent=0
    _
  %s6 = ssub.s32 1, %s4
  %s7 = scalar_select 0, %s6, %s4
  loop: start=0, step=1, limit=4
  $region2: #{densecat_cat_diff.3} parent=0 // loop_pre_header
    _
  $region3: #{densecat_cat_diff.3} parent=0 // loop_header
    %s9 = sphi 0, %s13
    %p10 = scmp.ge.s32.totalorder %s9, 4
    %s19 = sphi 0, %s21
    %s22 = sphi 0, %s19
    %s23 = sphi 0, %s22
    %s39 = sphi 0, %s23
    %s43 = sphi 0, %s43
    %s45 = sphi 0, %s43
    %s46 = sphi 0, %s45
    %s60 = sphi 0, %s46
    %s64 = sphi 0, %s64
    %s66 = sphi 0, %s64
    %s67 = sphi 0, %s66
    %s81 = sphi 0, %s67
    %s87 = sphi 0, %s89
    %s90 = sphi 0, %s87
    %s91 = sphi 0, %s90
    %s107 = sphi 0, %s91
  $region4: #{densecat_cat_diff.3} parent=0 // loop_header_branch
    %12 = sbr.rel (%p10) target = $region8
  $region5: #{densecat_cat_diff.3} parent=0 // loop_body
    %s14 = ssub.s32 %s9, 1
    %s15 = ssub.s32 %s9, 2
    %s16 = sadd.s32 %s9, 1
    %s17 = ssub.s32 %s9, %s16
    %p18 = scmp.eq.s32.totalorder %s17, 0
    %s20 = sadd.s32 %s19, 1
    %s21 = scalar_select %p18, %s19, %s20
    %p24 = pneg %p18
    %p25 = scmp.eq.s32.totalorder %s9, 1
    %p26 = por %p24, %p25
    %p27 = scmp.ne.s32.totalorder %s19, %s22
    %p28 = scmp.eq.s32.totalorder %s9, 0
    %p29 = por %p27, %p28
    %p30 = scmp.ne.s32.totalorder %s19, %s22
    %p31 = scmp.eq.s32.totalorder %s14, 1
    %p32 = por %p30, %p31
    %p33 = scmp.ne.s32.totalorder %s22, %s23
    %p34 = scmp.eq.s32.totalorder %s14, 0
    %p35 = por %p33, %p34
    %p36 = scmp.ne.s32.totalorder %s22, %s23
    %p37 = scmp.eq.s32.totalorder %s15, 1
    %p38 = por %p36, %p37
    %p40 = scmp.ne.s32.totalorder %s23, %s39
    %p41 = scmp.eq.s32.totalorder %s15, 0
    %p42 = por %p40, %p41
    %s44 = sadd.s32 %s43, 1
    %p47 = scmp.eq.s32.totalorder %s9, 1
    %p48 = scmp.ne.s32.totalorder %s43, %s45
    %p49 = scmp.eq.s32.totalorder %s9, 0
    %p50 = por %p48, %p49
    %p51 = scmp.ne.s32.totalorder %s43, %s45
    %p52 = scmp.eq.s32.totalorder %s14, 1
    %p53 = por %p51, %p52
    %p54 = scmp.ne.s32.totalorder %s45, %s46
    %p55 = scmp.eq.s32.totalorder %s14, 0
    %p56 = por %p54, %p55
    %p57 = scmp.ne.s32.totalorder %s45, %s46
    %p58 = scmp.eq.s32.totalorder %s15, 1
    %p59 = por %p57, %p58
    %p61 = scmp.ne.s32.totalorder %s46, %s60
    %p62 = scmp.eq.s32.totalorder %s15, 0
    %p63 = por %p61, %p62
    %s65 = sadd.s32 %s64, 1
    %p68 = scmp.eq.s32.totalorder %s9, 1
    %p69 = scmp.ne.s32.totalorder %s64, %s66
    %p70 = scmp.eq.s32.totalorder %s9, 0
    %p71 = por %p69, %p70
    %p72 = scmp.ne.s32.totalorder %s64, %s66
    %p73 = scmp.eq.s32.totalorder %s14, 1
    %p74 = por %p72, %p73
    %p75 = scmp.ne.s32.totalorder %s66, %s67
    %p76 = scmp.eq.s32.totalorder %s14, 0
    %p77 = por %p75, %p76
    %p78 = scmp.ne.s32.totalorder %s66, %s67
    %p79 = scmp.eq.s32.totalorder %s15, 1
    %p80 = por %p78, %p79
    %p82 = scmp.ne.s32.totalorder %s67, %s81
    %p83 = scmp.eq.s32.totalorder %s15, 0
    %p84 = por %p82, %p83
    %s85 = ssub.s32 %s9, %s16
    %p86 = scmp.eq.s32.totalorder %s85, 0
    %s88 = sadd.s32 %s87, 1
    %s89 = scalar_select %p86, %s87, %s88
    %p92 = pneg %p86
    %p93 = scmp.eq.s32.totalorder %s9, 1
    %p94 = por %p92, %p93
    %p95 = scmp.ne.s32.totalorder %s87, %s90
    %p96 = scmp.eq.s32.totalorder %s9, 0
    %p97 = por %p95, %p96
    %p98 = scmp.ne.s32.totalorder %s87, %s90
    %p99 = scmp.eq.s32.totalorder %s14, 1
    %p100 = por %p98, %p99
    %p101 = scmp.ne.s32.totalorder %s90, %s91
    %p102 = scmp.eq.s32.totalorder %s14, 0
    %p103 = por %p101, %p102
    %p104 = scmp.ne.s32.totalorder %s90, %s91
    %p105 = scmp.eq.s32.totalorder %s15, 1
    %p106 = por %p104, %p105
    %p108 = scmp.ne.s32.totalorder %s91, %s107
    %p109 = scmp.eq.s32.totalorder %s15, 0
    %p110 = por %p108, %p109
    %p111 = scmp.le.s32.totalorder 1, %s9
    %p112 = scmp.lt.s32.totalorder %s9, 3
    %p113 = pnand %p111, %p112
    %p114 = pneg %p113
    // Predicated region
    $region9: #{densecat_cat_diff.3} parent=5 // pred_check
      _
    $region10: #{densecat_cat_diff.3} parent=5 // pred_check_branch
      %116 = sbr.rel (%p113) target = $region12
    $region11: #{densecat_cat_diff.3} parent=5 // pred_region
      %s117 = ssub.s32 %s9, 1
      // Predicated region
      $region13: #{densecat_cat_diff.3} parent=11 // pred_check
        %p118 = pneg %p56
      $region14: #{densecat_cat_diff.3} parent=11 // pred_check_branch
        %120 = sbr.rel (%p118) target = $region16
      $region15: #{densecat_cat_diff.3} parent=11 // pred_region
        _
      $region16: #{densecat_cat_diff.3} parent=11 // pred_fallthru
        _
      // Predicated region
      $region17: #{densecat_cat_diff.3} parent=11 // pred_check
        %p121 = pneg %p77
      $region18: #{densecat_cat_diff.3} parent=11 // pred_check_branch
        %123 = sbr.rel (%p121) target = $region20
      $region19: #{densecat_cat_diff.3} parent=11 // pred_region
        _
      $region20: #{densecat_cat_diff.3} parent=11 // pred_fallthru
        _
    $region12: #{densecat_cat_diff.3} parent=5 // pred_fallthru
      _
    %p124 = scmp.lt.s32.totalorder %s9, 2
    // Predicated region
    $region21: #{densecat_cat_diff.3} parent=5 // pred_check
      %p125 = pneg %p124
    $region22: #{densecat_cat_diff.3} parent=5 // pred_check_branch
      %127 = sbr.rel (%p125) target = $region24
    $region23: #{densecat_cat_diff.3} parent=5 // pred_region
      // Predicated region
      $region25: #{densecat_cat_diff.3} parent=23 // pred_check
        %p128 = pneg %p29
      $region26: #{densecat_cat_diff.3} parent=23 // pred_check_branch
        %130 = sbr.rel (%p128) target = $region28
      $region27: #{densecat_cat_diff.3} parent=23 // pred_region
        %p131 = scmp.lt.s32.totalorder %s9, 1
        %s132 = scalar_select %p131, %s9, 1
        %s133 = smul.addr %s132, 2
        %s134 = smul.addr %s133, 4
        %s135 = scalar_lea.vmem %s0, %s134
      $region28: #{densecat_cat_diff.3} parent=23 // pred_fallthru
        _
    $region24: #{densecat_cat_diff.3} parent=5 // pred_fallthru
      _
    %p136 = scmp.le.s32.totalorder 1, %s9
    %p137 = scmp.lt.s32.totalorder %s9, 3
    %p138 = pnand %p136, %p137
    %p139 = pneg %p138
    // Predicated region
    $region29: #{densecat_cat_diff.3} parent=5 // pred_check
      _
    $region30: #{densecat_cat_diff.3} parent=5 // pred_check_branch
      %141 = sbr.rel (%p138) target = $region32
    $region31: #{densecat_cat_diff.3} parent=5 // pred_region
      %s142 = ssub.s32 %s9, 1
      %p143 = scmp.lt.s32.totalorder %s14, 1
      %s144 = scalar_select %p143, %s14, 1
      %s145 = smul.addr %s144, 2
      %s146 = smul.addr %s145, 4
      %s147 = scalar_lea.vmem %s0, %s146
      %p148 = pneg %p35
      %p149 = pneg %p32
      %p150 = pneg %p56
      %p151 = pneg %p53
      %p152 = pneg %p77
      %p153 = pneg %p74
      %p154 = pneg %p103
      %p155 = pneg %p100
      %p156 = scmp.lt.s32.totalorder %s14, 1
      %s157 = scalar_select %p156, %s14, 1
      %s158 = smul.addr %s157, 2
      %s159 = smul.addr %s158, 8
      %s160 = scalar_lea.vmem %s3, %s159
      %p161 = scmp.lt.s32.totalorder %s14, 1
      %s162 = scalar_select %p161, %s14, 1
      %s163 = smul.addr %s162, 2
      %s164 = smul.addr %s163, 4
      %s165 = scalar_lea.vmem %s0, %s164
      %p166 = scmp.lt.s32.totalorder %s14, 1
      %s167 = scalar_select %p166, %s14, 1
      %s168 = smul.addr %s167, 2
      %s169 = smul.addr %s168, 8
      %s170 = scalar_lea.vmem %s3, %s169
      %v171 = vld [vmem:[%s165] sm:$0xff]
      %v172 = vunpack.c.l.bf16 %v171
      %v173 = vunpack.c.h.bf16 %v171
      %v174 = vld [vmem:[%s1] sm:$0xff]
      %176 = vset.pattern.permute.xlu0 0
      %177 = vperm.xlu0 %176, %v174
      %v178 = vpop.permute.xlu0 %177
      %v180 = vmul.f32 %v172, %v178
      %v181 = vmul.f32 %v173, %v178
      %v182 = vld [vmem:[%s2] sm:$0xff]
      %184 = vset.pattern.permute.xlu0 0
      %185 = vperm.xlu0 %184, %v182
      %v186 = vpop.permute.xlu0 %185
      %v188 = vadd.f32 %v180, %v186
      %v189 = vadd.f32 %v181, %v186
      %v190 = vmax.f32 %v188, 0.0
      %v191 = vmax.f32 %v189, 0.0
      %192 = vst [vmem:[%s170] sm:$0xff] %v190
      %193 = vst [vmem:[%s170 + $0x8] sm:$0xff] %v191
      %p194 = scmp.lt.s32.totalorder %s14, 1
      %s195 = scalar_select %p194, %s14, 1
      %s196 = smul.addr %s195, 2
      %s197 = smul.addr %s196, 8
      %s198 = scalar_lea.vmem %s3, %s197
      // Predicated region
      $region33: #{densecat_cat_diff.3} parent=31 // pred_check
        %p199 = pneg %p100
      $region34: #{densecat_cat_diff.3} parent=31 // pred_check_branch
        %201 = sbr.rel (%p199) target = $region36
      $region35: #{densecat_cat_diff.3} parent=31 // pred_region
        _
      $region36: #{densecat_cat_diff.3} parent=31 // pred_fallthru
        _
    $region32: #{densecat_cat_diff.3} parent=5 // pred_fallthru
      _
    %p202 = scmp.le.s32.totalorder 2, %s9
    // Predicated region
    $region37: #{densecat_cat_diff.3} parent=5 // pred_check
      %p203 = pneg %p202
    $region38: #{densecat_cat_diff.3} parent=5 // pred_check_branch
      %205 = sbr.rel (%p203) target = $region40
    $region39: #{densecat_cat_diff.3} parent=5 // pred_region
      %s206 = ssub.s32 %s9, 2
      // Predicated region
      $region41: #{densecat_cat_diff.3} parent=39 // pred_check
        %p207 = pneg %p106
      $region42: #{densecat_cat_diff.3} parent=39 // pred_check_branch
        %209 = sbr.rel (%p207) target = $region44
      $region43: #{densecat_cat_diff.3} parent=39 // pred_region
        %p210 = scmp.lt.s32.totalorder %s15, 1
        %s211 = scalar_select %p210, %s15, 1
        %s212 = smul.addr %s211, 2
        %s213 = smul.addr %s212, 8
        %s214 = scalar_lea.vmem %s3, %s213
      $region44: #{densecat_cat_diff.3} parent=39 // pred_fallthru
        _
    $region40: #{densecat_cat_diff.3} parent=5 // pred_fallthru
      _
  $region6: #{densecat_cat_diff.3} parent=0 // loop_footer
    %s13 = sadd.s32 1, %s9
  $region7: #{densecat_cat_diff.3} parent=0 // loop_footer_branch
    %8 = sbr.rel target = $region3
  $region8: #{densecat_cat_diff.3} parent=0 // loop_exit
    _

// kernel: densecat_cat_diff.2
$region0: #{densecat_cat_diff.2}
  #allocation0 [shape = 'u32[]', space=smem, size = 0x4, offset = 0x4, fixed_abs, tag = 'smem constant byte address 0x4 - core index']
  #allocation1 [shape = 'u32[144,128]{1,0:T(1,128)}', space=vmem, size = 0x12000, scoped, tag = 'internal scratch']
  %s0 = inlined_call_operand.vmem [shape: f32[2,16,256], index: 0, kind: input, shape index: {}]
  %s1 = inlined_call_operand.vmem [shape: f32[2,16,256], index: 1, kind: input, shape index: {}]
  %s2 = inlined_call_operand.vmem [shape: bf16[10,512], index: 2, kind: input, shape index: {}]
  %s3 = inlined_call_operand.vmem [shape: bf16[3,16,48], index: 3, kind: input, shape index: {}]
  %s4 = inlined_call_operand.vmem [shape: f32[16,1], index: 4, kind: input, shape index: {}]
  %s5 = inlined_call_operand.vmem [shape: bf16[3,16,48], index: 5, kind: input, shape index: {}]
  %s6 = inlined_call_operand.vmem [shape: f32[16,1], index: 6, kind: input, shape index: {}]
  %s7 = inlined_call_operand.vmem [shape: bf16[3,16,48], index: 7, kind: input, shape index: {}]
  %s8 = inlined_call_operand.vmem [shape: f32[16,1], index: 8, kind: input, shape index: {}]
  %s9 = inlined_call_operand.vmem [shape: bf16[8,16], index: 9, kind: input, shape index: {}]
  %s10 = inlined_call_operand.vmem [shape: f32[8,1], index: 10, kind: input, shape index: {}]
  %s11 = inlined_call_operand.vmem [shape: bf16[2,8,256], index: 11, kind: output, shape index: {0}]
  %s12 = inlined_call_operand.vmem [shape: f32[2,8,2], index: 12, kind: output, shape index: {1}]
  %13 = xla_tuple %s11, %s12
  %s14 = sld [smem:[#allocation0]]
  $region85: #{densecat_cat_diff.2} parent=0
    _
  %s16 = ssub.s32 1, %s14
  %s17 = scalar_select 0, %s16, %s14
  loop: start=0, step=1, limit=4
  $region2: #{densecat_cat_diff.2} parent=0 // loop_pre_header
    _
  $region3: #{densecat_cat_diff.2} parent=0 // loop_header
    %s19 = sphi 0, %s23
    %p20 = scmp.ge.s32.totalorder %s19, 4
    %s29 = sphi 0, %s31
    %s32 = sphi 0, %s29
    %s33 = sphi 0, %s32
    %s49 = sphi 0, %s33
    %s55 = sphi 0, %s57
    %s58 = sphi 0, %s55
    %s59 = sphi 0, %s58
    %s75 = sphi 0, %s59
    %s79 = sphi 0, %s79
    %s81 = sphi 0, %s79
    %s82 = sphi 0, %s81
    %s96 = sphi 0, %s82
    %s100 = sphi 0, %s100
    %s102 = sphi 0, %s100
    %s103 = sphi 0, %s102
    %s117 = sphi 0, %s103
    %s121 = sphi 0, %s121
    %s123 = sphi 0, %s121
    %s124 = sphi 0, %s123
    %s138 = sphi 0, %s124
    %s142 = sphi 0, %s142
    %s144 = sphi 0, %s142
    %s145 = sphi 0, %s144
    %s159 = sphi 0, %s145
    %s163 = sphi 0, %s163
    %s165 = sphi 0, %s163
    %s166 = sphi 0, %s165
    %s180 = sphi 0, %s166
    %s184 = sphi 0, %s184
    %s186 = sphi 0, %s184
    %s187 = sphi 0, %s186
    %s201 = sphi 0, %s187
    %s205 = sphi 0, %s205
    %s207 = sphi 0, %s205
    %s208 = sphi 0, %s207
    %s222 = sphi 0, %s208
    %s226 = sphi 0, %s226
    %s228 = sphi 0, %s226
    %s229 = sphi 0, %s228
    %s243 = sphi 0, %s229
    %s247 = sphi 0, %s247
    %s249 = sphi 0, %s247
    %s250 = sphi 0, %s249
    %s264 = sphi 0, %s250
    %s270 = sphi 0, %s272
    %s273 = sphi 0, %s270
    %s274 = sphi 0, %s273
    %s290 = sphi 0, %s274
    %s296 = sphi 0, %s298
    %s299 = sphi 0, %s296
    %s300 = sphi 0, %s299
    %s316 = sphi 0, %s300
  $region4: #{densecat_cat_diff.2} parent=0 // loop_header_branch
    %22 = sbr.rel (%p20) target = $region8
  $region5: #{densecat_cat_diff.2} parent=0 // loop_body
    %s24 = ssub.s32 %s19, 1
    %s25 = ssub.s32 %s19, 2
    %s26 = sadd.s32 %s19, 1
    %s27 = ssub.s32 %s19, %s26
    %p28 = scmp.eq.s32.totalorder %s27, 0
    %s30 = sadd.s32 %s29, 1
    %s31 = scalar_select %p28, %s29, %s30
    %p34 = pneg %p28
    %p35 = scmp.eq.s32.totalorder %s19, 1
    %p36 = por %p34, %p35
    %p37 = scmp.ne.s32.totalorder %s29, %s32
    %p38 = scmp.eq.s32.totalorder %s19, 0
    %p39 = por %p37, %p38
    %p40 = scmp.ne.s32.totalorder %s29, %s32
    %p41 = scmp.eq.s32.totalorder %s24, 1
    %p42 = por %p40, %p41
    %p43 = scmp.ne.s32.totalorder %s32, %s33
    %p44 = scmp.eq.s32.totalorder %s24, 0
    %p45 = por %p43, %p44
    %p46 = scmp.ne.s32.totalorder %s32, %s33
    %p47 = scmp.eq.s32.totalorder %s25, 1
    %p48 = por %p46, %p47
    %p50 = scmp.ne.s32.totalorder %s33, %s49
    %p51 = scmp.eq.s32.totalorder %s25, 0
    %p52 = por %p50, %p51
    %s53 = ssub.s32 %s19, %s26
    %p54 = scmp.eq.s32.totalorder %s53, 0
    %s56 = sadd.s32 %s55, 1
    %s57 = scalar_select %p54, %s55, %s56
    %p60 = pneg %p54
    %p61 = scmp.eq.s32.totalorder %s19, 1
    %p62 = por %p60, %p61
    %p63 = scmp.ne.s32.totalorder %s55, %s58
    %p64 = scmp.eq.s32.totalorder %s19, 0
    %p65 = por %p63, %p64
    %p66 = scmp.ne.s32.totalorder %s55, %s58
    %p67 = scmp.eq.s32.totalorder %s24, 1
    %p68 = por %p66, %p67
    %p69 = scmp.ne.s32.totalorder %s58, %s59
    %p70 = scmp.eq.s32.totalorder %s24, 0
    %p71 = por %p69, %p70
    %p72 = scmp.ne.s32.totalorder %s58, %s59
    %p73 = scmp.eq.s32.totalorder %s25, 1
    %p74 = por %p72, %p73
    %p76 = scmp.ne.s32.totalorder %s59, %s75
    %p77 = scmp.eq.s32.totalorder %s25, 0
    %p78 = por %p76, %p77
    %s80 = sadd.s32 %s79, 1
    %p83 = scmp.eq.s32.totalorder %s19, 1
    %p84 = scmp.ne.s32.totalorder %s79, %s81
    %p85 = scmp.eq.s32.totalorder %s19, 0
    %p86 = por %p84, %p85
    %p87 = scmp.ne.s32.totalorder %s79, %s81
    %p88 = scmp.eq.s32.totalorder %s24, 1
    %p89 = por %p87, %p88
    %p90 = scmp.ne.s32.totalorder %s81, %s82
    %p91 = scmp.eq.s32.totalorder %s24, 0
    %p92 = por %p90, %p91
    %p93 = scmp.ne.s32.totalorder %s81, %s82
    %p94 = scmp.eq.s32.totalorder %s25, 1
    %p95 = por %p93, %p94
    %p97 = scmp.ne.s32.totalorder %s82, %s96
    %p98 = scmp.eq.s32.totalorder %s25, 0
    %p99 = por %p97, %p98
    %s101 = sadd.s32 %s100, 1
    %p104 = scmp.eq.s32.totalorder %s19, 1
    %p105 = scmp.ne.s32.totalorder %s100, %s102
    %p106 = scmp.eq.s32.totalorder %s19, 0
    %p107 = por %p105, %p106
    %p108 = scmp.ne.s32.totalorder %s100, %s102
    %p109 = scmp.eq.s32.totalorder %s24, 1
    %p110 = por %p108, %p109
    %p111 = scmp.ne.s32.totalorder %s102, %s103
    %p112 = scmp.eq.s32.totalorder %s24, 0
    %p113 = por %p111, %p112
    %p114 = scmp.ne.s32.totalorder %s102, %s103
    %p115 = scmp.eq.s32.totalorder %s25, 1
    %p116 = por %p114, %p115
    %p118 = scmp.ne.s32.totalorder %s103, %s117
    %p119 = scmp.eq.s32.totalorder %s25, 0
    %p120 = por %p118, %p119
    %s122 = sadd.s32 %s121, 1
    %p125 = scmp.eq.s32.totalorder %s19, 1
    %p126 = scmp.ne.s32.totalorder %s121, %s123
    %p127 = scmp.eq.s32.totalorder %s19, 0
    %p128 = por %p126, %p127
    %p129 = scmp.ne.s32.totalorder %s121, %s123
    %p130 = scmp.eq.s32.totalorder %s24, 1
    %p131 = por %p129, %p130
    %p132 = scmp.ne.s32.totalorder %s123, %s124
    %p133 = scmp.eq.s32.totalorder %s24, 0
    %p134 = por %p132, %p133
    %p135 = scmp.ne.s32.totalorder %s123, %s124
    %p136 = scmp.eq.s32.totalorder %s25, 1
    %p137 = por %p135, %p136
    %p139 = scmp.ne.s32.totalorder %s124, %s138
    %p140 = scmp.eq.s32.totalorder %s25, 0
    %p141 = por %p139, %p140
    %s143 = sadd.s32 %s142, 1
    %p146 = scmp.eq.s32.totalorder %s19, 1
    %p147 = scmp.ne.s32.totalorder %s142, %s144
    %p148 = scmp.eq.s32.totalorder %s19, 0
    %p149 = por %p147, %p148
    %p150 = scmp.ne.s32.totalorder %s142, %s144
    %p151 = scmp.eq.s32.totalorder %s24, 1
    %p152 = por %p150, %p151
    %p153 = scmp.ne.s32.totalorder %s144, %s145
    %p154 = scmp.eq.s32.totalorder %s24, 0
    %p155 = por %p153, %p154
    %p156 = scmp.ne.s32.totalorder %s144, %s145
    %p157 = scmp.eq.s32.totalorder %s25, 1
    %p158 = por %p156, %p157
    %p160 = scmp.ne.s32.totalorder %s145, %s159
    %p161 = scmp.eq.s32.totalorder %s25, 0
    %p162 = por %p160, %p161
    %s164 = sadd.s32 %s163, 1
    %p167 = scmp.eq.s32.totalorder %s19, 1
    %p168 = scmp.ne.s32.totalorder %s163, %s165
    %p169 = scmp.eq.s32.totalorder %s19, 0
    %p170 = por %p168, %p169
    %p171 = scmp.ne.s32.totalorder %s163, %s165
    %p172 = scmp.eq.s32.totalorder %s24, 1
    %p173 = por %p171, %p172
    %p174 = scmp.ne.s32.totalorder %s165, %s166
    %p175 = scmp.eq.s32.totalorder %s24, 0
    %p176 = por %p174, %p175
    %p177 = scmp.ne.s32.totalorder %s165, %s166
    %p178 = scmp.eq.s32.totalorder %s25, 1
    %p179 = por %p177, %p178
    %p181 = scmp.ne.s32.totalorder %s166, %s180
    %p182 = scmp.eq.s32.totalorder %s25, 0
    %p183 = por %p181, %p182
    %s185 = sadd.s32 %s184, 1
    %p188 = scmp.eq.s32.totalorder %s19, 1
    %p189 = scmp.ne.s32.totalorder %s184, %s186
    %p190 = scmp.eq.s32.totalorder %s19, 0
    %p191 = por %p189, %p190
    %p192 = scmp.ne.s32.totalorder %s184, %s186
    %p193 = scmp.eq.s32.totalorder %s24, 1
    %p194 = por %p192, %p193
    %p195 = scmp.ne.s32.totalorder %s186, %s187
    %p196 = scmp.eq.s32.totalorder %s24, 0
    %p197 = por %p195, %p196
    %p198 = scmp.ne.s32.totalorder %s186, %s187
    %p199 = scmp.eq.s32.totalorder %s25, 1
    %p200 = por %p198, %p199
    %p202 = scmp.ne.s32.totalorder %s187, %s201
    %p203 = scmp.eq.s32.totalorder %s25, 0
    %p204 = por %p202, %p203
    %s206 = sadd.s32 %s205, 1
    %p209 = scmp.eq.s32.totalorder %s19, 1
    %p210 = scmp.ne.s32.totalorder %s205, %s207
    %p211 = scmp.eq.s32.totalorder %s19, 0
    %p212 = por %p210, %p211
    %p213 = scmp.ne.s32.totalorder %s205, %s207
    %p214 = scmp.eq.s32.totalorder %s24, 1
    %p215 = por %p213, %p214
    %p216 = scmp.ne.s32.totalorder %s207, %s208
    %p217 = scmp.eq.s32.totalorder %s24, 0
    %p218 = por %p216, %p217
    %p219 = scmp.ne.s32.totalorder %s207, %s208
    %p220 = scmp.eq.s32.totalorder %s25, 1
    %p221 = por %p219, %p220
    %p223 = scmp.ne.s32.totalorder %s208, %s222
    %p224 = scmp.eq.s32.totalorder %s25, 0
    %p225 = por %p223, %p224
    %s227 = sadd.s32 %s226, 1
    %p230 = scmp.eq.s32.totalorder %s19, 1
    %p231 = scmp.ne.s32.totalorder %s226, %s228
    %p232 = scmp.eq.s32.totalorder %s19, 0
    %p233 = por %p231, %p232
    %p234 = scmp.ne.s32.totalorder %s226, %s228
    %p235 = scmp.eq.s32.totalorder %s24, 1
    %p236 = por %p234, %p235
    %p237 = scmp.ne.s32.totalorder %s228, %s229
    %p238 = scmp.eq.s32.totalorder %s24, 0
    %p239 = por %p237, %p238
    %p240 = scmp.ne.s32.totalorder %s228, %s229
    %p241 = scmp.eq.s32.totalorder %s25, 1
    %p242 = por %p240, %p241
    %p244 = scmp.ne.s32.totalorder %s229, %s243
    %p245 = scmp.eq.s32.totalorder %s25, 0
    %p246 = por %p244, %p245
    %s248 = sadd.s32 %s247, 1
    %p251 = scmp.eq.s32.totalorder %s19, 1
    %p252 = scmp.ne.s32.totalorder %s247, %s249
    %p253 = scmp.eq.s32.totalorder %s19, 0
    %p254 = por %p252, %p253
    %p255 = scmp.ne.s32.totalorder %s247, %s249
    %p256 = scmp.eq.s32.totalorder %s24, 1
    %p257 = por %p255, %p256
    %p258 = scmp.ne.s32.totalorder %s249, %s250
    %p259 = scmp.eq.s32.totalorder %s24, 0
    %p260 = por %p258, %p259
    %p261 = scmp.ne.s32.totalorder %s249, %s250
    %p262 = scmp.eq.s32.totalorder %s25, 1
    %p263 = por %p261, %p262
    %p265 = scmp.ne.s32.totalorder %s250, %s264
    %p266 = scmp.eq.s32.totalorder %s25, 0
    %p267 = por %p265, %p266
    %s268 = ssub.s32 %s19, %s26
    %p269 = scmp.eq.s32.totalorder %s268, 0
    %s271 = sadd.s32 %s270, 1
    %s272 = scalar_select %p269, %s270, %s271
    %p275 = pneg %p269
    %p276 = scmp.eq.s32.totalorder %s19, 1
    %p277 = por %p275, %p276
    %p278 = scmp.ne.s32.totalorder %s270, %s273
    %p279 = scmp.eq.s32.totalorder %s19, 0
    %p280 = por %p278, %p279
    %p281 = scmp.ne.s32.totalorder %s270, %s273
    %p282 = scmp.eq.s32.totalorder %s24, 1
    %p283 = por %p281, %p282
    %p284 = scmp.ne.s32.totalorder %s273, %s274
    %p285 = scmp.eq.s32.totalorder %s24, 0
    %p286 = por %p284, %p285
    %p287 = scmp.ne.s32.totalorder %s273, %s274
    %p288 = scmp.eq.s32.totalorder %s25, 1
    %p289 = por %p287, %p288
    %p291 = scmp.ne.s32.totalorder %s274, %s290
    %p292 = scmp.eq.s32.totalorder %s25, 0
    %p293 = por %p291, %p292
    %s294 = ssub.s32 %s19, %s26
    %p295 = scmp.eq.s32.totalorder %s294, 0
    %s297 = sadd.s32 %s296, 1
    %s298 = scalar_select %p295, %s296, %s297
    %p301 = pneg %p295
    %p302 = scmp.eq.s32.totalorder %s19, 1
    %p303 = por %p301, %p302
    %p304 = scmp.ne.s32.totalorder %s296, %s299
    %p305 = scmp.eq.s32.totalorder %s19, 0
    %p306 = por %p304, %p305
    %p307 = scmp.ne.s32.totalorder %s296, %s299
    %p308 = scmp.eq.s32.totalorder %s24, 1
    %p309 = por %p307, %p308
    %p310 = scmp.ne.s32.totalorder %s299, %s300
    %p311 = scmp.eq.s32.totalorder %s24, 0
    %p312 = por %p310, %p311
    %p313 = scmp.ne.s32.totalorder %s299, %s300
    %p314 = scmp.eq.s32.totalorder %s25, 1
    %p315 = por %p313, %p314
    %p317 = scmp.ne.s32.totalorder %s300, %s316
    %p318 = scmp.eq.s32.totalorder %s25, 0
    %p319 = por %p317, %p318
    %p320 = scmp.le.s32.totalorder 1, %s19
    %p321 = scmp.lt.s32.totalorder %s19, 3
    %p322 = pnand %p320, %p321
    %p323 = pneg %p322
    // Predicated region
    $region9: #{densecat_cat_diff.2} parent=5 // pred_check
      _
    $region10: #{densecat_cat_diff.2} parent=5 // pred_check_branch
      %325 = sbr.rel (%p322) target = $region12
    $region11: #{densecat_cat_diff.2} parent=5 // pred_region
      %s326 = ssub.s32 %s19, 1
      // Predicated region
      $region13: #{densecat_cat_diff.2} parent=11 // pred_check
        %p327 = pneg %p92
      $region14: #{densecat_cat_diff.2} parent=11 // pred_check_branch
        %329 = sbr.rel (%p327) target = $region16
      $region15: #{densecat_cat_diff.2} parent=11 // pred_region
        _
      $region16: #{densecat_cat_diff.2} parent=11 // pred_fallthru
        _
      // Predicated region
      $region17: #{densecat_cat_diff.2} parent=11 // pred_check
        %p330 = pneg %p113
      $region18: #{densecat_cat_diff.2} parent=11 // pred_check_branch
        %332 = sbr.rel (%p330) target = $region20
      $region19: #{densecat_cat_diff.2} parent=11 // pred_region
        _
      $region20: #{densecat_cat_diff.2} parent=11 // pred_fallthru
        _
      // Predicated region
      $region21: #{densecat_cat_diff.2} parent=11 // pred_check
        %p333 = pneg %p134
      $region22: #{densecat_cat_diff.2} parent=11 // pred_check_branch
        %335 = sbr.rel (%p333) target = $region24
      $region23: #{densecat_cat_diff.2} parent=11 // pred_region
        _
      $region24: #{densecat_cat_diff.2} parent=11 // pred_fallthru
        _
      // Predicated region
      $region25: #{densecat_cat_diff.2} parent=11 // pred_check
        %p336 = pneg %p155
      $region26: #{densecat_cat_diff.2} parent=11 // pred_check_branch
        %338 = sbr.rel (%p336) target = $region28
      $region27: #{densecat_cat_diff.2} parent=11 // pred_region
        _
      $region28: #{densecat_cat_diff.2} parent=11 // pred_fallthru
        _
      // Predicated region
      $region29: #{densecat_cat_diff.2} parent=11 // pred_check
        %p339 = pneg %p176
      $region30: #{densecat_cat_diff.2} parent=11 // pred_check_branch
        %341 = sbr.rel (%p339) target = $region32
      $region31: #{densecat_cat_diff.2} parent=11 // pred_region
        _
      $region32: #{densecat_cat_diff.2} parent=11 // pred_fallthru
        _
      // Predicated region
      $region33: #{densecat_cat_diff.2} parent=11 // pred_check
        %p342 = pneg %p197
      $region34: #{densecat_cat_diff.2} parent=11 // pred_check_branch
        %344 = sbr.rel (%p342) target = $region36
      $region35: #{densecat_cat_diff.2} parent=11 // pred_region
        _
      $region36: #{densecat_cat_diff.2} parent=11 // pred_fallthru
        _
      // Predicated region
      $region37: #{densecat_cat_diff.2} parent=11 // pred_check
        %p345 = pneg %p218
      $region38: #{densecat_cat_diff.2} parent=11 // pred_check_branch
        %347 = sbr.rel (%p345) target = $region40
      $region39: #{densecat_cat_diff.2} parent=11 // pred_region
        _
      $region40: #{densecat_cat_diff.2} parent=11 // pred_fallthru
        _
      // Predicated region
      $region41: #{densecat_cat_diff.2} parent=11 // pred_check
        %p348 = pneg %p239
      $region42: #{densecat_cat_diff.2} parent=11 // pred_check_branch
        %350 = sbr.rel (%p348) target = $region44
      $region43: #{densecat_cat_diff.2} parent=11 // pred_region
        _
      $region44: #{densecat_cat_diff.2} parent=11 // pred_fallthru
        _
      // Predicated region
      $region45: #{densecat_cat_diff.2} parent=11 // pred_check
        %p351 = pneg %p260
      $region46: #{densecat_cat_diff.2} parent=11 // pred_check_branch
        %353 = sbr.rel (%p351) target = $region48
      $region47: #{densecat_cat_diff.2} parent=11 // pred_region
        _
      $region48: #{densecat_cat_diff.2} parent=11 // pred_fallthru
        _
    $region12: #{densecat_cat_diff.2} parent=5 // pred_fallthru
      _
    %p354 = scmp.lt.s32.totalorder %s19, 2
    // Predicated region
    $region49: #{densecat_cat_diff.2} parent=5 // pred_check
      %p355 = pneg %p354
    $region50: #{densecat_cat_diff.2} parent=5 // pred_check_branch
      %357 = sbr.rel (%p355) target = $region52
    $region51: #{densecat_cat_diff.2} parent=5 // pred_region
      // Predicated region
      $region53: #{densecat_cat_diff.2} parent=51 // pred_check
        %p358 = pneg %p39
      $region54: #{densecat_cat_diff.2} parent=51 // pred_check_branch
        %360 = sbr.rel (%p358) target = $region56
      $region55: #{densecat_cat_diff.2} parent=51 // pred_region
        %p361 = scmp.lt.s32.totalorder %s19, 1
        %s362 = scalar_select %p361, %s19, 1
        %s363 = smul.addr %s362, 4
        %s364 = smul.addr %s363, 8
        %s365 = scalar_lea.vmem %s0, %s364
      $region56: #{densecat_cat_diff.2} parent=51 // pred_fallthru
        _
      // Predicated region
      $region57: #{densecat_cat_diff.2} parent=51 // pred_check
        %p366 = pneg %p65
      $region58: #{densecat_cat_diff.2} parent=51 // pred_check_branch
        %368 = sbr.rel (%p366) target = $region60
      $region59: #{densecat_cat_diff.2} parent=51 // pred_region
        %p369 = scmp.lt.s32.totalorder %s19, 1
        %s370 = scalar_select %p369, %s19, 1
        %s371 = smul.addr %s370, 4
        %s372 = smul.addr %s371, 8
        %s373 = scalar_lea.vmem %s1, %s372
      $region60: #{densecat_cat_diff.2} parent=51 // pred_fallthru
        _
    $region52: #{densecat_cat_diff.2} parent=5 // pred_fallthru
      _
    %p374 = scmp.le.s32.totalorder 1, %s19
    %p375 = scmp.lt.s32.totalorder %s19, 3
    %p376 = pnand %p374, %p375
    %p377 = pneg %p376
    // Predicated region
    $region61: #{densecat_cat_diff.2} parent=5 // pred_check
      _
    $region62: #{densecat_cat_diff.2} parent=5 // pred_check_branch
      %379 = sbr.rel (%p376) target = $region64
    $region63: #{densecat_cat_diff.2} parent=5 // pred_region
      %s380 = ssub.s32 %s19, 1
      %p381 = scmp.lt.s32.totalorder %s24, 1
      %s382 = scalar_select %p381, %s24, 1
      %s383 = smul.addr %s382, 4
      %s384 = smul.addr %s383, 8
      %s385 = scalar_lea.vmem %s0, %s384
      %p386 = pneg %p45
      %p387 = pneg %p42
      %p388 = scmp.lt.s32.totalorder %s24, 1
      %s389 = scalar_select %p388, %s24, 1
      %s390 = smul.addr %s389, 4
      %s391 = smul.addr %s390, 8
      %s392 = scalar_lea.vmem %s1, %s391
      %p393 = pneg %p71
      %p394 = pneg %p68
      %p395 = pneg %p92
      %p396 = pneg %p89
      %p397 = pneg %p113
      %p398 = pneg %p110
      %p399 = pneg %p134
      %p400 = pneg %p131
      %p401 = pneg %p155
      %p402 = pneg %p152
      %p403 = pneg %p176
      %p404 = pneg %p173
      %p405 = pneg %p197
      %p406 = pneg %p194
      %p407 = pneg %p218
      %p408 = pneg %p215
      %p409 = pneg %p239
      %p410 = pneg %p236
      %p411 = pneg %p260
      %p412 = pneg %p257
      %p413 = pneg %p286
      %p414 = pneg %p283
      %p415 = scmp.lt.s32.totalorder %s24, 1
      %s416 = scalar_select %p415, %s24, 1
      %s417 = smul.addr %s416, 2
      %s418 = smul.addr %s417, 4
      %s419 = scalar_lea.vmem %s11, %s418
      %p420 = pneg %p312
      %p421 = pneg %p309
      %p422 = scmp.lt.s32.totalorder %s24, 1
      %s423 = scalar_select %p422, %s24, 1
      %s424 = smul.addr %s423, 8
      %s425 = scalar_lea.vmem %s12, %s424
      %p426 = scmp.lt.s32.totalorder %s24, 1
      %s427 = scalar_select %p426, %s24, 1
      %s428 = smul.addr %s427, 4
      %s429 = smul.addr %s428, 8
      %s430 = scalar_lea.vmem %s0, %s429
      %p431 = scmp.lt.s32.totalorder %s24, 1
      %s432 = scalar_select %p431, %s24, 1
      %s433 = smul.addr %s432, 4
      %s434 = smul.addr %s433, 8
      %s435 = scalar_lea.vmem %s1, %s434
      %p436 = scmp.lt.s32.totalorder %s24, 1
      %s437 = scalar_select %p436, %s24, 1
      %s438 = smul.addr %s437, 2
      %s439 = smul.addr %s438, 4
      %s440 = scalar_lea.vmem %s11, %s439
      %p441 = scmp.lt.s32.totalorder %s24, 1
      %s442 = scalar_select %p441, %s24, 1
      %s443 = smul.addr %s442, 8
      %s444 = scalar_lea.vmem %s12, %s443
      %v446 = vld [vmem:[%s2] sm:$0xff]
      %v447 = vld [vmem:[%s2 + $0x8] sm:$0xff]
      %v448 = vld [vmem:[%s2 + $0x10] sm:$0x11]
      %v449 = vld [vmem:[%s2 + $0x18] sm:$0x11]
      %v450 = vld [vmem:[%s430] sm:$0xff]
      %v451 = vld [vmem:[%s430 + $0x8] sm:$0xff]
      %v452 = vld [vmem:[%s430 + $0x10] sm:$0xff]
      %v453 = vld [vmem:[%s430 + $0x18] sm:$0xff]
      %v454 = vld [vmem:[%s435] sm:$0xff]
      %v455 = vld [vmem:[%s435 + $0x8] sm:$0xff]
      %v456 = vld [vmem:[%s435 + $0x10] sm:$0xff]
      %v457 = vld [vmem:[%s435 + $0x18] sm:$0xff]
      %v458 = vld [vmem:[%s4] sm:$0xff]
      %v459 = vld [vmem:[%s4 + $0x8] sm:$0xff]
      %v460 = vpack.c.bf16 %v452, %v450
      %v461 = vpack.c.bf16 %v453, %v451
      %v462 = vpack.c.bf16 %v456, %v454
      %v463 = vpack.c.bf16 %v457, %v455
      %466 = vrot.lane.b32.xlu0 %v455, 17
      %v467 = vpop.permute.xlu0 %466
      %468 = vrot.lane.b32.xlu0 %v457, 17
      %v469 = vpop.permute.xlu0 %468
      %478 = vrot.lane.b32.xlu0 %v450, 17
      %v479 = vpop.permute.xlu0 %478
      %480 = vrot.lane.b32.xlu0 %v451, 17
      %v481 = vpop.permute.xlu0 %480
      %482 = vrot.lane.b32.xlu0 %v454, 17
      %v483 = vpop.permute.xlu0 %482
      %484 = vrot.lane.b32.xlu0 %v452, 17
      %v485 = vpop.permute.xlu0 %484
      %486 = vrot.lane.b32.xlu0 %v453, 17
      %v487 = vpop.permute.xlu0 %486
      %488 = vrot.lane.b32.xlu0 %v456, 17
      %v489 = vpop.permute.xlu0 %488
      %vm490 = vcmask 138240
      %v491 = vsel %vm490, %v479, %v481
      %v492 = vsel %vm490, %v481, %v483
      %v493 = vsel %vm490, %v483, %v467
      %v494 = vsel %vm490, %v485, %v487
      %v495 = vsel %vm490, %v487, %v489
      %v496 = vsel %vm490, %v489, %v469
      %v505 = vsel %vm490, %v467, %v479
      %v506 = vsel %vm490, %v469, %v485
      %v507 = vpack.c.bf16 %v506, %v505
      %v508 = vpack.c.bf16 %v494, %v491
      %v509 = vpack.c.bf16 %v495, %v492
      %v510 = vpack.c.bf16 %v496, %v493
      %v513 = vunpack.c.l.b16 %v446
      %v514 = vunpack.c.h.b16 %v446
      %v515 = vunpack.c.l.b16 %v447
      %v516 = vunpack.c.h.b16 %v447
      %v517 = vpack.c.b16 %v513, %v513
      %v518 = vpack.c.b16 %v514, %v514
      %v519 = vpack.c.b16 %v515, %v515
      %v520 = vpack.c.b16 %v516, %v516
      %v522 = vpack.i.b16 %v517, %v517
      %v524 = vlaneseq
      %v525 = vshrl.u32 %v524, 7
      %v526 = vsub.s32 0, %v525
      %v527 = vrot.slane %v522, %v526
      %v529 = vpack.i.b16 %v518, %v518
      %v531 = vlaneseq
      %v532 = vshrl.u32 %v531, 7
      %v533 = vsub.s32 0, %v532
      %v534 = vrot.slane %v529, %v533
      %v536 = vpack.i.b16 %v519, %v519
      %v538 = vlaneseq
      %v539 = vshrl.u32 %v538, 7
      %v540 = vsub.s32 0, %v539
      %v541 = vrot.slane %v536, %v540
      %v543 = vpack.i.b16 %v520, %v520
      %v545 = vlaneseq
      %v546 = vshrl.u32 %v545, 7
      %v547 = vsub.s32 0, %v546
      %v548 = vrot.slane %v543, %v547
      %v549 = vmul.bf16 %v507, %v527
      %v550 = vmul.bf16 %v508, %v534
      %v551 = vmul.bf16 %v509, %v541
      %v552 = vmul.bf16 %v510, %v548
      %553 = vrot.lane.b32.xlu0 %v455, 16
      %v554 = vpop.permute.xlu0 %553
      %555 = vrot.lane.b32.xlu0 %v457, 16
      %v556 = vpop.permute.xlu0 %555
      %559 = vrot.lane.b32.xlu0 %v450, 16
      %v560 = vpop.permute.xlu0 %559
      %561 = vrot.lane.b32.xlu0 %v451, 16
      %v562 = vpop.permute.xlu0 %561
      %563 = vrot.lane.b32.xlu0 %v454, 16
      %v564 = vpop.permute.xlu0 %563
      %565 = vrot.lane.b32.xlu0 %v452, 16
      %v566 = vpop.permute.xlu0 %565
      %567 = vrot.lane.b32.xlu0 %v453, 16
      %v568 = vpop.permute.xlu0 %567
      %569 = vrot.lane.b32.xlu0 %v456, 16
      %v570 = vpop.permute.xlu0 %569
      %vm571 = vcmask 130048
      %v572 = vsel %vm571, %v560, %v562
      %v573 = vsel %vm571, %v562, %v564
      %v574 = vsel %vm571, %v564, %v554
      %v575 = vsel %vm571, %v566, %v568
      %v576 = vsel %vm571, %v568, %v570
      %v577 = vsel %vm571, %v570, %v556
      %v586 = vsel %vm571, %v554, %v560
      %v587 = vsel %vm571, %v556, %v566
      %v588 = vpack.c.bf16 %v587, %v586
      %v589 = vpack.c.bf16 %v575, %v572
      %v590 = vpack.c.bf16 %v576, %v573
      %v591 = vpack.c.bf16 %v577, %v574
      %v592 = vshrl.u32 %v517, 16
      %v593 = vpack.i.b16 %v592, %v592
      %v595 = vlaneseq
      %v596 = vshrl.u32 %v595, 7
      %v597 = vsub.s32 0, %v596
      %v598 = vrot.slane %v593, %v597
      %v599 = vshrl.u32 %v518, 16
      %v600 = vpack.i.b16 %v599, %v599
      %v602 = vlaneseq
      %v603 = vshrl.u32 %v602, 7
      %v604 = vsub.s32 0, %v603
      %v605 = vrot.slane %v600, %v604
      %v606 = vshrl.u32 %v519, 16
      %v607 = vpack.i.b16 %v606, %v606
      %v609 = vlaneseq
      %v610 = vshrl.u32 %v609, 7
      %v611 = vsub.s32 0, %v610
      %v612 = vrot.slane %v607, %v611
      %v613 = vshrl.u32 %v520, 16
      %v614 = vpack.i.b16 %v613, %v613
      %v616 = vlaneseq
      %v617 = vshrl.u32 %v616, 7
      %v618 = vsub.s32 0, %v617
      %v619 = vrot.slane %v614, %v618
      %v620 = vmul.bf16 %v588, %v598
      %v621 = vmul.bf16 %v589, %v605
      %v622 = vmul.bf16 %v590, %v612
      %v623 = vmul.bf16 %v591, %v619
      %624 = vrot.lane.b32.xlu0 %v455, 15
      %v625 = vpop.permute.xlu0 %624
      %626 = vrot.lane.b32.xlu0 %v457, 15
      %v627 = vpop.permute.xlu0 %626
      %630 = vrot.lane.b32.xlu0 %v450, 15
      %v631 = vpop.permute.xlu0 %630
      %632 = vrot.lane.b32.xlu0 %v451, 15
      %v633 = vpop.permute.xlu0 %632
      %634 = vrot.lane.b32.xlu0 %v454, 15
      %v635 = vpop.permute.xlu0 %634
      %636 = vrot.lane.b32.xlu0 %v452, 15
      %v637 = vpop.permute.xlu0 %636
      %638 = vrot.lane.b32.xlu0 %v453, 15
      %v639 = vpop.permute.xlu0 %638
      %640 = vrot.lane.b32.xlu0 %v456, 15
      %v641 = vpop.permute.xlu0 %640
      %vm642 = vcmask 121856
      %v643 = vsel %vm642, %v631, %v633
      %v644 = vsel %vm642, %v633, %v635
      %v645 = vsel %vm642, %v635, %v625
      %v646 = vsel %vm642, %v637, %v639
      %v647 = vsel %vm642, %v639, %v641
      %v648 = vsel %vm642, %v641, %v627
      %v657 = vsel %vm642, %v625, %v631
      %v658 = vsel %vm642, %v627, %v637
      %v659 = vpack.c.bf16 %v658, %v657
      %v660 = vpack.c.bf16 %v646, %v643
      %v661 = vpack.c.bf16 %v647, %v644
      %v662 = vpack.c.bf16 %v648, %v645
      %v663 = vlaneseq
      %v664 = vshrl.u32 %v663, 7
      %v665 = vsub.s32 1, %v664
      %v666 = vrot.slane %v522, %v665
      %v667 = vlaneseq
      %v668 = vshrl.u32 %v667, 7
      %v669 = vsub.s32 1, %v668
      %v670 = vrot.slane %v529, %v669
      %v671 = vlaneseq
      %v672 = vshrl.u32 %v671, 7
      %v673 = vsub.s32 1, %v672
      %v674 = vrot.slane %v536, %v673
      %v675 = vlaneseq
      %v676 = vshrl.u32 %v675, 7
      %v677 = vsub.s32 1, %v676
      %v678 = vrot.slane %v543, %v677
      %v679 = vmul.bf16 %v659, %v666
      %v680 = vmul.bf16 %v660, %v670
      %v681 = vmul.bf16 %v661, %v674
      %v682 = vmul.bf16 %v662, %v678
      %v683 = vld [vmem:[%s3] sm:$0xf]
      %v684 = vld [vmem:[%s3 + $0x4] sm:$0xf]
      %685 = vrot.lane.b32.xlu0 %v455, 1
      %v686 = vpop.permute.xlu0 %685
      %687 = vrot.lane.b32.xlu0 %v457, 1
      %v688 = vpop.permute.xlu0 %687
      %691 = vrot.lane.b32.xlu0 %v450, 1
      %v692 = vpop.permute.xlu0 %691
      %693 = vrot.lane.b32.xlu0 %v451, 1
      %v694 = vpop.permute.xlu0 %693
      %695 = vrot.lane.b32.xlu0 %v454, 1
      %v696 = vpop.permute.xlu0 %695
      %697 = vrot.lane.b32.xlu0 %v452, 1
      %v698 = vpop.permute.xlu0 %697
      %699 = vrot.lane.b32.xlu0 %v453, 1
      %v700 = vpop.permute.xlu0 %699
      %701 = vrot.lane.b32.xlu0 %v456, 1
      %v702 = vpop.permute.xlu0 %701
      %vm703 = vcmask 7168
      %v704 = vsel %vm703, %v692, %v694
      %v705 = vsel %vm703, %v694, %v696
      %v706 = vsel %vm703, %v696, %v686
      %v707 = vsel %vm703, %v698, %v700
      %v708 = vsel %vm703, %v700, %v702
      %v709 = vsel %vm703, %v702, %v688
      %v718 = vsel %vm703, %v686, %v692
      %v719 = vsel %vm703, %v688, %v698
      %v720 = vpack.c.bf16 %v719, %v718
      %v721 = vpack.c.bf16 %v707, %v704
      %v722 = vpack.c.bf16 %v708, %v705
      %v723 = vpack.c.bf16 %v709, %v706
      %v724 = vlaneseq
      %v725 = vshrl.u32 %v724, 7
      %v726 = vsub.s32 1, %v725
      %v727 = vrot.slane %v593, %v726
      %v728 = vlaneseq
      %v729 = vshrl.u32 %v728, 7
      %v730 = vsub.s32 1, %v729
      %v731 = vrot.slane %v600, %v730
      %v732 = vlaneseq
      %v733 = vshrl.u32 %v732, 7
      %v734 = vsub.s32 1, %v733
      %v735 = vrot.slane %v607, %v734
      %v736 = vlaneseq
      %v737 = vshrl.u32 %v736, 7
      %v738 = vsub.s32 1, %v737
      %v739 = vrot.slane %v614, %v738
      %v740 = vmul.bf16 %v720, %v727
      %v741 = vmul.bf16 %v721, %v731
      %v742 = vmul.bf16 %v722, %v735
      %v743 = vmul.bf16 %v723, %v739
      %744 = vrot.lane.b32.xlu0 %v450, 127
      %v745 = vpop.permute.xlu0 %744
      %746 = vrot.lane.b32.xlu0 %v451, 127
      %v747 = vpop.permute.xlu0 %746
      %748 = vrot.lane.b32.xlu0 %v454, 127
      %v749 = vpop.permute.xlu0 %748
      %750 = vrot.lane.b32.xlu0 %v455, 127
      %v751 = vpop.permute.xlu0 %750
      %752 = vrot.lane.b32.xlu0 %v452, 127
      %v753 = vpop.permute.xlu0 %752
      %754 = vrot.lane.b32.xlu0 %v453, 127
      %v755 = vpop.permute.xlu0 %754
      %756 = vrot.lane.b32.xlu0 %v456, 127
      %v757 = vpop.permute.xlu0 %756
      %758 = vrot.lane.b32.xlu0 %v457, 127
      %v759 = vpop.permute.xlu0 %758
      %vm760 = vcmask 1039360
      %v761 = vsel %vm760, %v745, %v747
      %v762 = vsel %vm760, %v747, %v749
      %v763 = vsel %vm760, %v749, %v751
      %v764 = vsel %vm760, %v753, %v755
      %v765 = vsel %vm760, %v755, %v757
      %v766 = vsel %vm760, %v757, %v759
      %v777 = vsel %vm760, %v751, %v745
      %v778 = vsel %vm760, %v759, %v753
      %v779 = vpack.c.bf16 %v764, %v761
      %v780 = vpack.c.bf16 %v765, %v762
      %v781 = vpack.c.bf16 %v766, %v763
      %v782 = vpack.c.bf16 %v778, %v777
      %v783 = vlaneseq
      %v784 = vshrl.u32 %v783, 7
      %v785 = vsub.s32 2, %v784
      %v786 = vrot.slane %v593, %v785
      %v787 = vlaneseq
      %v788 = vshrl.u32 %v787, 7
      %v789 = vsub.s32 2, %v788
      %v790 = vrot.slane %v600, %v789
      %v791 = vlaneseq
      %v792 = vshrl.u32 %v791, 7
      %v793 = vsub.s32 2, %v792
      %v794 = vrot.slane %v607, %v793
      %v795 = vlaneseq
      %v796 = vshrl.u32 %v795, 7
      %v797 = vsub.s32 2, %v796
      %v798 = vrot.slane %v614, %v797
      %v799 = vmul.bf16 %v779, %v786
      %v800 = vmul.bf16 %v780, %v790
      %v801 = vmul.bf16 %v781, %v794
      %v802 = vmul.bf16 %v782, %v798
      %s803 = scalar_lea.vmem %s3, 8
      %v804 = vld [vmem:[%s803] sm:$0xf]
      %v805 = vld [vmem:[%s803 + $0x4] sm:$0xf]
      %v808 = vunpack.c.l.b16 %v804
      %v809 = vunpack.c.l.b16 %v805
      %v810 = vpack.c.b16 %v809, %v808
      %vm811 = vcmask 392192
      %v813 = vsel %vm811, %v810, 0
      %815 = vmatprep.subr.bf16.mxu0 0
      %816 = vmatpush1.bf16.msra.mxu0 0
      %817 = vmatprep.subr.bf16.mxu0 0
      %818 = vmatpush1.bf16.msra.mxu0 0
      %819 = vmatprep.subr.bf16.mxu0 0
      %820 = vmatpush1.bf16.msra.mxu0 0
      %821 = vmatprep.subr.bf16.mxu0 0
      %822 = vmatpush1.bf16.msra.mxu0 0
      %823 = vmatprep.subr.bf16.mxu0 0
      %824 = vmatpush1.bf16.msra.mxu0 0
      %825 = vmatprep.subr.bf16.mxu0 %v800
      %826 = vmatpush1.bf16.msra.mxu0 %v799
      %827 = vmatprep.subr.bf16.mxu0 %v461
      %828 = vmatpush1.bf16.msra.mxu0 %v460
      %829 = vmatprep.subr.bf16.mxu0 %v741
      %830 = vmatpush1.bf16.msra.mxu0 %v740
      %831 = vmatprep.subr.bf16.mxu0 0
      %832 = vmatpush2.bf16.msra.mxu0 0
      %833 = vmatprep.subr.bf16.mxu0 0
      %834 = vmatpush2.bf16.msra.mxu0 0
      %835 = vmatprep.subr.bf16.mxu0 0
      %836 = vmatpush2.bf16.msra.mxu0 0
      %837 = vmatprep.subr.bf16.mxu0 0
      %838 = vmatpush2.bf16.msra.mxu0 0
      %839 = vmatprep.subr.bf16.mxu0 0
      %840 = vmatpush2.bf16.msra.mxu0 0
      %841 = vmatprep.subr.bf16.mxu0 0
      %842 = vmatpush2.bf16.msra.mxu0 0
      %843 = vmatprep.subr.bf16.mxu0 0
      %844 = vmatpush2.bf16.msra.mxu0 0
      %845 = vmatprep.subr.bf16.mxu0 0
      %846 = vmatpush2.bf16.msra.mxu0 0
      %847 = vmatprep.mubr.bf16.mxu0 0
      %848 = vmatmul.mubr.bf16.gmra.mxu0 %v813
      %v849 = vpop.f32.mrf.mxu0
      %v850 = vadd.f32 0.0, %v849
      %v851 = vpop.f32.mrf.mxu0
      %v852 = vadd.f32 0.0, %v851
      %v853 = vpop.f32.mrf.mxu0
      %v854 = vadd.f32 0.0, %v853
      %v855 = vpop.f32.mrf.mxu0
      %v856 = vadd.f32 0.0, %v855
      %857 = vdwg.mxu0
      %858 = vmatprep.subr.bf16.mxu0 0
      %859 = vmatpush1.bf16.msra.mxu0 0
      %860 = vmatprep.subr.bf16.mxu0 0
      %861 = vmatpush1.bf16.msra.mxu0 0
      %862 = vmatprep.subr.bf16.mxu0 0
      %863 = vmatpush1.bf16.msra.mxu0 0
      %864 = vmatprep.subr.bf16.mxu0 0
      %865 = vmatpush1.bf16.msra.mxu0 0
      %866 = vmatprep.subr.bf16.mxu0 0
      %867 = vmatpush1.bf16.msra.mxu0 0
      %868 = vmatprep.subr.bf16.mxu0 %v802
      %869 = vmatpush1.bf16.msra.mxu0 %v801
      %870 = vmatprep.subr.bf16.mxu0 %v463
      %871 = vmatpush1.bf16.msra.mxu0 %v462
      %872 = vmatprep.subr.bf16.mxu0 %v743
      %873 = vmatpush1.bf16.msra.mxu0 %v742
      %874 = vmatprep.subr.bf16.mxu0 0
      %875 = vmatpush2.bf16.msra.mxu0 0
      %876 = vmatprep.subr.bf16.mxu0 0
      %877 = vmatpush2.bf16.msra.mxu0 0
      %878 = vmatprep.subr.bf16.mxu0 0
      %879 = vmatpush2.bf16.msra.mxu0 0
      %880 = vmatprep.subr.bf16.mxu0 0
      %881 = vmatpush2.bf16.msra.mxu0 0
      %882 = vmatprep.subr.bf16.mxu0 0
      %883 = vmatpush2.bf16.msra.mxu0 0
      %884 = vmatprep.subr.bf16.mxu0 0
      %885 = vmatpush2.bf16.msra.mxu0 0
      %886 = vmatprep.subr.bf16.mxu0 0
      %887 = vmatpush2.bf16.msra.mxu0 0
      %888 = vmatprep.subr.bf16.mxu0 0
      %889 = vmatpush2.bf16.msra.mxu0 0
      %890 = vmatprep.mubr.bf16.mxu0 0
      %891 = vmatmul.mubr.bf16.gmra.mxu0 %v813
      %v892 = vpop.f32.mrf.mxu0
      %v893 = vadd.f32 0.0, %v892
      %v894 = vpop.f32.mrf.mxu0
      %v895 = vadd.f32 0.0, %v894
      %v896 = vpop.f32.mrf.mxu0
      %v897 = vadd.f32 0.0, %v896
      %v898 = vpop.f32.mrf.mxu0
      %v899 = vadd.f32 0.0, %v898
      %900 = vdwg.mxu0
      %v903 = vunpack.c.l.b16 %v683
      %v904 = vunpack.c.l.b16 %v684
      %v905 = vpack.c.b16 %v904, %v903
      %v907 = vsel %vm811, %v905, 0
      %909 = vmatprep.subr.bf16.mxu0 0
      %910 = vmatpush1.bf16.msra.mxu0 0
      %911 = vmatprep.subr.bf16.mxu0 0
      %912 = vmatpush1.bf16.msra.mxu0 0
      %913 = vmatprep.subr.bf16.mxu0 0
      %914 = vmatpush1.bf16.msra.mxu0 0
      %915 = vmatprep.subr.bf16.mxu0 0
      %916 = vmatpush1.bf16.msra.mxu0 0
      %917 = vmatprep.subr.bf16.mxu0 0
      %918 = vmatpush1.bf16.msra.mxu0 0
      %919 = vmatprep.subr.bf16.mxu0 %v680
      %920 = vmatpush1.bf16.msra.mxu0 %v679
      %921 = vmatprep.subr.bf16.mxu0 %v621
      %922 = vmatpush1.bf16.msra.mxu0 %v620
      %923 = vmatprep.subr.bf16.mxu0 %v550
      %924 = vmatpush1.bf16.msra.mxu0 %v549
      %925 = vmatprep.subr.bf16.mxu0 0
      %926 = vmatpush2.bf16.msra.mxu0 0
      %927 = vmatprep.subr.bf16.mxu0 0
      %928 = vmatpush2.bf16.msra.mxu0 0
      %929 = vmatprep.subr.bf16.mxu0 0
      %930 = vmatpush2.bf16.msra.mxu0 0
      %931 = vmatprep.subr.bf16.mxu0 0
      %932 = vmatpush2.bf16.msra.mxu0 0
      %933 = vmatprep.subr.bf16.mxu0 0
      %934 = vmatpush2.bf16.msra.mxu0 0
      %935 = vmatprep.subr.bf16.mxu0 0
      %936 = vmatpush2.bf16.msra.mxu0 0
      %937 = vmatprep.subr.bf16.mxu0 0
      %938 = vmatpush2.bf16.msra.mxu0 0
      %939 = vmatprep.subr.bf16.mxu0 0
      %940 = vmatpush2.bf16.msra.mxu0 0
      %941 = vmatprep.mubr.bf16.mxu0 0
      %942 = vmatmul.mubr.bf16.gmra.mxu0 %v907
      %v943 = vpop.f32.mrf.mxu0
      %v944 = vadd.f32 %v850, %v943
      %v945 = vpop.f32.mrf.mxu0
      %v946 = vadd.f32 %v852, %v945
      %v947 = vpop.f32.mrf.mxu0
      %v948 = vadd.f32 %v854, %v947
      %v949 = vpop.f32.mrf.mxu0
      %v950 = vadd.f32 %v856, %v949
      %951 = vdwg.mxu0
      %952 = vmatprep.subr.bf16.mxu0 0
      %953 = vmatpush1.bf16.msra.mxu0 0
      %954 = vmatprep.subr.bf16.mxu0 0
      %955 = vmatpush1.bf16.msra.mxu0 0
      %956 = vmatprep.subr.bf16.mxu0 0
      %957 = vmatpush1.bf16.msra.mxu0 0
      %958 = vmatprep.subr.bf16.mxu0 0
      %959 = vmatpush1.bf16.msra.mxu0 0
      %960 = vmatprep.subr.bf16.mxu0 0
      %961 = vmatpush1.bf16.msra.mxu0 0
      %962 = vmatprep.subr.bf16.mxu0 %v682
      %963 = vmatpush1.bf16.msra.mxu0 %v681
      %964 = vmatprep.subr.bf16.mxu0 %v623
      %965 = vmatpush1.bf16.msra.mxu0 %v622
      %966 = vmatprep.subr.bf16.mxu0 %v552
      %967 = vmatpush1.bf16.msra.mxu0 %v551
      %968 = vmatprep.subr.bf16.mxu0 0
      %969 = vmatpush2.bf16.msra.mxu0 0
      %970 = vmatprep.subr.bf16.mxu0 0
      %971 = vmatpush2.bf16.msra.mxu0 0
      %972 = vmatprep.subr.bf16.mxu0 0
      %973 = vmatpush2.bf16.msra.mxu0 0
      %974 = vmatprep.subr.bf16.mxu0 0
      %975 = vmatpush2.bf16.msra.mxu0 0
      %976 = vmatprep.subr.bf16.mxu0 0
      %977 = vmatpush2.bf16.msra.mxu0 0
      %978 = vmatprep.subr.bf16.mxu0 0
      %979 = vmatpush2.bf16.msra.mxu0 0
      %980 = vmatprep.subr.bf16.mxu0 0
      %981 = vmatpush2.bf16.msra.mxu0 0
      %982 = vmatprep.subr.bf16.mxu0 0
      %983 = vmatpush2.bf16.msra.mxu0 0
      %984 = vmatprep.mubr.bf16.mxu0 0
      %985 = vmatmul.mubr.bf16.gmra.mxu0 %v907
      %v986 = vpop.f32.mrf.mxu0
      %v987 = vadd.f32 %v893, %v986
      %v988 = vpop.f32.mrf.mxu0
      %v989 = vadd.f32 %v895, %v988
      %v990 = vpop.f32.mrf.mxu0
      %v991 = vadd.f32 %v897, %v990
      %v992 = vpop.f32.mrf.mxu0
      %v993 = vadd.f32 %v899, %v992
      %994 = vdwg.mxu0
      %995 = vrot.lane.b32.xlu0 %v450, 113
      %v996 = vpop.permute.xlu0 %995
      %997 = vrot.lane.b32.xlu0 %v451, 113
      %v998 = vpop.permute.xlu0 %997
      %999 = vrot.lane.b32.xlu0 %v454, 113
      %v1000 = vpop.permute.xlu0 %999
      %1001 = vrot.lane.b32.xlu0 %v455, 113
      %v1002 = vpop.permute.xlu0 %1001
      %1003 = vrot.lane.b32.xlu0 %v452, 113
      %v1004 = vpop.permute.xlu0 %1003
      %1005 = vrot.lane.b32.xlu0 %v453, 113
      %v1006 = vpop.permute.xlu0 %1005
      %1007 = vrot.lane.b32.xlu0 %v456, 113
      %v1008 = vpop.permute.xlu0 %1007
      %1009 = vrot.lane.b32.xlu0 %v457, 113
      %v1010 = vpop.permute.xlu0 %1009
      %vm1011 = vcmask 924672
      %v1012 = vsel %vm1011, %v996, %v998
      %v1013 = vsel %vm1011, %v998, %v1000
      %v1014 = vsel %vm1011, %v1000, %v1002
      %v1015 = vsel %vm1011, %v1004, %v1006
      %v1016 = vsel %vm1011, %v1006, %v1008
      %v1017 = vsel %vm1011, %v1008, %v1010
      %v1028 = vsel %vm1011, %v1002, %v996
      %v1029 = vsel %vm1011, %v1010, %v1004
      %v1030 = vpack.c.bf16 %v1015, %v1012
      %v1031 = vpack.c.bf16 %v1016, %v1013
      %v1032 = vpack.c.bf16 %v1017, %v1014
      %v1033 = vpack.c.bf16 %v1029, %v1028
      %v1034 = vlaneseq
      %v1035 = vshrl.u32 %v1034, 7
      %v1036 = vsub.s32 3, %v1035
      %v1037 = vrot.slane %v522, %v1036
      %v1038 = vlaneseq
      %v1039 = vshrl.u32 %v1038, 7
      %v1040 = vsub.s32 3, %v1039
      %v1041 = vrot.slane %v529, %v1040
      %v1042 = vlaneseq
      %v1043 = vshrl.u32 %v1042, 7
      %v1044 = vsub.s32 3, %v1043
      %v1045 = vrot.slane %v536, %v1044
      %v1046 = vlaneseq
      %v1047 = vshrl.u32 %v1046, 7
      %v1048 = vsub.s32 3, %v1047
      %v1049 = vrot.slane %v543, %v1048
      %v1050 = vmul.bf16 %v1030, %v1037
      %v1051 = vmul.bf16 %v1031, %v1041
      %v1052 = vmul.bf16 %v1032, %v1045
      %v1053 = vmul.bf16 %v1033, %v1049
      %1054 = vrot.lane.b32.xlu0 %v450, 112
      %v1055 = vpop.permute.xlu0 %1054
      %1056 = vrot.lane.b32.xlu0 %v451, 112
      %v1057 = vpop.permute.xlu0 %1056
      %1058 = vrot.lane.b32.xlu0 %v454, 112
      %v1059 = vpop.permute.xlu0 %1058
      %1060 = vrot.lane.b32.xlu0 %v455, 112
      %v1061 = vpop.permute.xlu0 %1060
      %1062 = vrot.lane.b32.xlu0 %v452, 112
      %v1063 = vpop.permute.xlu0 %1062
      %1064 = vrot.lane.b32.xlu0 %v453, 112
      %v1065 = vpop.permute.xlu0 %1064
      %1066 = vrot.lane.b32.xlu0 %v456, 112
      %v1067 = vpop.permute.xlu0 %1066
      %1068 = vrot.lane.b32.xlu0 %v457, 112
      %v1069 = vpop.permute.xlu0 %1068
      %vm1070 = vcmask 916480
      %v1071 = vsel %vm1070, %v1055, %v1057
      %v1072 = vsel %vm1070, %v1057, %v1059
      %v1073 = vsel %vm1070, %v1059, %v1061
      %v1074 = vsel %vm1070, %v1063, %v1065
      %v1075 = vsel %vm1070, %v1065, %v1067
      %v1076 = vsel %vm1070, %v1067, %v1069
      %v1087 = vsel %vm1070, %v1061, %v1055
      %v1088 = vsel %vm1070, %v1069, %v1063
      %v1089 = vpack.c.bf16 %v1074, %v1071
      %v1090 = vpack.c.bf16 %v1075, %v1072
      %v1091 = vpack.c.bf16 %v1076, %v1073
      %v1092 = vpack.c.bf16 %v1088, %v1087
      %v1093 = vlaneseq
      %v1094 = vshrl.u32 %v1093, 7
      %v1095 = vsub.s32 3, %v1094
      %v1096 = vrot.slane %v593, %v1095
      %v1097 = vlaneseq
      %v1098 = vshrl.u32 %v1097, 7
      %v1099 = vsub.s32 3, %v1098
      %v1100 = vrot.slane %v600, %v1099
      %v1101 = vlaneseq
      %v1102 = vshrl.u32 %v1101, 7
      %v1103 = vsub.s32 3, %v1102
      %v1104 = vrot.slane %v607, %v1103
      %v1105 = vlaneseq
      %v1106 = vshrl.u32 %v1105, 7
      %v1107 = vsub.s32 3, %v1106
      %v1108 = vrot.slane %v614, %v1107
      %v1109 = vmul.bf16 %v1089, %v1096
      %v1110 = vmul.bf16 %v1090, %v1100
      %v1111 = vmul.bf16 %v1091, %v1104
      %v1112 = vmul.bf16 %v1092, %v1108
      %1113 = vrot.lane.b32.xlu0 %v450, 111
      %v1114 = vpop.permute.xlu0 %1113
      %1115 = vrot.lane.b32.xlu0 %v451, 111
      %v1116 = vpop.permute.xlu0 %1115
      %1117 = vrot.lane.b32.xlu0 %v454, 111
      %v1118 = vpop.permute.xlu0 %1117
      %1119 = vrot.lane.b32.xlu0 %v455, 111
      %v1120 = vpop.permute.xlu0 %1119
      %1121 = vrot.lane.b32.xlu0 %v452, 111
      %v1122 = vpop.permute.xlu0 %1121
      %1123 = vrot.lane.b32.xlu0 %v453, 111
      %v1124 = vpop.permute.xlu0 %1123
      %1125 = vrot.lane.b32.xlu0 %v456, 111
      %v1126 = vpop.permute.xlu0 %1125
      %1127 = vrot.lane.b32.xlu0 %v457, 111
      %v1128 = vpop.permute.xlu0 %1127
      %vm1129 = vcmask 908288
      %v1130 = vsel %vm1129, %v1114, %v1116
      %v1131 = vsel %vm1129, %v1116, %v1118
      %v1132 = vsel %vm1129, %v1118, %v1120
      %v1133 = vsel %vm1129, %v1122, %v1124
      %v1134 = vsel %vm1129, %v1124, %v1126
      %v1135 = vsel %vm1129, %v1126, %v1128
      %v1146 = vsel %vm1129, %v1120, %v1114
      %v1147 = vsel %vm1129, %v1128, %v1122
      %v1148 = vpack.c.bf16 %v1133, %v1130
      %v1149 = vpack.c.bf16 %v1134, %v1131
      %v1150 = vpack.c.bf16 %v1135, %v1132
      %v1151 = vpack.c.bf16 %v1147, %v1146
      %v1154 = vunpack.c.l.b16 %v448
      %v1155 = vunpack.c.h.b16 %v448
      %v1156 = vunpack.c.l.b16 %v449
      %v1157 = vunpack.c.h.b16 %v449
      %v1158 = vpack.c.b16 %v1154, %v1154
      %v1159 = vpack.c.b16 %v1155, %v1155
      %v1160 = vpack.c.b16 %v1156, %v1156
      %v1161 = vpack.c.b16 %v1157, %v1157
      %v1163 = vpack.i.b16 %v1158, %v1158
      %v1165 = vlaneseq
      %v1166 = vshrl.u32 %v1165, 7
      %v1167 = vsub.s32 0, %v1166
      %v1168 = vrot.slane %v1163, %v1167
      %v1170 = vpack.i.b16 %v1159, %v1159
      %v1172 = vlaneseq
      %v1173 = vshrl.u32 %v1172, 7
      %v1174 = vsub.s32 0, %v1173
      %v1175 = vrot.slane %v1170, %v1174
      %v1177 = vpack.i.b16 %v1160, %v1160
      %v1179 = vlaneseq
      %v1180 = vshrl.u32 %v1179, 7
      %v1181 = vsub.s32 0, %v1180
      %v1182 = vrot.slane %v1177, %v1181
      %v1184 = vpack.i.b16 %v1161, %v1161
      %v1186 = vlaneseq
      %v1187 = vshrl.u32 %v1186, 7
      %v1188 = vsub.s32 0, %v1187
      %v1189 = vrot.slane %v1184, %v1188
      %v1190 = vmul.bf16 %v1148, %v1168
      %v1191 = vmul.bf16 %v1149, %v1175
      %v1192 = vmul.bf16 %v1150, %v1182
      %v1193 = vmul.bf16 %v1151, %v1189
      %s1194 = scalar_lea.vmem %s3, 16
      %v1195 = vld [vmem:[%s1194] sm:$0xf]
      %v1196 = vld [vmem:[%s1194 + $0x4] sm:$0xf]
      %v1199 = vunpack.c.l.b16 %v1195
      %v1200 = vunpack.c.l.b16 %v1196
      %v1201 = vpack.c.b16 %v1200, %v1199
      %v1203 = vsel %vm811, %v1201, 0
      %1205 = vmatprep.subr.bf16.mxu0 0
      %1206 = vmatpush1.bf16.msra.mxu0 0
      %1207 = vmatprep.subr.bf16.mxu0 0
      %1208 = vmatpush1.bf16.msra.mxu0 0
      %1209 = vmatprep.subr.bf16.mxu0 0
      %1210 = vmatpush1.bf16.msra.mxu0 0
      %1211 = vmatprep.subr.bf16.mxu0 0
      %1212 = vmatpush1.bf16.msra.mxu0 0
      %1213 = vmatprep.subr.bf16.mxu0 0
      %1214 = vmatpush1.bf16.msra.mxu0 0
      %1215 = vmatprep.subr.bf16.mxu0 %v1191
      %1216 = vmatpush1.bf16.msra.mxu0 %v1190
      %1217 = vmatprep.subr.bf16.mxu0 %v1110
      %1218 = vmatpush1.bf16.msra.mxu0 %v1109
      %1219 = vmatprep.subr.bf16.mxu0 %v1051
      %1220 = vmatpush1.bf16.msra.mxu0 %v1050
      %1221 = vmatprep.subr.bf16.mxu0 0
      %1222 = vmatpush2.bf16.msra.mxu0 0
      %1223 = vmatprep.subr.bf16.mxu0 0
      %1224 = vmatpush2.bf16.msra.mxu0 0
      %1225 = vmatprep.subr.bf16.mxu0 0
      %1226 = vmatpush2.bf16.msra.mxu0 0
      %1227 = vmatprep.subr.bf16.mxu0 0
      %1228 = vmatpush2.bf16.msra.mxu0 0
      %1229 = vmatprep.subr.bf16.mxu0 0
      %1230 = vmatpush2.bf16.msra.mxu0 0
      %1231 = vmatprep.subr.bf16.mxu0 0
      %1232 = vmatpush2.bf16.msra.mxu0 0
      %1233 = vmatprep.subr.bf16.mxu0 0
      %1234 = vmatpush2.bf16.msra.mxu0 0
      %1235 = vmatprep.subr.bf16.mxu0 0
      %1236 = vmatpush2.bf16.msra.mxu0 0
      %1237 = vmatprep.mubr.bf16.mxu0 0
      %1238 = vmatmul.mubr.bf16.gmra.mxu0 %v1203
      %v1239 = vpop.f32.mrf.mxu0
      %v1240 = vadd.f32 0.0, %v1239
      %v1241 = vpop.f32.mrf.mxu0
      %v1242 = vadd.f32 0.0, %v1241
      %v1243 = vpop.f32.mrf.mxu0
      %v1244 = vadd.f32 0.0, %v1243
      %v1245 = vpop.f32.mrf.mxu0
      %v1246 = vadd.f32 0.0, %v1245
      %1247 = vdwg.mxu0
      %1248 = vmatprep.subr.bf16.mxu0 0
      %1249 = vmatpush1.bf16.msra.mxu0 0
      %1250 = vmatprep.subr.bf16.mxu0 0
      %1251 = vmatpush1.bf16.msra.mxu0 0
      %1252 = vmatprep.subr.bf16.mxu0 0
      %1253 = vmatpush1.bf16.msra.mxu0 0
      %1254 = vmatprep.subr.bf16.mxu0 0
      %1255 = vmatpush1.bf16.msra.mxu0 0
      %1256 = vmatprep.subr.bf16.mxu0 0
      %1257 = vmatpush1.bf16.msra.mxu0 0
      %1258 = vmatprep.subr.bf16.mxu0 %v1193
      %1259 = vmatpush1.bf16.msra.mxu0 %v1192
      %1260 = vmatprep.subr.bf16.mxu0 %v1112
      %1261 = vmatpush1.bf16.msra.mxu0 %v1111
      %1262 = vmatprep.subr.bf16.mxu0 %v1053
      %1263 = vmatpush1.bf16.msra.mxu0 %v1052
      %1264 = vmatprep.subr.bf16.mxu0 0
      %1265 = vmatpush2.bf16.msra.mxu0 0
      %1266 = vmatprep.subr.bf16.mxu0 0
      %1267 = vmatpush2.bf16.msra.mxu0 0
      %1268 = vmatprep.subr.bf16.mxu0 0
      %1269 = vmatpush2.bf16.msra.mxu0 0
      %1270 = vmatprep.subr.bf16.mxu0 0
      %1271 = vmatpush2.bf16.msra.mxu0 0
      %1272 = vmatprep.subr.bf16.mxu0 0
      %1273 = vmatpush2.bf16.msra.mxu0 0
      %1274 = vmatprep.subr.bf16.mxu0 0
      %1275 = vmatpush2.bf16.msra.mxu0 0
      %1276 = vmatprep.subr.bf16.mxu0 0
      %1277 = vmatpush2.bf16.msra.mxu0 0
      %1278 = vmatprep.subr.bf16.mxu0 0
      %1279 = vmatpush2.bf16.msra.mxu0 0
      %1280 = vmatprep.mubr.bf16.mxu0 0
      %1281 = vmatmul.mubr.bf16.gmra.mxu0 %v1203
      %v1282 = vpop.f32.mrf.mxu0
      %v1283 = vadd.f32 0.0, %v1282
      %v1284 = vpop.f32.mrf.mxu0
      %v1285 = vadd.f32 0.0, %v1284
      %v1286 = vpop.f32.mrf.mxu0
      %v1287 = vadd.f32 0.0, %v1286
      %v1288 = vpop.f32.mrf.mxu0
      %v1289 = vadd.f32 0.0, %v1288
      %1290 = vdwg.mxu0
      %v1291 = vadd.f32 %v944, %v1240
      %v1292 = vadd.f32 %v946, %v1242
      %v1293 = vadd.f32 %v987, %v1283
      %v1294 = vadd.f32 %v989, %v1285
      %v1295 = vadd.f32 %v948, %v1244
      %v1296 = vadd.f32 %v950, %v1246
      %v1297 = vadd.f32 %v991, %v1287
      %v1298 = vadd.f32 %v993, %v1289
      %1300 = vset.pattern.permute.xlu0 0
      %1301 = vperm.xlu0 %1300, %v458
      %v1302 = vpop.permute.xlu0 %1301
      %1305 = vset.pattern.permute.xlu0 0
      %1306 = vperm.xlu0 %1305, %v459
      %v1307 = vpop.permute.xlu0 %1306
      %v1309 = vadd.f32 %v1291, %v1302
      %v1310 = vadd.f32 %v1292, %v1302
      %v1311 = vadd.f32 %v1293, %v1302
      %v1312 = vadd.f32 %v1294, %v1302
      %v1313 = vadd.f32 %v1295, %v1307
      %v1314 = vadd.f32 %v1296, %v1307
      %v1315 = vadd.f32 %v1297, %v1307
      %v1316 = vadd.f32 %v1298, %v1307
      %v1317 = vmax.f32 %v1309, 0.0
      %v1318 = vmax.f32 %v1310, 0.0
      %v1319 = vmax.f32 %v1311, 0.0
      %v1320 = vmax.f32 %v1312, 0.0
      %v1321 = vmax.f32 %v1313, 0.0
      %v1322 = vmax.f32 %v1314, 0.0
      %v1323 = vmax.f32 %v1315, 0.0
      %v1324 = vmax.f32 %v1316, 0.0
      %v1325 = vld [vmem:[%s6] sm:$0xff]
      %v1326 = vld [vmem:[%s6 + $0x8] sm:$0xff]
      %v1327 = vpack.c.bf16 %v1321, %v1317
      %v1328 = vpack.c.bf16 %v1322, %v1318
      %v1329 = vpack.c.bf16 %v1323, %v1319
      %v1330 = vpack.c.bf16 %v1324, %v1320
      %1333 = vrot.lane.b32.xlu0 %v1320, 17
      %v1334 = vpop.permute.xlu0 %1333
      %1335 = vrot.lane.b32.xlu0 %v1324, 17
      %v1336 = vpop.permute.xlu0 %1335
      %1345 = vrot.lane.b32.xlu0 %v1317, 17
      %v1346 = vpop.permute.xlu0 %1345
      %1347 = vrot.lane.b32.xlu0 %v1318, 17
      %v1348 = vpop.permute.xlu0 %1347
      %1349 = vrot.lane.b32.xlu0 %v1319, 17
      %v1350 = vpop.permute.xlu0 %1349
      %1351 = vrot.lane.b32.xlu0 %v1321, 17
      %v1352 = vpop.permute.xlu0 %1351
      %1353 = vrot.lane.b32.xlu0 %v1322, 17
      %v1354 = vpop.permute.xlu0 %1353
      %1355 = vrot.lane.b32.xlu0 %v1323, 17
      %v1356 = vpop.permute.xlu0 %1355
      %v1357 = vsel %vm490, %v1346, %v1348
      %v1358 = vsel %vm490, %v1348, %v1350
      %v1359 = vsel %vm490, %v1350, %v1334
      %v1360 = vsel %vm490, %v1352, %v1354
      %v1361 = vsel %vm490, %v1354, %v1356
      %v1362 = vsel %vm490, %v1356, %v1336
      %v1371 = vsel %vm490, %v1334, %v1346
      %v1372 = vsel %vm490, %v1336, %v1352
      %v1373 = vpack.c.bf16 %v1372, %v1371
      %v1374 = vpack.c.bf16 %v1360, %v1357
      %v1375 = vpack.c.bf16 %v1361, %v1358
      %v1376 = vpack.c.bf16 %v1362, %v1359
      %v1377 = vmul.bf16 %v1373, %v527
      %v1378 = vmul.bf16 %v1374, %v534
      %v1379 = vmul.bf16 %v1375, %v541
      %v1380 = vmul.bf16 %v1376, %v548
      %1381 = vrot.lane.b32.xlu0 %v1320, 16
      %v1382 = vpop.permute.xlu0 %1381
      %1383 = vrot.lane.b32.xlu0 %v1324, 16
      %v1384 = vpop.permute.xlu0 %1383
      %1387 = vrot.lane.b32.xlu0 %v1317, 16
      %v1388 = vpop.permute.xlu0 %1387
      %1389 = vrot.lane.b32.xlu0 %v1318, 16
      %v1390 = vpop.permute.xlu0 %1389
      %1391 = vrot.lane.b32.xlu0 %v1319, 16
      %v1392 = vpop.permute.xlu0 %1391
      %1393 = vrot.lane.b32.xlu0 %v1321, 16
      %v1394 = vpop.permute.xlu0 %1393
      %1395 = vrot.lane.b32.xlu0 %v1322, 16
      %v1396 = vpop.permute.xlu0 %1395
      %1397 = vrot.lane.b32.xlu0 %v1323, 16
      %v1398 = vpop.permute.xlu0 %1397
      %v1399 = vsel %vm571, %v1388, %v1390
      %v1400 = vsel %vm571, %v1390, %v1392
      %v1401 = vsel %vm571, %v1392, %v1382
      %v1402 = vsel %vm571, %v1394, %v1396
      %v1403 = vsel %vm571, %v1396, %v1398
      %v1404 = vsel %vm571, %v1398, %v1384
      %v1413 = vsel %vm571, %v1382, %v1388
      %v1414 = vsel %vm571, %v1384, %v1394
      %v1415 = vpack.c.bf16 %v1414, %v1413
      %v1416 = vpack.c.bf16 %v1402, %v1399
      %v1417 = vpack.c.bf16 %v1403, %v1400
      %v1418 = vpack.c.bf16 %v1404, %v1401
      %v1419 = vmul.bf16 %v1415, %v598
      %v1420 = vmul.bf16 %v1416, %v605
      %v1421 = vmul.bf16 %v1417, %v612
      %v1422 = vmul.bf16 %v1418, %v619
      %1423 = vrot.lane.b32.xlu0 %v1320, 15
      %v1424 = vpop.permute.xlu0 %1423
      %1425 = vrot.lane.b32.xlu0 %v1324, 15
      %v1426 = vpop.permute.xlu0 %1425
      %1429 = vrot.lane.b32.xlu0 %v1317, 15
      %v1430 = vpop.permute.xlu0 %1429
      %1431 = vrot.lane.b32.xlu0 %v1318, 15
      %v1432 = vpop.permute.xlu0 %1431
      %1433 = vrot.lane.b32.xlu0 %v1319, 15
      %v1434 = vpop.permute.xlu0 %1433
      %1435 = vrot.lane.b32.xlu0 %v1321, 15
      %v1436 = vpop.permute.xlu0 %1435
      %1437 = vrot.lane.b32.xlu0 %v1322, 15
      %v1438 = vpop.permute.xlu0 %1437
      %1439 = vrot.lane.b32.xlu0 %v1323, 15
      %v1440 = vpop.permute.xlu0 %1439
      %v1441 = vsel %vm642, %v1430, %v1432
      %v1442 = vsel %vm642, %v1432, %v1434
      %v1443 = vsel %vm642, %v1434, %v1424
      %v1444 = vsel %vm642, %v1436, %v1438
      %v1445 = vsel %vm642, %v1438, %v1440
      %v1446 = vsel %vm642, %v1440, %v1426
      %v1455 = vsel %vm642, %v1424, %v1430
      %v1456 = vsel %vm642, %v1426, %v1436
      %v1457 = vpack.c.bf16 %v1456, %v1455
      %v1458 = vpack.c.bf16 %v1444, %v1441
      %v1459 = vpack.c.bf16 %v1445, %v1442
      %v1460 = vpack.c.bf16 %v1446, %v1443
      %v1461 = vmul.bf16 %v1457, %v666
      %v1462 = vmul.bf16 %v1458, %v670
      %v1463 = vmul.bf16 %v1459, %v674
      %v1464 = vmul.bf16 %v1460, %v678
      %v1465 = vld [vmem:[%s5] sm:$0xf]
      %v1466 = vld [vmem:[%s5 + $0x4] sm:$0xf]
      %1467 = vrot.lane.b32.xlu0 %v1320, 1
      %v1468 = vpop.permute.xlu0 %1467
      %1469 = vrot.lane.b32.xlu0 %v1324, 1
      %v1470 = vpop.permute.xlu0 %1469
      %1473 = vrot.lane.b32.xlu0 %v1317, 1
      %v1474 = vpop.permute.xlu0 %1473
      %1475 = vrot.lane.b32.xlu0 %v1318, 1
      %v1476 = vpop.permute.xlu0 %1475
      %1477 = vrot.lane.b32.xlu0 %v1319, 1
      %v1478 = vpop.permute.xlu0 %1477
      %1479 = vrot.lane.b32.xlu0 %v1321, 1
      %v1480 = vpop.permute.xlu0 %1479
      %1481 = vrot.lane.b32.xlu0 %v1322, 1
      %v1482 = vpop.permute.xlu0 %1481
      %1483 = vrot.lane.b32.xlu0 %v1323, 1
      %v1484 = vpop.permute.xlu0 %1483
      %v1485 = vsel %vm703, %v1474, %v1476
      %v1486 = vsel %vm703, %v1476, %v1478
      %v1487 = vsel %vm703, %v1478, %v1468
      %v1488 = vsel %vm703, %v1480, %v1482
      %v1489 = vsel %vm703, %v1482, %v1484
      %v1490 = vsel %vm703, %v1484, %v1470
      %v1499 = vsel %vm703, %v1468, %v1474
      %v1500 = vsel %vm703, %v1470, %v1480
      %v1501 = vpack.c.bf16 %v1500, %v1499
      %v1502 = vpack.c.bf16 %v1488, %v1485
      %v1503 = vpack.c.bf16 %v1489, %v1486
      %v1504 = vpack.c.bf16 %v1490, %v1487
      %v1505 = vmul.bf16 %v1501, %v727
      %v1506 = vmul.bf16 %v1502, %v731
      %v1507 = vmul.bf16 %v1503, %v735
      %v1508 = vmul.bf16 %v1504, %v739
      %1509 = vrot.lane.b32.xlu0 %v1317, 127
      %v1510 = vpop.permute.xlu0 %1509
      %1511 = vrot.lane.b32.xlu0 %v1318, 127
      %v1512 = vpop.permute.xlu0 %1511
      %1513 = vrot.lane.b32.xlu0 %v1319, 127
      %v1514 = vpop.permute.xlu0 %1513
      %1515 = vrot.lane.b32.xlu0 %v1320, 127
      %v1516 = vpop.permute.xlu0 %1515
      %1517 = vrot.lane.b32.xlu0 %v1321, 127
      %v1518 = vpop.permute.xlu0 %1517
      %1519 = vrot.lane.b32.xlu0 %v1322, 127
      %v1520 = vpop.permute.xlu0 %1519
      %1521 = vrot.lane.b32.xlu0 %v1323, 127
      %v1522 = vpop.permute.xlu0 %1521
      %1523 = vrot.lane.b32.xlu0 %v1324, 127
      %v1524 = vpop.permute.xlu0 %1523
      %v1525 = vsel %vm760, %v1510, %v1512
      %v1526 = vsel %vm760, %v1512, %v1514
      %v1527 = vsel %vm760, %v1514, %v1516
      %v1528 = vsel %vm760, %v1518, %v1520
      %v1529 = vsel %vm760, %v1520, %v1522
      %v1530 = vsel %vm760, %v1522, %v1524
      %v1541 = vsel %vm760, %v1516, %v1510
      %v1542 = vsel %vm760, %v1524, %v1518
      %v1543 = vpack.c.bf16 %v1528, %v1525
      %v1544 = vpack.c.bf16 %v1529, %v1526
      %v1545 = vpack.c.bf16 %v1530, %v1527
      %v1546 = vpack.c.bf16 %v1542, %v1541
      %v1547 = vmul.bf16 %v1543, %v786
      %v1548 = vmul.bf16 %v1544, %v790
      %v1549 = vmul.bf16 %v1545, %v794
      %v1550 = vmul.bf16 %v1546, %v798
      %s1551 = scalar_lea.vmem %s5, 8
      %v1552 = vld [vmem:[%s1551] sm:$0xf]
      %v1553 = vld [vmem:[%s1551 + $0x4] sm:$0xf]
      %v1556 = vunpack.c.l.b16 %v1552
      %v1557 = vunpack.c.l.b16 %v1553
      %v1558 = vpack.c.b16 %v1557, %v1556
      %v1560 = vsel %vm811, %v1558, 0
      %1562 = vmatprep.subr.bf16.mxu0 0
      %1563 = vmatpush1.bf16.msra.mxu0 0
      %1564 = vmatprep.subr.bf16.mxu0 0
      %1565 = vmatpush1.bf16.msra.mxu0 0
      %1566 = vmatprep.subr.bf16.mxu0 0
      %1567 = vmatpush1.bf16.msra.mxu0 0
      %1568 = vmatprep.subr.bf16.mxu0 0
      %1569 = vmatpush1.bf16.msra.mxu0 0
      %1570 = vmatprep.subr.bf16.mxu0 0
      %1571 = vmatpush1.bf16.msra.mxu0 0
      %1572 = vmatprep.subr.bf16.mxu0 %v1548
      %1573 = vmatpush1.bf16.msra.mxu0 %v1547
      %1574 = vmatprep.subr.bf16.mxu0 %v1328
      %1575 = vmatpush1.bf16.msra.mxu0 %v1327
      %1576 = vmatprep.subr.bf16.mxu0 %v1506
      %1577 = vmatpush1.bf16.msra.mxu0 %v1505
      %1578 = vmatprep.subr.bf16.mxu0 0
      %1579 = vmatpush2.bf16.msra.mxu0 0
      %1580 = vmatprep.subr.bf16.mxu0 0
      %1581 = vmatpush2.bf16.msra.mxu0 0
      %1582 = vmatprep.subr.bf16.mxu0 0
      %1583 = vmatpush2.bf16.msra.mxu0 0
      %1584 = vmatprep.subr.bf16.mxu0 0
      %1585 = vmatpush2.bf16.msra.mxu0 0
      %1586 = vmatprep.subr.bf16.mxu0 0
      %1587 = vmatpush2.bf16.msra.mxu0 0
      %1588 = vmatprep.subr.bf16.mxu0 0
      %1589 = vmatpush2.bf16.msra.mxu0 0
      %1590 = vmatprep.subr.bf16.mxu0 0
      %1591 = vmatpush2.bf16.msra.mxu0 0
      %1592 = vmatprep.subr.bf16.mxu0 0
      %1593 = vmatpush2.bf16.msra.mxu0 0
      %1594 = vmatprep.mubr.bf16.mxu0 0
      %1595 = vmatmul.mubr.bf16.gmra.mxu0 %v1560
      %v1596 = vpop.f32.mrf.mxu0
      %v1597 = vadd.f32 0.0, %v1596
      %v1598 = vpop.f32.mrf.mxu0
      %v1599 = vadd.f32 0.0, %v1598
      %v1600 = vpop.f32.mrf.mxu0
      %v1601 = vadd.f32 0.0, %v1600
      %v1602 = vpop.f32.mrf.mxu0
      %v1603 = vadd.f32 0.0, %v1602
      %1604 = vdwg.mxu0
      %1605 = vmatprep.subr.bf16.mxu0 0
      %1606 = vmatpush1.bf16.msra.mxu0 0
      %1607 = vmatprep.subr.bf16.mxu0 0
      %1608 = vmatpush1.bf16.msra.mxu0 0
      %1609 = vmatprep.subr.bf16.mxu0 0
      %1610 = vmatpush1.bf16.msra.mxu0 0
      %1611 = vmatprep.subr.bf16.mxu0 0
      %1612 = vmatpush1.bf16.msra.mxu0 0
      %1613 = vmatprep.subr.bf16.mxu0 0
      %1614 = vmatpush1.bf16.msra.mxu0 0
      %1615 = vmatprep.subr.bf16.mxu0 %v1550
      %1616 = vmatpush1.bf16.msra.mxu0 %v1549
      %1617 = vmatprep.subr.bf16.mxu0 %v1330
      %1618 = vmatpush1.bf16.msra.mxu0 %v1329
      %1619 = vmatprep.subr.bf16.mxu0 %v1508
      %1620 = vmatpush1.bf16.msra.mxu0 %v1507
      %1621 = vmatprep.subr.bf16.mxu0 0
      %1622 = vmatpush2.bf16.msra.mxu0 0
      %1623 = vmatprep.subr.bf16.mxu0 0
      %1624 = vmatpush2.bf16.msra.mxu0 0
      %1625 = vmatprep.subr.bf16.mxu0 0
      %1626 = vmatpush2.bf16.msra.mxu0 0
      %1627 = vmatprep.subr.bf16.mxu0 0
      %1628 = vmatpush2.bf16.msra.mxu0 0
      %1629 = vmatprep.subr.bf16.mxu0 0
      %1630 = vmatpush2.bf16.msra.mxu0 0
      %1631 = vmatprep.subr.bf16.mxu0 0
      %1632 = vmatpush2.bf16.msra.mxu0 0
      %1633 = vmatprep.subr.bf16.mxu0 0
      %1634 = vmatpush2.bf16.msra.mxu0 0
      %1635 = vmatprep.subr.bf16.mxu0 0
      %1636 = vmatpush2.bf16.msra.mxu0 0
      %1637 = vmatprep.mubr.bf16.mxu0 0
      %1638 = vmatmul.mubr.bf16.gmra.mxu0 %v1560
      %v1639 = vpop.f32.mrf.mxu0
      %v1640 = vadd.f32 0.0, %v1639
      %v1641 = vpop.f32.mrf.mxu0
      %v1642 = vadd.f32 0.0, %v1641
      %v1643 = vpop.f32.mrf.mxu0
      %v1644 = vadd.f32 0.0, %v1643
      %v1645 = vpop.f32.mrf.mxu0
      %v1646 = vadd.f32 0.0, %v1645
      %1647 = vdwg.mxu0
      %v1650 = vunpack.c.l.b16 %v1465
      %v1651 = vunpack.c.l.b16 %v1466
      %v1652 = vpack.c.b16 %v1651, %v1650
      %v1654 = vsel %vm811, %v1652, 0
      %1656 = vmatprep.subr.bf16.mxu0 0
      %1657 = vmatpush1.bf16.msra.mxu0 0
      %1658 = vmatprep.subr.bf16.mxu0 0
      %1659 = vmatpush1.bf16.msra.mxu0 0
      %1660 = vmatprep.subr.bf16.mxu0 0
      %1661 = vmatpush1.bf16.msra.mxu0 0
      %1662 = vmatprep.subr.bf16.mxu0 0
      %1663 = vmatpush1.bf16.msra.mxu0 0
      %1664 = vmatprep.subr.bf16.mxu0 0
      %1665 = vmatpush1.bf16.msra.mxu0 0
      %1666 = vmatprep.subr.bf16.mxu0 %v1462
      %1667 = vmatpush1.bf16.msra.mxu0 %v1461
      %1668 = vmatprep.subr.bf16.mxu0 %v1420
      %1669 = vmatpush1.bf16.msra.mxu0 %v1419
      %1670 = vmatprep.subr.bf16.mxu0 %v1378
      %1671 = vmatpush1.bf16.msra.mxu0 %v1377
      %1672 = vmatprep.subr.bf16.mxu0 0
      %1673 = vmatpush2.bf16.msra.mxu0 0
      %1674 = vmatprep.subr.bf16.mxu0 0
      %1675 = vmatpush2.bf16.msra.mxu0 0
      %1676 = vmatprep.subr.bf16.mxu0 0
      %1677 = vmatpush2.bf16.msra.mxu0 0
      %1678 = vmatprep.subr.bf16.mxu0 0
      %1679 = vmatpush2.bf16.msra.mxu0 0
      %1680 = vmatprep.subr.bf16.mxu0 0
      %1681 = vmatpush2.bf16.msra.mxu0 0
      %1682 = vmatprep.subr.bf16.mxu0 0
      %1683 = vmatpush2.bf16.msra.mxu0 0
      %1684 = vmatprep.subr.bf16.mxu0 0
      %1685 = vmatpush2.bf16.msra.mxu0 0
      %1686 = vmatprep.subr.bf16.mxu0 0
      %1687 = vmatpush2.bf16.msra.mxu0 0
      %1688 = vmatprep.mubr.bf16.mxu0 0
      %1689 = vmatmul.mubr.bf16.gmra.mxu0 %v1654
      %v1690 = vpop.f32.mrf.mxu0
      %v1691 = vadd.f32 %v1597, %v1690
      %v1692 = vpop.f32.mrf.mxu0
      %v1693 = vadd.f32 %v1599, %v1692
      %v1694 = vpop.f32.mrf.mxu0
      %v1695 = vadd.f32 %v1601, %v1694
      %v1696 = vpop.f32.mrf.mxu0
      %v1697 = vadd.f32 %v1603, %v1696
      %1698 = vdwg.mxu0
      %1699 = vmatprep.subr.bf16.mxu0 0
      %1700 = vmatpush1.bf16.msra.mxu0 0
      %1701 = vmatprep.subr.bf16.mxu0 0
      %1702 = vmatpush1.bf16.msra.mxu0 0
      %1703 = vmatprep.subr.bf16.mxu0 0
      %1704 = vmatpush1.bf16.msra.mxu0 0
      %1705 = vmatprep.subr.bf16.mxu0 0
      %1706 = vmatpush1.bf16.msra.mxu0 0
      %1707 = vmatprep.subr.bf16.mxu0 0
      %1708 = vmatpush1.bf16.msra.mxu0 0
      %1709 = vmatprep.subr.bf16.mxu0 %v1464
      %1710 = vmatpush1.bf16.msra.mxu0 %v1463
      %1711 = vmatprep.subr.bf16.mxu0 %v1422
      %1712 = vmatpush1.bf16.msra.mxu0 %v1421
      %1713 = vmatprep.subr.bf16.mxu0 %v1380
      %1714 = vmatpush1.bf16.msra.mxu0 %v1379
      %1715 = vmatprep.subr.bf16.mxu0 0
      %1716 = vmatpush2.bf16.msra.mxu0 0
      %1717 = vmatprep.subr.bf16.mxu0 0
      %1718 = vmatpush2.bf16.msra.mxu0 0
      %1719 = vmatprep.subr.bf16.mxu0 0
      %1720 = vmatpush2.bf16.msra.mxu0 0
      %1721 = vmatprep.subr.bf16.mxu0 0
      %1722 = vmatpush2.bf16.msra.mxu0 0
      %1723 = vmatprep.subr.bf16.mxu0 0
      %1724 = vmatpush2.bf16.msra.mxu0 0
      %1725 = vmatprep.subr.bf16.mxu0 0
      %1726 = vmatpush2.bf16.msra.mxu0 0
      %1727 = vmatprep.subr.bf16.mxu0 0
      %1728 = vmatpush2.bf16.msra.mxu0 0
      %1729 = vmatprep.subr.bf16.mxu0 0
      %1730 = vmatpush2.bf16.msra.mxu0 0
      %1731 = vmatprep.mubr.bf16.mxu0 0
      %1732 = vmatmul.mubr.bf16.gmra.mxu0 %v1654
      %v1733 = vpop.f32.mrf.mxu0
      %v1734 = vadd.f32 %v1640, %v1733
      %v1735 = vpop.f32.mrf.mxu0
      %v1736 = vadd.f32 %v1642, %v1735
      %v1737 = vpop.f32.mrf.mxu0
      %v1738 = vadd.f32 %v1644, %v1737
      %v1739 = vpop.f32.mrf.mxu0
      %v1740 = vadd.f32 %v1646, %v1739
      %1741 = vdwg.mxu0
      %1742 = vrot.lane.b32.xlu0 %v1317, 113
      %v1743 = vpop.permute.xlu0 %1742
      %1744 = vrot.lane.b32.xlu0 %v1318, 113
      %v1745 = vpop.permute.xlu0 %1744
      %1746 = vrot.lane.b32.xlu0 %v1319, 113
      %v1747 = vpop.permute.xlu0 %1746
      %1748 = vrot.lane.b32.xlu0 %v1320, 113
      %v1749 = vpop.permute.xlu0 %1748
      %1750 = vrot.lane.b32.xlu0 %v1321, 113
      %v1751 = vpop.permute.xlu0 %1750
      %1752 = vrot.lane.b32.xlu0 %v1322, 113
      %v1753 = vpop.permute.xlu0 %1752
      %1754 = vrot.lane.b32.xlu0 %v1323, 113
      %v1755 = vpop.permute.xlu0 %1754
      %1756 = vrot.lane.b32.xlu0 %v1324, 113
      %v1757 = vpop.permute.xlu0 %1756
      %v1758 = vsel %vm1011, %v1743, %v1745
      %v1759 = vsel %vm1011, %v1745, %v1747
      %v1760 = vsel %vm1011, %v1747, %v1749
      %v1761 = vsel %vm1011, %v1751, %v1753
      %v1762 = vsel %vm1011, %v1753, %v1755
      %v1763 = vsel %vm1011, %v1755, %v1757
      %v1774 = vsel %vm1011, %v1749, %v1743
      %v1775 = vsel %vm1011, %v1757, %v1751
      %v1776 = vpack.c.bf16 %v1761, %v1758
      %v1777 = vpack.c.bf16 %v1762, %v1759
      %v1778 = vpack.c.bf16 %v1763, %v1760
      %v1779 = vpack.c.bf16 %v1775, %v1774
      %v1780 = vmul.bf16 %v1776, %v1037
      %v1781 = vmul.bf16 %v1777, %v1041
      %v1782 = vmul.bf16 %v1778, %v1045
      %v1783 = vmul.bf16 %v1779, %v1049
      %1784 = vrot.lane.b32.xlu0 %v1317, 112
      %v1785 = vpop.permute.xlu0 %1784
      %1786 = vrot.lane.b32.xlu0 %v1318, 112
      %v1787 = vpop.permute.xlu0 %1786
      %1788 = vrot.lane.b32.xlu0 %v1319, 112
      %v1789 = vpop.permute.xlu0 %1788
      %1790 = vrot.lane.b32.xlu0 %v1320, 112
      %v1791 = vpop.permute.xlu0 %1790
      %1792 = vrot.lane.b32.xlu0 %v1321, 112
      %v1793 = vpop.permute.xlu0 %1792
      %1794 = vrot.lane.b32.xlu0 %v1322, 112
      %v1795 = vpop.permute.xlu0 %1794
      %1796 = vrot.lane.b32.xlu0 %v1323, 112
      %v1797 = vpop.permute.xlu0 %1796
      %1798 = vrot.lane.b32.xlu0 %v1324, 112
      %v1799 = vpop.permute.xlu0 %1798
      %v1800 = vsel %vm1070, %v1785, %v1787
      %v1801 = vsel %vm1070, %v1787, %v1789
      %v1802 = vsel %vm1070, %v1789, %v1791
      %v1803 = vsel %vm1070, %v1793, %v1795
      %v1804 = vsel %vm1070, %v1795, %v1797
      %v1805 = vsel %vm1070, %v1797, %v1799
      %v1816 = vsel %vm1070, %v1791, %v1785
      %v1817 = vsel %vm1070, %v1799, %v1793
      %v1818 = vpack.c.bf16 %v1803, %v1800
      %v1819 = vpack.c.bf16 %v1804, %v1801
      %v1820 = vpack.c.bf16 %v1805, %v1802
      %v1821 = vpack.c.bf16 %v1817, %v1816
      %v1822 = vmul.bf16 %v1818, %v1096
      %v1823 = vmul.bf16 %v1819, %v1100
      %v1824 = vmul.bf16 %v1820, %v1104
      %v1825 = vmul.bf16 %v1821, %v1108
      %1826 = vrot.lane.b32.xlu0 %v1317, 111
      %v1827 = vpop.permute.xlu0 %1826
      %1828 = vrot.lane.b32.xlu0 %v1318, 111
      %v1829 = vpop.permute.xlu0 %1828
      %1830 = vrot.lane.b32.xlu0 %v1319, 111
      %v1831 = vpop.permute.xlu0 %1830
      %1832 = vrot.lane.b32.xlu0 %v1320, 111
      %v1833 = vpop.permute.xlu0 %1832
      %1834 = vrot.lane.b32.xlu0 %v1321, 111
      %v1835 = vpop.permute.xlu0 %1834
      %1836 = vrot.lane.b32.xlu0 %v1322, 111
      %v1837 = vpop.permute.xlu0 %1836
      %1838 = vrot.lane.b32.xlu0 %v1323, 111
      %v1839 = vpop.permute.xlu0 %1838
      %1840 = vrot.lane.b32.xlu0 %v1324, 111
      %v1841 = vpop.permute.xlu0 %1840
      %v1842 = vsel %vm1129, %v1827, %v1829
      %v1843 = vsel %vm1129, %v1829, %v1831
      %v1844 = vsel %vm1129, %v1831, %v1833
      %v1845 = vsel %vm1129, %v1835, %v1837
      %v1846 = vsel %vm1129, %v1837, %v1839
      %v1847 = vsel %vm1129, %v1839, %v1841
      %v1858 = vsel %vm1129, %v1833, %v1827
      %v1859 = vsel %vm1129, %v1841, %v1835
      %v1860 = vpack.c.bf16 %v1845, %v1842
      %v1861 = vpack.c.bf16 %v1846, %v1843
      %v1862 = vpack.c.bf16 %v1847, %v1844
      %v1863 = vpack.c.bf16 %v1859, %v1858
      %v1864 = vmul.bf16 %v1860, %v1168
      %v1865 = vmul.bf16 %v1861, %v1175
      %v1866 = vmul.bf16 %v1862, %v1182
      %v1867 = vmul.bf16 %v1863, %v1189
      %s1868 = scalar_lea.vmem %s5, 16
      %v1869 = vld [vmem:[%s1868] sm:$0xf]
      %v1870 = vld [vmem:[%s1868 + $0x4] sm:$0xf]
      %v1873 = vunpack.c.l.b16 %v1869
      %v1874 = vunpack.c.l.b16 %v1870
      %v1875 = vpack.c.b16 %v1874, %v1873
      %v1877 = vsel %vm811, %v1875, 0
      %1879 = vmatprep.subr.bf16.mxu0 0
      %1880 = vmatpush1.bf16.msra.mxu0 0
      %1881 = vmatprep.subr.bf16.mxu0 0
      %1882 = vmatpush1.bf16.msra.mxu0 0
      %1883 = vmatprep.subr.bf16.mxu0 0
      %1884 = vmatpush1.bf16.msra.mxu0 0
      %1885 = vmatprep.subr.bf16.mxu0 0
      %1886 = vmatpush1.bf16.msra.mxu0 0
      %1887 = vmatprep.subr.bf16.mxu0 0
      %1888 = vmatpush1.bf16.msra.mxu0 0
      %1889 = vmatprep.subr.bf16.mxu0 %v1865
      %1890 = vmatpush1.bf16.msra.mxu0 %v1864
      %1891 = vmatprep.subr.bf16.mxu0 %v1823
      %1892 = vmatpush1.bf16.msra.mxu0 %v1822
      %1893 = vmatprep.subr.bf16.mxu0 %v1781
      %1894 = vmatpush1.bf16.msra.mxu0 %v1780
      %1895 = vmatprep.subr.bf16.mxu0 0
      %1896 = vmatpush2.bf16.msra.mxu0 0
      %1897 = vmatprep.subr.bf16.mxu0 0
      %1898 = vmatpush2.bf16.msra.mxu0 0
      %1899 = vmatprep.subr.bf16.mxu0 0
      %1900 = vmatpush2.bf16.msra.mxu0 0
      %1901 = vmatprep.subr.bf16.mxu0 0
      %1902 = vmatpush2.bf16.msra.mxu0 0
      %1903 = vmatprep.subr.bf16.mxu0 0
      %1904 = vmatpush2.bf16.msra.mxu0 0
      %1905 = vmatprep.subr.bf16.mxu0 0
      %1906 = vmatpush2.bf16.msra.mxu0 0
      %1907 = vmatprep.subr.bf16.mxu0 0
      %1908 = vmatpush2.bf16.msra.mxu0 0
      %1909 = vmatprep.subr.bf16.mxu0 0
      %1910 = vmatpush2.bf16.msra.mxu0 0
      %1911 = vmatprep.mubr.bf16.mxu0 0
      %1912 = vmatmul.mubr.bf16.gmra.mxu0 %v1877
      %v1913 = vpop.f32.mrf.mxu0
      %v1914 = vadd.f32 0.0, %v1913
      %v1915 = vpop.f32.mrf.mxu0
      %v1916 = vadd.f32 0.0, %v1915
      %v1917 = vpop.f32.mrf.mxu0
      %v1918 = vadd.f32 0.0, %v1917
      %v1919 = vpop.f32.mrf.mxu0
      %v1920 = vadd.f32 0.0, %v1919
      %1921 = vdwg.mxu0
      %1922 = vmatprep.subr.bf16.mxu0 0
      %1923 = vmatpush1.bf16.msra.mxu0 0
      %1924 = vmatprep.subr.bf16.mxu0 0
      %1925 = vmatpush1.bf16.msra.mxu0 0
      %1926 = vmatprep.subr.bf16.mxu0 0
      %1927 = vmatpush1.bf16.msra.mxu0 0
      %1928 = vmatprep.subr.bf16.mxu0 0
      %1929 = vmatpush1.bf16.msra.mxu0 0
      %1930 = vmatprep.subr.bf16.mxu0 0
      %1931 = vmatpush1.bf16.msra.mxu0 0
      %1932 = vmatprep.subr.bf16.mxu0 %v1867
      %1933 = vmatpush1.bf16.msra.mxu0 %v1866
      %1934 = vmatprep.subr.bf16.mxu0 %v1825
      %1935 = vmatpush1.bf16.msra.mxu0 %v1824
      %1936 = vmatprep.subr.bf16.mxu0 %v1783
      %1937 = vmatpush1.bf16.msra.mxu0 %v1782
      %1938 = vmatprep.subr.bf16.mxu0 0
      %1939 = vmatpush2.bf16.msra.mxu0 0
      %1940 = vmatprep.subr.bf16.mxu0 0
      %1941 = vmatpush2.bf16.msra.mxu0 0
      %1942 = vmatprep.subr.bf16.mxu0 0
      %1943 = vmatpush2.bf16.msra.mxu0 0
      %1944 = vmatprep.subr.bf16.mxu0 0
      %1945 = vmatpush2.bf16.msra.mxu0 0
      %1946 = vmatprep.subr.bf16.mxu0 0
      %1947 = vmatpush2.bf16.msra.mxu0 0
      %1948 = vmatprep.subr.bf16.mxu0 0
      %1949 = vmatpush2.bf16.msra.mxu0 0
      %1950 = vmatprep.subr.bf16.mxu0 0
      %1951 = vmatpush2.bf16.msra.mxu0 0
      %1952 = vmatprep.subr.bf16.mxu0 0
      %1953 = vmatpush2.bf16.msra.mxu0 0
      %1954 = vmatprep.mubr.bf16.mxu0 0
      %1955 = vmatmul.mubr.bf16.gmra.mxu0 %v1877
      %v1956 = vpop.f32.mrf.mxu0
      %v1957 = vadd.f32 0.0, %v1956
      %v1958 = vpop.f32.mrf.mxu0
      %v1959 = vadd.f32 0.0, %v1958
      %v1960 = vpop.f32.mrf.mxu0
      %v1961 = vadd.f32 0.0, %v1960
      %v1962 = vpop.f32.mrf.mxu0
      %v1963 = vadd.f32 0.0, %v1962
      %1964 = vdwg.mxu0
      %v1965 = vadd.f32 %v1691, %v1914
      %v1966 = vadd.f32 %v1693, %v1916
      %v1967 = vadd.f32 %v1734, %v1957
      %v1968 = vadd.f32 %v1736, %v1959
      %v1969 = vadd.f32 %v1695, %v1918
      %v1970 = vadd.f32 %v1697, %v1920
      %v1971 = vadd.f32 %v1738, %v1961
      %v1972 = vadd.f32 %v1740, %v1963
      %1974 = vset.pattern.permute.xlu0 0
      %1975 = vperm.xlu0 %1974, %v1325
      %v1976 = vpop.permute.xlu0 %1975
      %1979 = vset.pattern.permute.xlu0 0
      %1980 = vperm.xlu0 %1979, %v1326
      %v1981 = vpop.permute.xlu0 %1980
      %v1983 = vadd.f32 %v1965, %v1976
      %v1984 = vadd.f32 %v1966, %v1976
      %v1985 = vadd.f32 %v1967, %v1976
      %v1986 = vadd.f32 %v1968, %v1976
      %v1987 = vadd.f32 %v1969, %v1981
      %v1988 = vadd.f32 %v1970, %v1981
      %v1989 = vadd.f32 %v1971, %v1981
      %v1990 = vadd.f32 %v1972, %v1981
      %v1991 = vmax.f32 %v1983, 0.0
      %v1992 = vmax.f32 %v1984, 0.0
      %v1993 = vmax.f32 %v1985, 0.0
      %v1994 = vmax.f32 %v1986, 0.0
      %v1995 = vmax.f32 %v1987, 0.0
      %v1996 = vmax.f32 %v1988, 0.0
      %v1997 = vmax.f32 %v1989, 0.0
      %v1998 = vmax.f32 %v1990, 0.0
      %v1999 = vadd.f32 %v1317, %v1991
      %v2000 = vadd.f32 %v1318, %v1992
      %v2001 = vadd.f32 %v1319, %v1993
      %v2002 = vadd.f32 %v1320, %v1994
      %v2003 = vadd.f32 %v1321, %v1995
      %v2004 = vadd.f32 %v1322, %v1996
      %v2005 = vadd.f32 %v1323, %v1997
      %v2006 = vadd.f32 %v1324, %v1998
      %v2007 = vld [vmem:[%s8] sm:$0xff]
      %v2008 = vld [vmem:[%s8 + $0x8] sm:$0xff]
      %v2009 = vpack.c.bf16 %v2003, %v1999
      %v2010 = vpack.c.bf16 %v2004, %v2000
      %v2011 = vpack.c.bf16 %v2005, %v2001
      %v2012 = vpack.c.bf16 %v2006, %v2002
      %2015 = vrot.lane.b32.xlu0 %v2002, 17
      %v2016 = vpop.permute.xlu0 %2015
      %2017 = vrot.lane.b32.xlu0 %v2006, 17
      %v2018 = vpop.permute.xlu0 %2017
      %2027 = vrot.lane.b32.xlu0 %v1999, 17
      %v2028 = vpop.permute.xlu0 %2027
      %2029 = vrot.lane.b32.xlu0 %v2000, 17
      %v2030 = vpop.permute.xlu0 %2029
      %2031 = vrot.lane.b32.xlu0 %v2001, 17
      %v2032 = vpop.permute.xlu0 %2031
      %2033 = vrot.lane.b32.xlu0 %v2003, 17
      %v2034 = vpop.permute.xlu0 %2033
      %2035 = vrot.lane.b32.xlu0 %v2004, 17
      %v2036 = vpop.permute.xlu0 %2035
      %2037 = vrot.lane.b32.xlu0 %v2005, 17
      %v2038 = vpop.permute.xlu0 %2037
      %v2039 = vsel %vm490, %v2028, %v2030
      %v2040 = vsel %vm490, %v2030, %v2032
      %v2041 = vsel %vm490, %v2032, %v2016
      %v2042 = vsel %vm490, %v2034, %v2036
      %v2043 = vsel %vm490, %v2036, %v2038
      %v2044 = vsel %vm490, %v2038, %v2018
      %v2053 = vsel %vm490, %v2016, %v2028
      %v2054 = vsel %vm490, %v2018, %v2034
      %v2055 = vpack.c.bf16 %v2054, %v2053
      %v2056 = vpack.c.bf16 %v2042, %v2039
      %v2057 = vpack.c.bf16 %v2043, %v2040
      %v2058 = vpack.c.bf16 %v2044, %v2041
      %v2059 = vmul.bf16 %v2055, %v527
      %v2060 = vmul.bf16 %v2056, %v534
      %v2061 = vmul.bf16 %v2057, %v541
      %v2062 = vmul.bf16 %v2058, %v548
      %2063 = vrot.lane.b32.xlu0 %v2002, 16
      %v2064 = vpop.permute.xlu0 %2063
      %2065 = vrot.lane.b32.xlu0 %v2006, 16
      %v2066 = vpop.permute.xlu0 %2065
      %2069 = vrot.lane.b32.xlu0 %v1999, 16
      %v2070 = vpop.permute.xlu0 %2069
      %2071 = vrot.lane.b32.xlu0 %v2000, 16
      %v2072 = vpop.permute.xlu0 %2071
      %2073 = vrot.lane.b32.xlu0 %v2001, 16
      %v2074 = vpop.permute.xlu0 %2073
      %2075 = vrot.lane.b32.xlu0 %v2003, 16
      %v2076 = vpop.permute.xlu0 %2075
      %2077 = vrot.lane.b32.xlu0 %v2004, 16
      %v2078 = vpop.permute.xlu0 %2077
      %2079 = vrot.lane.b32.xlu0 %v2005, 16
      %v2080 = vpop.permute.xlu0 %2079
      %v2081 = vsel %vm571, %v2070, %v2072
      %v2082 = vsel %vm571, %v2072, %v2074
      %v2083 = vsel %vm571, %v2074, %v2064
      %v2084 = vsel %vm571, %v2076, %v2078
      %v2085 = vsel %vm571, %v2078, %v2080
      %v2086 = vsel %vm571, %v2080, %v2066
      %v2095 = vsel %vm571, %v2064, %v2070
      %v2096 = vsel %vm571, %v2066, %v2076
      %v2097 = vpack.c.bf16 %v2096, %v2095
      %v2098 = vpack.c.bf16 %v2084, %v2081
      %v2099 = vpack.c.bf16 %v2085, %v2082
      %v2100 = vpack.c.bf16 %v2086, %v2083
      %v2101 = vmul.bf16 %v2097, %v598
      %v2102 = vmul.bf16 %v2098, %v605
      %v2103 = vmul.bf16 %v2099, %v612
      %v2104 = vmul.bf16 %v2100, %v619
      %2105 = vrot.lane.b32.xlu0 %v2002, 15
      %v2106 = vpop.permute.xlu0 %2105
      %2107 = vrot.lane.b32.xlu0 %v2006, 15
      %v2108 = vpop.permute.xlu0 %2107
      %2111 = vrot.lane.b32.xlu0 %v1999, 15
      %v2112 = vpop.permute.xlu0 %2111
      %2113 = vrot.lane.b32.xlu0 %v2000, 15
      %v2114 = vpop.permute.xlu0 %2113
      %2115 = vrot.lane.b32.xlu0 %v2001, 15
      %v2116 = vpop.permute.xlu0 %2115
      %2117 = vrot.lane.b32.xlu0 %v2003, 15
      %v2118 = vpop.permute.xlu0 %2117
      %2119 = vrot.lane.b32.xlu0 %v2004, 15
      %v2120 = vpop.permute.xlu0 %2119
      %2121 = vrot.lane.b32.xlu0 %v2005, 15
      %v2122 = vpop.permute.xlu0 %2121
      %v2123 = vsel %vm642, %v2112, %v2114
      %v2124 = vsel %vm642, %v2114, %v2116
      %v2125 = vsel %vm642, %v2116, %v2106
      %v2126 = vsel %vm642, %v2118, %v2120
      %v2127 = vsel %vm642, %v2120, %v2122
      %v2128 = vsel %vm642, %v2122, %v2108
      %v2137 = vsel %vm642, %v2106, %v2112
      %v2138 = vsel %vm642, %v2108, %v2118
      %v2139 = vpack.c.bf16 %v2138, %v2137
      %v2140 = vpack.c.bf16 %v2126, %v2123
      %v2141 = vpack.c.bf16 %v2127, %v2124
      %v2142 = vpack.c.bf16 %v2128, %v2125
      %v2143 = vmul.bf16 %v2139, %v666
      %v2144 = vmul.bf16 %v2140, %v670
      %v2145 = vmul.bf16 %v2141, %v674
      %v2146 = vmul.bf16 %v2142, %v678
      %v2147 = vld [vmem:[%s7] sm:$0xf]
      %v2148 = vld [vmem:[%s7 + $0x4] sm:$0xf]
      %2149 = vrot.lane.b32.xlu0 %v2002, 1
      %v2150 = vpop.permute.xlu0 %2149
      %2151 = vrot.lane.b32.xlu0 %v2006, 1
      %v2152 = vpop.permute.xlu0 %2151
      %2155 = vrot.lane.b32.xlu0 %v1999, 1
      %v2156 = vpop.permute.xlu0 %2155
      %2157 = vrot.lane.b32.xlu0 %v2000, 1
      %v2158 = vpop.permute.xlu0 %2157
      %2159 = vrot.lane.b32.xlu0 %v2001, 1
      %v2160 = vpop.permute.xlu0 %2159
      %2161 = vrot.lane.b32.xlu0 %v2003, 1
      %v2162 = vpop.permute.xlu0 %2161
      %2163 = vrot.lane.b32.xlu0 %v2004, 1
      %v2164 = vpop.permute.xlu0 %2163
      %2165 = vrot.lane.b32.xlu0 %v2005, 1
      %v2166 = vpop.permute.xlu0 %2165
      %v2167 = vsel %vm703, %v2156, %v2158
      %v2168 = vsel %vm703, %v2158, %v2160
      %v2169 = vsel %vm703, %v2160, %v2150
      %v2170 = vsel %vm703, %v2162, %v2164
      %v2171 = vsel %vm703, %v2164, %v2166
      %v2172 = vsel %vm703, %v2166, %v2152
      %v2181 = vsel %vm703, %v2150, %v2156
      %v2182 = vsel %vm703, %v2152, %v2162
      %v2183 = vpack.c.bf16 %v2182, %v2181
      %v2184 = vpack.c.bf16 %v2170, %v2167
      %v2185 = vpack.c.bf16 %v2171, %v2168
      %v2186 = vpack.c.bf16 %v2172, %v2169
      %v2187 = vmul.bf16 %v2183, %v727
      %v2188 = vmul.bf16 %v2184, %v731
      %v2189 = vmul.bf16 %v2185, %v735
      %v2190 = vmul.bf16 %v2186, %v739
      %2191 = vrot.lane.b32.xlu0 %v1999, 127
      %v2192 = vpop.permute.xlu0 %2191
      %2193 = vrot.lane.b32.xlu0 %v2000, 127
      %v2194 = vpop.permute.xlu0 %2193
      %2195 = vrot.lane.b32.xlu0 %v2001, 127
      %v2196 = vpop.permute.xlu0 %2195
      %2197 = vrot.lane.b32.xlu0 %v2002, 127
      %v2198 = vpop.permute.xlu0 %2197
      %2199 = vrot.lane.b32.xlu0 %v2003, 127
      %v2200 = vpop.permute.xlu0 %2199
      %2201 = vrot.lane.b32.xlu0 %v2004, 127
      %v2202 = vpop.permute.xlu0 %2201
      %2203 = vrot.lane.b32.xlu0 %v2005, 127
      %v2204 = vpop.permute.xlu0 %2203
      %2205 = vrot.lane.b32.xlu0 %v2006, 127
      %v2206 = vpop.permute.xlu0 %2205
      %v2207 = vsel %vm760, %v2192, %v2194
      %v2208 = vsel %vm760, %v2194, %v2196
      %v2209 = vsel %vm760, %v2196, %v2198
      %v2210 = vsel %vm760, %v2200, %v2202
      %v2211 = vsel %vm760, %v2202, %v2204
      %v2212 = vsel %vm760, %v2204, %v2206
      %v2223 = vsel %vm760, %v2198, %v2192
      %v2224 = vsel %vm760, %v2206, %v2200
      %v2225 = vpack.c.bf16 %v2210, %v2207
      %v2226 = vpack.c.bf16 %v2211, %v2208
      %v2227 = vpack.c.bf16 %v2212, %v2209
      %v2228 = vpack.c.bf16 %v2224, %v2223
      %v2229 = vmul.bf16 %v2225, %v786
      %v2230 = vmul.bf16 %v2226, %v790
      %v2231 = vmul.bf16 %v2227, %v794
      %v2232 = vmul.bf16 %v2228, %v798
      %s2233 = scalar_lea.vmem %s7, 8
      %v2234 = vld [vmem:[%s2233] sm:$0xf]
      %v2235 = vld [vmem:[%s2233 + $0x4] sm:$0xf]
      %v2238 = vunpack.c.l.b16 %v2234
      %v2239 = vunpack.c.l.b16 %v2235
      %v2240 = vpack.c.b16 %v2239, %v2238
      %v2242 = vsel %vm811, %v2240, 0
      %2244 = vmatprep.subr.bf16.mxu0 0
      %2245 = vmatpush1.bf16.msra.mxu0 0
      %2246 = vmatprep.subr.bf16.mxu0 0
      %2247 = vmatpush1.bf16.msra.mxu0 0
      %2248 = vmatprep.subr.bf16.mxu0 0
      %2249 = vmatpush1.bf16.msra.mxu0 0
      %2250 = vmatprep.subr.bf16.mxu0 0
      %2251 = vmatpush1.bf16.msra.mxu0 0
      %2252 = vmatprep.subr.bf16.mxu0 0
      %2253 = vmatpush1.bf16.msra.mxu0 0
      %2254 = vmatprep.subr.bf16.mxu0 %v2230
      %2255 = vmatpush1.bf16.msra.mxu0 %v2229
      %2256 = vmatprep.subr.bf16.mxu0 %v2010
      %2257 = vmatpush1.bf16.msra.mxu0 %v2009
      %2258 = vmatprep.subr.bf16.mxu0 %v2188
      %2259 = vmatpush1.bf16.msra.mxu0 %v2187
      %2260 = vmatprep.subr.bf16.mxu0 0
      %2261 = vmatpush2.bf16.msra.mxu0 0
      %2262 = vmatprep.subr.bf16.mxu0 0
      %2263 = vmatpush2.bf16.msra.mxu0 0
      %2264 = vmatprep.subr.bf16.mxu0 0
      %2265 = vmatpush2.bf16.msra.mxu0 0
      %2266 = vmatprep.subr.bf16.mxu0 0
      %2267 = vmatpush2.bf16.msra.mxu0 0
      %2268 = vmatprep.subr.bf16.mxu0 0
      %2269 = vmatpush2.bf16.msra.mxu0 0
      %2270 = vmatprep.subr.bf16.mxu0 0
      %2271 = vmatpush2.bf16.msra.mxu0 0
      %2272 = vmatprep.subr.bf16.mxu0 0
      %2273 = vmatpush2.bf16.msra.mxu0 0
      %2274 = vmatprep.subr.bf16.mxu0 0
      %2275 = vmatpush2.bf16.msra.mxu0 0
      %2276 = vmatprep.mubr.bf16.mxu0 0
      %2277 = vmatmul.mubr.bf16.gmra.mxu0 %v2242
      %v2278 = vpop.f32.mrf.mxu0
      %v2279 = vadd.f32 0.0, %v2278
      %v2280 = vpop.f32.mrf.mxu0
      %v2281 = vadd.f32 0.0, %v2280
      %v2282 = vpop.f32.mrf.mxu0
      %v2283 = vadd.f32 0.0, %v2282
      %v2284 = vpop.f32.mrf.mxu0
      %v2285 = vadd.f32 0.0, %v2284
      %2286 = vdwg.mxu0
      %2287 = vmatprep.subr.bf16.mxu0 0
      %2288 = vmatpush1.bf16.msra.mxu0 0
      %2289 = vmatprep.subr.bf16.mxu0 0
      %2290 = vmatpush1.bf16.msra.mxu0 0
      %2291 = vmatprep.subr.bf16.mxu0 0
      %2292 = vmatpush1.bf16.msra.mxu0 0
      %2293 = vmatprep.subr.bf16.mxu0 0
      %2294 = vmatpush1.bf16.msra.mxu0 0
      %2295 = vmatprep.subr.bf16.mxu0 0
      %2296 = vmatpush1.bf16.msra.mxu0 0
      %2297 = vmatprep.subr.bf16.mxu0 %v2232
      %2298 = vmatpush1.bf16.msra.mxu0 %v2231
      %2299 = vmatprep.subr.bf16.mxu0 %v2012
      %2300 = vmatpush1.bf16.msra.mxu0 %v2011
      %2301 = vmatprep.subr.bf16.mxu0 %v2190
      %2302 = vmatpush1.bf16.msra.mxu0 %v2189
      %2303 = vmatprep.subr.bf16.mxu0 0
      %2304 = vmatpush2.bf16.msra.mxu0 0
      %2305 = vmatprep.subr.bf16.mxu0 0
      %2306 = vmatpush2.bf16.msra.mxu0 0
      %2307 = vmatprep.subr.bf16.mxu0 0
      %2308 = vmatpush2.bf16.msra.mxu0 0
      %2309 = vmatprep.subr.bf16.mxu0 0
      %2310 = vmatpush2.bf16.msra.mxu0 0
      %2311 = vmatprep.subr.bf16.mxu0 0
      %2312 = vmatpush2.bf16.msra.mxu0 0
      %2313 = vmatprep.subr.bf16.mxu0 0
      %2314 = vmatpush2.bf16.msra.mxu0 0
      %2315 = vmatprep.subr.bf16.mxu0 0
      %2316 = vmatpush2.bf16.msra.mxu0 0
      %2317 = vmatprep.subr.bf16.mxu0 0
      %2318 = vmatpush2.bf16.msra.mxu0 0
      %2319 = vmatprep.mubr.bf16.mxu0 0
      %2320 = vmatmul.mubr.bf16.gmra.mxu0 %v2242
      %v2321 = vpop.f32.mrf.mxu0
      %v2322 = vadd.f32 0.0, %v2321
      %v2323 = vpop.f32.mrf.mxu0
      %v2324 = vadd.f32 0.0, %v2323
      %v2325 = vpop.f32.mrf.mxu0
      %v2326 = vadd.f32 0.0, %v2325
      %v2327 = vpop.f32.mrf.mxu0
      %v2328 = vadd.f32 0.0, %v2327
      %2329 = vdwg.mxu0
      %v2332 = vunpack.c.l.b16 %v2147
      %v2333 = vunpack.c.l.b16 %v2148
      %v2334 = vpack.c.b16 %v2333, %v2332
      %v2336 = vsel %vm811, %v2334, 0
      %2338 = vmatprep.subr.bf16.mxu0 0
      %2339 = vmatpush1.bf16.msra.mxu0 0
      %2340 = vmatprep.subr.bf16.mxu0 0
      %2341 = vmatpush1.bf16.msra.mxu0 0
      %2342 = vmatprep.subr.bf16.mxu0 0
      %2343 = vmatpush1.bf16.msra.mxu0 0
      %2344 = vmatprep.subr.bf16.mxu0 0
      %2345 = vmatpush1.bf16.msra.mxu0 0
      %2346 = vmatprep.subr.bf16.mxu0 0
      %2347 = vmatpush1.bf16.msra.mxu0 0
      %2348 = vmatprep.subr.bf16.mxu0 %v2144
      %2349 = vmatpush1.bf16.msra.mxu0 %v2143
      %2350 = vmatprep.subr.bf16.mxu0 %v2102
      %2351 = vmatpush1.bf16.msra.mxu0 %v2101
      %2352 = vmatprep.subr.bf16.mxu0 %v2060
      %2353 = vmatpush1.bf16.msra.mxu0 %v2059
      %2354 = vmatprep.subr.bf16.mxu0 0
      %2355 = vmatpush2.bf16.msra.mxu0 0
      %2356 = vmatprep.subr.bf16.mxu0 0
      %2357 = vmatpush2.bf16.msra.mxu0 0
      %2358 = vmatprep.subr.bf16.mxu0 0
      %2359 = vmatpush2.bf16.msra.mxu0 0
      %2360 = vmatprep.subr.bf16.mxu0 0
      %2361 = vmatpush2.bf16.msra.mxu0 0
      %2362 = vmatprep.subr.bf16.mxu0 0
      %2363 = vmatpush2.bf16.msra.mxu0 0
      %2364 = vmatprep.subr.bf16.mxu0 0
      %2365 = vmatpush2.bf16.msra.mxu0 0
      %2366 = vmatprep.subr.bf16.mxu0 0
      %2367 = vmatpush2.bf16.msra.mxu0 0
      %2368 = vmatprep.subr.bf16.mxu0 0
      %2369 = vmatpush2.bf16.msra.mxu0 0
      %2370 = vmatprep.mubr.bf16.mxu0 0
      %2371 = vmatmul.mubr.bf16.gmra.mxu0 %v2336
      %v2372 = vpop.f32.mrf.mxu0
      %v2373 = vadd.f32 %v2279, %v2372
      %v2374 = vpop.f32.mrf.mxu0
      %v2375 = vadd.f32 %v2281, %v2374
      %v2376 = vpop.f32.mrf.mxu0
      %v2377 = vadd.f32 %v2283, %v2376
      %v2378 = vpop.f32.mrf.mxu0
      %v2379 = vadd.f32 %v2285, %v2378
      %2380 = vdwg.mxu0
      %2381 = vmatprep.subr.bf16.mxu0 0
      %2382 = vmatpush1.bf16.msra.mxu0 0
      %2383 = vmatprep.subr.bf16.mxu0 0
      %2384 = vmatpush1.bf16.msra.mxu0 0
      %2385 = vmatprep.subr.bf16.mxu0 0
      %2386 = vmatpush1.bf16.msra.mxu0 0
      %2387 = vmatprep.subr.bf16.mxu0 0
      %2388 = vmatpush1.bf16.msra.mxu0 0
      %2389 = vmatprep.subr.bf16.mxu0 0
      %2390 = vmatpush1.bf16.msra.mxu0 0
      %2391 = vmatprep.subr.bf16.mxu0 %v2146
      %2392 = vmatpush1.bf16.msra.mxu0 %v2145
      %2393 = vmatprep.subr.bf16.mxu0 %v2104
      %2394 = vmatpush1.bf16.msra.mxu0 %v2103
      %2395 = vmatprep.subr.bf16.mxu0 %v2062
      %2396 = vmatpush1.bf16.msra.mxu0 %v2061
      %2397 = vmatprep.subr.bf16.mxu0 0
      %2398 = vmatpush2.bf16.msra.mxu0 0
      %2399 = vmatprep.subr.bf16.mxu0 0
      %2400 = vmatpush2.bf16.msra.mxu0 0
      %2401 = vmatprep.subr.bf16.mxu0 0
      %2402 = vmatpush2.bf16.msra.mxu0 0
      %2403 = vmatprep.subr.bf16.mxu0 0
      %2404 = vmatpush2.bf16.msra.mxu0 0
      %2405 = vmatprep.subr.bf16.mxu0 0
      %2406 = vmatpush2.bf16.msra.mxu0 0
      %2407 = vmatprep.subr.bf16.mxu0 0
      %2408 = vmatpush2.bf16.msra.mxu0 0
      %2409 = vmatprep.subr.bf16.mxu0 0
      %2410 = vmatpush2.bf16.msra.mxu0 0
      %2411 = vmatprep.subr.bf16.mxu0 0
      %2412 = vmatpush2.bf16.msra.mxu0 0
      %2413 = vmatprep.mubr.bf16.mxu0 0
      %2414 = vmatmul.mubr.bf16.gmra.mxu0 %v2336
      %v2415 = vpop.f32.mrf.mxu0
      %v2416 = vadd.f32 %v2322, %v2415
      %v2417 = vpop.f32.mrf.mxu0
      %v2418 = vadd.f32 %v2324, %v2417
      %v2419 = vpop.f32.mrf.mxu0
      %v2420 = vadd.f32 %v2326, %v2419
      %v2421 = vpop.f32.mrf.mxu0
      %v2422 = vadd.f32 %v2328, %v2421
      %2423 = vdwg.mxu0
      %2424 = vrot.lane.b32.xlu0 %v1999, 113
      %v2425 = vpop.permute.xlu0 %2424
      %2426 = vrot.lane.b32.xlu0 %v2000, 113
      %v2427 = vpop.permute.xlu0 %2426
      %2428 = vrot.lane.b32.xlu0 %v2001, 113
      %v2429 = vpop.permute.xlu0 %2428
      %2430 = vrot.lane.b32.xlu0 %v2002, 113
      %v2431 = vpop.permute.xlu0 %2430
      %2432 = vrot.lane.b32.xlu0 %v2003, 113
      %v2433 = vpop.permute.xlu0 %2432
      %2434 = vrot.lane.b32.xlu0 %v2004, 113
      %v2435 = vpop.permute.xlu0 %2434
      %2436 = vrot.lane.b32.xlu0 %v2005, 113
      %v2437 = vpop.permute.xlu0 %2436
      %2438 = vrot.lane.b32.xlu0 %v2006, 113
      %v2439 = vpop.permute.xlu0 %2438
      %v2440 = vsel %vm1011, %v2425, %v2427
      %v2441 = vsel %vm1011, %v2427, %v2429
      %v2442 = vsel %vm1011, %v2429, %v2431
      %v2443 = vsel %vm1011, %v2433, %v2435
      %v2444 = vsel %vm1011, %v2435, %v2437
      %v2445 = vsel %vm1011, %v2437, %v2439
      %v2456 = vsel %vm1011, %v2431, %v2425
      %v2457 = vsel %vm1011, %v2439, %v2433
      %v2458 = vpack.c.bf16 %v2443, %v2440
      %v2459 = vpack.c.bf16 %v2444, %v2441
      %v2460 = vpack.c.bf16 %v2445, %v2442
      %v2461 = vpack.c.bf16 %v2457, %v2456
      %v2462 = vmul.bf16 %v2458, %v1037
      %v2463 = vmul.bf16 %v2459, %v1041
      %v2464 = vmul.bf16 %v2460, %v1045
      %v2465 = vmul.bf16 %v2461, %v1049
      %2466 = vrot.lane.b32.xlu0 %v1999, 112
      %v2467 = vpop.permute.xlu0 %2466
      %2468 = vrot.lane.b32.xlu0 %v2000, 112
      %v2469 = vpop.permute.xlu0 %2468
      %2470 = vrot.lane.b32.xlu0 %v2001, 112
      %v2471 = vpop.permute.xlu0 %2470
      %2472 = vrot.lane.b32.xlu0 %v2002, 112
      %v2473 = vpop.permute.xlu0 %2472
      %2474 = vrot.lane.b32.xlu0 %v2003, 112
      %v2475 = vpop.permute.xlu0 %2474
      %2476 = vrot.lane.b32.xlu0 %v2004, 112
      %v2477 = vpop.permute.xlu0 %2476
      %2478 = vrot.lane.b32.xlu0 %v2005, 112
      %v2479 = vpop.permute.xlu0 %2478
      %2480 = vrot.lane.b32.xlu0 %v2006, 112
      %v2481 = vpop.permute.xlu0 %2480
      %v2482 = vsel %vm1070, %v2467, %v2469
      %v2483 = vsel %vm1070, %v2469, %v2471
      %v2484 = vsel %vm1070, %v2471, %v2473
      %v2485 = vsel %vm1070, %v2475, %v2477
      %v2486 = vsel %vm1070, %v2477, %v2479
      %v2487 = vsel %vm1070, %v2479, %v2481
      %v2498 = vsel %vm1070, %v2473, %v2467
      %v2499 = vsel %vm1070, %v2481, %v2475
      %v2500 = vpack.c.bf16 %v2485, %v2482
      %v2501 = vpack.c.bf16 %v2486, %v2483
      %v2502 = vpack.c.bf16 %v2487, %v2484
      %v2503 = vpack.c.bf16 %v2499, %v2498
      %v2504 = vmul.bf16 %v2500, %v1096
      %v2505 = vmul.bf16 %v2501, %v1100
      %v2506 = vmul.bf16 %v2502, %v1104
      %v2507 = vmul.bf16 %v2503, %v1108
      %2508 = vrot.lane.b32.xlu0 %v1999, 111
      %v2509 = vpop.permute.xlu0 %2508
      %2510 = vrot.lane.b32.xlu0 %v2000, 111
      %v2511 = vpop.permute.xlu0 %2510
      %2512 = vrot.lane.b32.xlu0 %v2001, 111
      %v2513 = vpop.permute.xlu0 %2512
      %2514 = vrot.lane.b32.xlu0 %v2002, 111
      %v2515 = vpop.permute.xlu0 %2514
      %2516 = vrot.lane.b32.xlu0 %v2003, 111
      %v2517 = vpop.permute.xlu0 %2516
      %2518 = vrot.lane.b32.xlu0 %v2004, 111
      %v2519 = vpop.permute.xlu0 %2518
      %2520 = vrot.lane.b32.xlu0 %v2005, 111
      %v2521 = vpop.permute.xlu0 %2520
      %2522 = vrot.lane.b32.xlu0 %v2006, 111
      %v2523 = vpop.permute.xlu0 %2522
      %v2524 = vsel %vm1129, %v2509, %v2511
      %v2525 = vsel %vm1129, %v2511, %v2513
      %v2526 = vsel %vm1129, %v2513, %v2515
      %v2527 = vsel %vm1129, %v2517, %v2519
      %v2528 = vsel %vm1129, %v2519, %v2521
      %v2529 = vsel %vm1129, %v2521, %v2523
      %v2540 = vsel %vm1129, %v2515, %v2509
      %v2541 = vsel %vm1129, %v2523, %v2517
      %v2542 = vpack.c.bf16 %v2527, %v2524
      %v2543 = vpack.c.bf16 %v2528, %v2525
      %v2544 = vpack.c.bf16 %v2529, %v2526
      %v2545 = vpack.c.bf16 %v2541, %v2540
      %v2546 = vmul.bf16 %v2542, %v1168
      %v2547 = vmul.bf16 %v2543, %v1175
      %v2548 = vmul.bf16 %v2544, %v1182
      %v2549 = vmul.bf16 %v2545, %v1189
      %s2550 = scalar_lea.vmem %s7, 16
      %v2551 = vld [vmem:[%s2550] sm:$0xf]
      %v2552 = vld [vmem:[%s2550 + $0x4] sm:$0xf]
      %v2555 = vunpack.c.l.b16 %v2551
      %v2556 = vunpack.c.l.b16 %v2552
      %v2557 = vpack.c.b16 %v2556, %v2555
      %v2559 = vsel %vm811, %v2557, 0
      %2561 = vmatprep.subr.bf16.mxu0 0
      %2562 = vmatpush1.bf16.msra.mxu0 0
      %2563 = vmatprep.subr.bf16.mxu0 0
      %2564 = vmatpush1.bf16.msra.mxu0 0
      %2565 = vmatprep.subr.bf16.mxu0 0
      %2566 = vmatpush1.bf16.msra.mxu0 0
      %2567 = vmatprep.subr.bf16.mxu0 0
      %2568 = vmatpush1.bf16.msra.mxu0 0
      %2569 = vmatprep.subr.bf16.mxu0 0
      %2570 = vmatpush1.bf16.msra.mxu0 0
      %2571 = vmatprep.subr.bf16.mxu0 %v2547
      %2572 = vmatpush1.bf16.msra.mxu0 %v2546
      %2573 = vmatprep.subr.bf16.mxu0 %v2505
      %2574 = vmatpush1.bf16.msra.mxu0 %v2504
      %2575 = vmatprep.subr.bf16.mxu0 %v2463
      %2576 = vmatpush1.bf16.msra.mxu0 %v2462
      %2577 = vmatprep.subr.bf16.mxu0 0
      %2578 = vmatpush2.bf16.msra.mxu0 0
      %2579 = vmatprep.subr.bf16.mxu0 0
      %2580 = vmatpush2.bf16.msra.mxu0 0
      %2581 = vmatprep.subr.bf16.mxu0 0
      %2582 = vmatpush2.bf16.msra.mxu0 0
      %2583 = vmatprep.subr.bf16.mxu0 0
      %2584 = vmatpush2.bf16.msra.mxu0 0
      %2585 = vmatprep.subr.bf16.mxu0 0
      %2586 = vmatpush2.bf16.msra.mxu0 0
      %2587 = vmatprep.subr.bf16.mxu0 0
      %2588 = vmatpush2.bf16.msra.mxu0 0
      %2589 = vmatprep.subr.bf16.mxu0 0
      %2590 = vmatpush2.bf16.msra.mxu0 0
      %2591 = vmatprep.subr.bf16.mxu0 0
      %2592 = vmatpush2.bf16.msra.mxu0 0
      %2593 = vmatprep.mubr.bf16.mxu0 0
      %2594 = vmatmul.mubr.bf16.gmra.mxu0 %v2559
      %v2595 = vpop.f32.mrf.mxu0
      %v2596 = vadd.f32 0.0, %v2595
      %v2597 = vpop.f32.mrf.mxu0
      %v2598 = vadd.f32 0.0, %v2597
      %v2599 = vpop.f32.mrf.mxu0
      %v2600 = vadd.f32 0.0, %v2599
      %v2601 = vpop.f32.mrf.mxu0
      %v2602 = vadd.f32 0.0, %v2601
      %2603 = vdwg.mxu0
      %2604 = vmatprep.subr.bf16.mxu0 0
      %2605 = vmatpush1.bf16.msra.mxu0 0
      %2606 = vmatprep.subr.bf16.mxu0 0
      %2607 = vmatpush1.bf16.msra.mxu0 0
      %2608 = vmatprep.subr.bf16.mxu0 0
      %2609 = vmatpush1.bf16.msra.mxu0 0
      %2610 = vmatprep.subr.bf16.mxu0 0
      %2611 = vmatpush1.bf16.msra.mxu0 0
      %2612 = vmatprep.subr.bf16.mxu0 0
      %2613 = vmatpush1.bf16.msra.mxu0 0
      %2614 = vmatprep.subr.bf16.mxu0 %v2549
      %2615 = vmatpush1.bf16.msra.mxu0 %v2548
      %2616 = vmatprep.subr.bf16.mxu0 %v2507
      %2617 = vmatpush1.bf16.msra.mxu0 %v2506
      %2618 = vmatprep.subr.bf16.mxu0 %v2465
      %2619 = vmatpush1.bf16.msra.mxu0 %v2464
      %2620 = vmatprep.subr.bf16.mxu0 0
      %2621 = vmatpush2.bf16.msra.mxu0 0
      %2622 = vmatprep.subr.bf16.mxu0 0
      %2623 = vmatpush2.bf16.msra.mxu0 0
      %2624 = vmatprep.subr.bf16.mxu0 0
      %2625 = vmatpush2.bf16.msra.mxu0 0
      %2626 = vmatprep.subr.bf16.mxu0 0
      %2627 = vmatpush2.bf16.msra.mxu0 0
      %2628 = vmatprep.subr.bf16.mxu0 0
      %2629 = vmatpush2.bf16.msra.mxu0 0
      %2630 = vmatprep.subr.bf16.mxu0 0
      %2631 = vmatpush2.bf16.msra.mxu0 0
      %2632 = vmatprep.subr.bf16.mxu0 0
      %2633 = vmatpush2.bf16.msra.mxu0 0
      %2634 = vmatprep.subr.bf16.mxu0 0
      %2635 = vmatpush2.bf16.msra.mxu0 0
      %2636 = vmatprep.mubr.bf16.mxu0 0
      %2637 = vmatmul.mubr.bf16.gmra.mxu0 %v2559
      %v2638 = vpop.f32.mrf.mxu0
      %v2639 = vadd.f32 0.0, %v2638
      %v2640 = vpop.f32.mrf.mxu0
      %v2641 = vadd.f32 0.0, %v2640
      %v2642 = vpop.f32.mrf.mxu0
      %v2643 = vadd.f32 0.0, %v2642
      %v2644 = vpop.f32.mrf.mxu0
      %v2645 = vadd.f32 0.0, %v2644
      %2646 = vdwg.mxu0
      %v2647 = vadd.f32 %v2373, %v2596
      %v2648 = vadd.f32 %v2375, %v2598
      %v2649 = vadd.f32 %v2416, %v2639
      %v2650 = vadd.f32 %v2418, %v2641
      %v2651 = vadd.f32 %v2377, %v2600
      %v2652 = vadd.f32 %v2379, %v2602
      %v2653 = vadd.f32 %v2420, %v2643
      %v2654 = vadd.f32 %v2422, %v2645
      %2656 = vset.pattern.permute.xlu0 0
      %2657 = vperm.xlu0 %2656, %v2007
      %v2658 = vpop.permute.xlu0 %2657
      %2661 = vset.pattern.permute.xlu0 0
      %2662 = vperm.xlu0 %2661, %v2008
      %v2663 = vpop.permute.xlu0 %2662
      %v2665 = vadd.f32 %v2647, %v2658
      %v2666 = vadd.f32 %v2648, %v2658
      %v2667 = vadd.f32 %v2649, %v2658
      %v2668 = vadd.f32 %v2650, %v2658
      %v2669 = vadd.f32 %v2651, %v2663
      %v2670 = vadd.f32 %v2652, %v2663
      %v2671 = vadd.f32 %v2653, %v2663
      %v2672 = vadd.f32 %v2654, %v2663
      %v2673 = vmax.f32 %v2665, 0.0
      %v2674 = vmax.f32 %v2666, 0.0
      %v2675 = vmax.f32 %v2667, 0.0
      %v2676 = vmax.f32 %v2668, 0.0
      %v2677 = vmax.f32 %v2669, 0.0
      %v2678 = vmax.f32 %v2670, 0.0
      %v2679 = vmax.f32 %v2671, 0.0
      %v2680 = vmax.f32 %v2672, 0.0
      %v2681 = vadd.f32 %v1999, %v2673
      %v2682 = vadd.f32 %v2000, %v2674
      %v2683 = vadd.f32 %v2001, %v2675
      %v2684 = vadd.f32 %v2002, %v2676
      %v2685 = vadd.f32 %v2003, %v2677
      %v2686 = vadd.f32 %v2004, %v2678
      %v2687 = vadd.f32 %v2005, %v2679
      %v2688 = vadd.f32 %v2006, %v2680
      %v2689 = vsub.f32 %v2681, %v2683
      %v2690 = vsub.f32 %v2682, %v2684
      %v2691 = vsub.f32 %v2685, %v2687
      %v2692 = vsub.f32 %v2686, %v2688
      %v2693 = vand.u32 2147483647, %v2689
      %v2694 = vand.u32 2147483647, %v2690
      %v2695 = vand.u32 2147483647, %v2691
      %v2696 = vand.u32 2147483647, %v2692
      %v2697 = vld [vmem:[%s9] sm:$0xf]
      %v2698 = vpack.c.bf16 %v2695, %v2693
      %v2699 = vpack.c.bf16 %v2696, %v2694
      %v2700 = vld [vmem:[%s10] sm:$0xff]
      %2702 = vset.pattern.permute.xlu0 0
      %2703 = vperm.xlu0 %2702, %v2700
      %v2704 = vpop.permute.xlu0 %2703
      %v2707 = vsel %vm571, %v2697, 0
      %2709 = vmatprep.subr.bf16.mxu0 0
      %2710 = vmatpush1.bf16.msra.mxu0 0
      %2711 = vmatprep.subr.bf16.mxu0 0
      %2712 = vmatpush1.bf16.msra.mxu0 0
      %2713 = vmatprep.subr.bf16.mxu0 0
      %2714 = vmatpush1.bf16.msra.mxu0 0
      %2715 = vmatprep.subr.bf16.mxu0 0
      %2716 = vmatpush1.bf16.msra.mxu0 0
      %2717 = vmatprep.subr.bf16.mxu0 0
      %2718 = vmatpush1.bf16.msra.mxu0 0
      %2719 = vmatprep.subr.bf16.mxu0 0
      %2720 = vmatpush1.bf16.msra.mxu0 0
      %2721 = vmatprep.subr.bf16.mxu0 0
      %2722 = vmatpush1.bf16.msra.mxu0 0
      %2723 = vmatprep.subr.bf16.mxu0 %v2699
      %2724 = vmatpush1.bf16.msra.mxu0 %v2698
      %2725 = vmatprep.subr.bf16.mxu0 0
      %2726 = vmatpush2.bf16.msra.mxu0 0
      %2727 = vmatprep.subr.bf16.mxu0 0
      %2728 = vmatpush2.bf16.msra.mxu0 0
      %2729 = vmatprep.subr.bf16.mxu0 0
      %2730 = vmatpush2.bf16.msra.mxu0 0
      %2731 = vmatprep.subr.bf16.mxu0 0
      %2732 = vmatpush2.bf16.msra.mxu0 0
      %2733 = vmatprep.subr.bf16.mxu0 0
      %2734 = vmatpush2.bf16.msra.mxu0 0
      %2735 = vmatprep.subr.bf16.mxu0 0
      %2736 = vmatpush2.bf16.msra.mxu0 0
      %2737 = vmatprep.subr.bf16.mxu0 0
      %2738 = vmatpush2.bf16.msra.mxu0 0
      %2739 = vmatprep.subr.bf16.mxu0 0
      %2740 = vmatpush2.bf16.msra.mxu0 0
      %2741 = vmatprep.mubr.bf16.mxu0 0
      %2742 = vmatmul.mubr.bf16.gmra.mxu0 %v2707
      %v2743 = vpop.f32.mrf.mxu0
      %v2744 = vadd.f32 %v2704, %v2743
      %v2745 = vpop.f32.mrf.mxu0
      %v2746 = vadd.f32 %v2704, %v2745
      %v2747 = vpop.f32.mrf.mxu0
      %v2748 = vpop.f32.mrf.mxu0
      %2749 = vdwg.mxu0
      %v2750 = vpack.c.bf16 %v2744, %v2744
      %v2751 = vpack.c.bf16 %v2746, %v2746
      %v2754 = vunpack.c.l.b16 %v2750
      %v2755 = vunpack.c.l.b16 %v2751
      %v2756 = vpack.c.b16 %v2755, %v2754
      %2758 = vst [vmem:[%s440] sm:$0xff] %v2756
      %v2759 = vadd.f32 %v2744, %v2746
      %2760 = vadd.xlane.f32.xlu0 %v2759
      %v2761 = vpop.xlane.xlu0 %2760
      %v2762 = vmul.f32 %v2744, %v2744
      %v2763 = vmul.f32 %v2746, %v2746
      %v2764 = vadd.f32 %v2762, %v2763
      %2765 = vadd.xlane.f32.xlu0 %v2764
      %v2766 = vpop.xlane.xlu0 %2765
      %v2767 = vsel %vm703, %v2761, %v2766
      %vm2768 = vcmask 15360
      %2769 = vst.msk [vmem:[%s444] sm:$0xff] %vm2768, %v2767
      %p2770 = scmp.lt.s32.totalorder %s24, 1
      %s2771 = scalar_select %p2770, %s24, 1
      %s2772 = smul.addr %s2771, 2
      %s2773 = smul.addr %s2772, 4
      %s2774 = scalar_lea.vmem %s11, %s2773
      %p2775 = scmp.lt.s32.totalorder %s24, 1
      %s2776 = scalar_select %p2775, %s24, 1
      %s2777 = smul.addr %s2776, 8
      %s2778 = scalar_lea.vmem %s12, %s2777
      // Predicated region
      $region65: #{densecat_cat_diff.2} parent=63 // pred_check
        %p2779 = pneg %p283
      $region66: #{densecat_cat_diff.2} parent=63 // pred_check_branch
        %2781 = sbr.rel (%p2779) target = $region68
      $region67: #{densecat_cat_diff.2} parent=63 // pred_region
        _
      $region68: #{densecat_cat_diff.2} parent=63 // pred_fallthru
        _
      // Predicated region
      $region69: #{densecat_cat_diff.2} parent=63 // pred_check
        %p2782 = pneg %p309
      $region70: #{densecat_cat_diff.2} parent=63 // pred_check_branch
        %2784 = sbr.rel (%p2782) target = $region72
      $region71: #{densecat_cat_diff.2} parent=63 // pred_region
        _
      $region72: #{densecat_cat_diff.2} parent=63 // pred_fallthru
        _
    $region64: #{densecat_cat_diff.2} parent=5 // pred_fallthru
      _
    %p2785 = scmp.le.s32.totalorder 2, %s19
    // Predicated region
    $region73: #{densecat_cat_diff.2} parent=5 // pred_check
      %p2786 = pneg %p2785
    $region74: #{densecat_cat_diff.2} parent=5 // pred_check_branch
      %2788 = sbr.rel (%p2786) target = $region76
    $region75: #{densecat_cat_diff.2} parent=5 // pred_region
      %s2789 = ssub.s32 %s19, 2
      // Predicated region
      $region77: #{densecat_cat_diff.2} parent=75 // pred_check
        %p2790 = pneg %p289
      $region78: #{densecat_cat_diff.2} parent=75 // pred_check_branch
        %2792 = sbr.rel (%p2790) target = $region80
      $region79: #{densecat_cat_diff.2} parent=75 // pred_region
        %p2793 = scmp.lt.s32.totalorder %s25, 1
        %s2794 = scalar_select %p2793, %s25, 1
        %s2795 = smul.addr %s2794, 2
        %s2796 = smul.addr %s2795, 4
        %s2797 = scalar_lea.vmem %s11, %s2796
      $region80: #{densecat_cat_diff.2} parent=75 // pred_fallthru
        _
      // Predicated region
      $region81: #{densecat_cat_diff.2} parent=75 // pred_check
        %p2798 = pneg %p315
      $region82: #{densecat_cat_diff.2} parent=75 // pred_check_branch
        %2800 = sbr.rel (%p2798) target = $region84
      $region83: #{densecat_cat_diff.2} parent=75 // pred_region
        %p2801 = scmp.lt.s32.totalorder %s25, 1
        %s2802 = scalar_select %p2801, %s25, 1
        %s2803 = smul.addr %s2802, 8
        %s2804 = scalar_lea.vmem %s12, %s2803
      $region84: #{densecat_cat_diff.2} parent=75 // pred_fallthru
        _
    $region76: #{densecat_cat_diff.2} parent=5 // pred_fallthru
      _
  $region6: #{densecat_cat_diff.2} parent=0 // loop_footer
    %s23 = sadd.s32 1, %s19
  $region7: #{densecat_cat_diff.2} parent=0 // loop_footer_branch
    %18 = sbr.rel target = $region3
  $region8: #{densecat_cat_diff.2} parent=0 // loop_exit
    _

</llo_original>
